<compile_context>
chip_gen: v6e
topology: v6e:2x2x1
jax: 0.10.0
libtpu: 0.0.40
codegen_flags: <defaults>
</compile_context>

<pallas_src>
import math

import jax
import jax.numpy as jnp
from jax.experimental import pallas as pl
from jax.experimental.pallas import tpu as pltpu


_CHANNELS = [(3, 8), (8, 16), (16, 32), (32, 32)]
_KSIZE = 5


# -----------------------------------------------------------------------------
# Fused kernel: 4 x (conv 5x5 VALID + folded BN + ReLU + maxpool 2x2) per image.
#
# Activation layout (inputs and VMEM scratch): 2-D (H*Cin, Wcat) f32 planes,
# row index = h*Cin + c, columns packed as [even image cols | odd image cols]
# ("whe" = width of the even half).  For pooled output row pi we read the 6
# consecutive image rows it needs, contract the full 5x5xCin patch with two
# matmuls (one per conv row), combine the 5 dx taps with static lane shifts,
# apply bias+ReLU, take the 2x2 max, and write the row into the next layer's
# plane (split back into [even|odd] with a 0/1 selection matmul).
# -----------------------------------------------------------------------------
def _fused_cnn_kernel(x_ref,
                      w1, b1, s1, w2, b2, s2, w3, b3, s3, w4, b4,
                      out_ref, a2_ref, a3_ref, a4_ref):

    def run_layer(read6, write_row, wmat_ref, bias_ref, *, cin, cout, hp, wp, whe):
        wm = wmat_ref[...]          # (5*cout, 5*cin) bf16, BN scale pre-folded
        bias = bias_ref[...]        # (cout, 1) f32

        def body(pi, carry):
            # 6 consecutive input rows cover conv rows (2*pi, 2*pi + 1).
            xb6 = read6(2 * pi)                                    # (6*cin, Wcat) f32
            lo = xb6[0:_KSIZE * cin, :].astype(jnp.bfloat16)       # conv row 2*pi
            hi = xb6[cin:(_KSIZE + 1) * cin, :].astype(jnp.bfloat16)  # row 2*pi+1
            # P[dx*cout+co, t] = sum_{dy,ci} w[dy,dx,ci,co] * x[r+dy, col(t), ci]
            p_lo = jnp.dot(wm, lo, preferred_element_type=jnp.float32)
            p_hi = jnp.dot(wm, hi, preferred_element_type=jnp.float32)

            quads = []
            for p in (p_lo, p_hi):
                for parity in range(2):            # conv column parity (even/odd)
                    acc = None
                    for dx in range(_KSIZE):
                        src_odd = (parity + dx) % 2
                        shift = (parity + dx) // 2
                        off = shift + (whe if src_odd else 0)
                        piece = p[dx * cout:(dx + 1) * cout, off:off + wp]
                        acc = piece if acc is None else acc + piece
                    quads.append(jnp.maximum(acc + bias, 0.0))     # BN bias + ReLU
            pooled = jnp.maximum(jnp.maximum(quads[0], quads[1]),
                                 jnp.maximum(quads[2], quads[3]))  # 2x2 max-pool
            write_row(pi, pooled)                                  # (cout, wp)
            return carry

        jax.lax.fori_loop(0, hp, body, 0)

    # ---------------- layer 1: packed HBM input block -> a2 ----------------
    s1v = s1[...]
    def read1(r):
        return x_ref[0, pl.ds(pl.multiple_of(r * 8, 16), 6 * 8), :]
    def write1(pi, pooled):                       # pooled: (8, 110)
        packed = jnp.dot(pooled.astype(jnp.bfloat16), s1v,
                         preferred_element_type=jnp.float32)
        a2_ref[pl.ds(pl.multiple_of(pi * 8, 8), 8), :] = packed
    run_layer(read1, write1, w1, b1, cin=8, cout=8, hp=110, wp=110, whe=112)

    # ---------------- layer 2: a2 -> a3 ----------------
    s2v = s2[...]
    def read2(r):
        return a2_ref[pl.ds(pl.multiple_of(r * 8, 16), 6 * 8), :]
    def write2(pi, pooled):                       # pooled: (16, 53)
        packed = jnp.dot(pooled.astype(jnp.bfloat16), s2v,
                         preferred_element_type=jnp.float32)
        a3_ref[pl.ds(pl.multiple_of(pi * 16, 16), 16), :] = packed
    run_layer(read2, write2, w2, b2, cin=8, cout=16, hp=53, wp=53, whe=55)

    # ---------------- layer 3: a3 -> a4 ----------------
    s3v = s3[...]
    def read3(r):
        return a3_ref[pl.ds(pl.multiple_of(r * 16, 32), 6 * 16), :]
    def write3(pi, pooled):                       # pooled: (32, 24)
        packed = jnp.dot(pooled.astype(jnp.bfloat16), s3v,
                         preferred_element_type=jnp.float32)
        a4_ref[pl.ds(pl.multiple_of(pi * 32, 32), 32), :] = packed
    run_layer(read3, write3, w3, b3, cin=16, cout=32, hp=24, wp=24, whe=27)

    # ---------------- layer 4: a4 -> output rows ----------------
    def read4(r):
        return a4_ref[pl.ds(pl.multiple_of(r * 32, 64), 6 * 32), :]
    def write4(pi, pooled):                       # pooled: (32, 10)
        out_ref[0, pi] = pooled
    run_layer(read4, write4, w4, b4, cin=32, cout=32, hp=10, wp=10, whe=12)


# -----------------------------------------------------------------------------
# Wrapper-side layout plumbing (cheap XLA ops, only for the network boundary).
# -----------------------------------------------------------------------------
def _pack_input(x_nchw):
    """(N,3,224,224) NCHW -> (N, 224*8, 224): rows h*8 + c (channels padded to
    8), columns packed as [even image cols | odd image cols] (112 + 112)."""
    n, c, h, w = x_nchw.shape
    x = jnp.pad(x_nchw.astype(jnp.float32), ((0, 0), (0, 8 - c), (0, 0), (0, 0)))
    x = jnp.transpose(x, (0, 2, 1, 3))                        # (N, H, 8, W)
    x = jnp.concatenate([x[..., 0::2], x[..., 1::2]], axis=-1)
    return x.reshape(n, h * 8, w)


def _pack_weight(w_hwio, scale, cin_pad):
    """HWIO (5,5,cin,cout) -> (5*cout, 5*cin_pad) bf16 with BN scale folded:
    wmat[dx*cout+co, dy*cin+ci] = w[dy,dx,ci,co] * scale[co]."""
    k, _, cin, cout = w_hwio.shape
    w = w_hwio * scale[None, None, None, :]
    if cin_pad > cin:
        w = jnp.pad(w, ((0, 0), (0, 0), (0, cin_pad - cin), (0, 0)))
    wm = jnp.transpose(w, (1, 3, 0, 2)).reshape(k * cout, k * cin_pad)
    return wm.astype(jnp.bfloat16)


def _split_matrix(wp):
    """(wp, wp) 0/1 matrix: pooled column j -> [even | odd] packed layout of
    the next layer (even half width = ceil(wp/2))."""
    whe = (wp + 1) // 2
    rows = jnp.arange(wp)
    cols = jnp.where(rows % 2 == 0, rows // 2, whe + rows // 2)
    s = jnp.zeros((wp, wp), jnp.float32).at[rows, cols].set(1.0)
    return s.astype(jnp.bfloat16)


def init_params(key):
    """Deterministic synthetic parameters (shapes from MultitaskCNN.__init__)."""
    params = []
    for cin, cout in _CHANNELS:
        key, kw, kb, kg, kbt, km, kv = jax.random.split(key, 7)
        # conv weight init follows the module's pretrained=False scheme
        n = _KSIZE * _KSIZE * (cin + cout)
        w = jax.random.normal(kw, (_KSIZE, _KSIZE, cin, cout),
                              jnp.float32) * math.sqrt(2.0 / n)
        conv_b = 0.05 * jax.random.normal(kb, (cout,), jnp.float32)
        gamma = 1.0 + 0.1 * jax.random.normal(kg, (cout,), jnp.float32)
        beta = 0.1 * jax.random.normal(kbt, (cout,), jnp.float32)
        r_mean = 0.1 * jax.random.normal(km, (cout,), jnp.float32)
        r_var = 0.9 + 0.2 * jax.random.uniform(kv, (cout,), jnp.float32)
        s = gamma / jnp.sqrt(r_var + 1e-5)          # eval-mode BN folded
        params.append({"w": w, "scale": s, "bias": beta + (conv_b - r_mean) * s})
    return params


@jax.jit
def multitask_cnn_forward(x_nchw, params):
    n, c, h, w = x_nchw.shape
    assert (c, h, w) == (3, 224, 224), "layer geometry is pinned by view(-1, 3200)"

    xp = _pack_input(x_nchw)                                   # (n, 1792, 224)
    cin_pads = (8, 8, 16, 32)
    wms = [_pack_weight(p["w"], p["scale"], cp) for p, cp in zip(params, cin_pads)]
    bis = [p["bias"].reshape(-1, 1).astype(jnp.float32) for p in params]
    splits = [_split_matrix(wp) for wp in (110, 53, 24)]

    operands = [xp,
                wms[0], bis[0], splits[0],
                wms[1], bis[1], splits[1],
                wms[2], bis[2], splits[2],
                wms[3], bis[3]]

    def _const_spec(a):
        nd = a.ndim
        return pl.BlockSpec(a.shape, lambda b, _nd=nd: (0,) * _nd)

    in_specs = [pl.BlockSpec((1, 224 * 8, 224), lambda b: (b, 0, 0))]
    in_specs += [_const_spec(a) for a in operands[1:]]

    out = pl.pallas_call(
        _fused_cnn_kernel,
        out_shape=jax.ShapeDtypeStruct((n, 10, 32, 10), jnp.float32),
        grid_spec=pltpu.PrefetchScalarGridSpec(
            num_scalar_prefetch=0,
            grid=(n,),                                  # whole image per step
            in_specs=in_specs,
            out_specs=pl.BlockSpec((1, 10, 32, 10), lambda b: (b, 0, 0, 0)),
            scratch_shapes=[                            # inter-layer activations
                pltpu.VMEM((110 * 8, 110), jnp.float32),   # layer-1 out / L2 in
                pltpu.VMEM((53 * 16, 53), jnp.float32),    # layer-2 out / L3 in
                pltpu.VMEM((24 * 32, 24), jnp.float32),    # layer-3 out / L4 in
            ],
        ),
        compiler_params=pltpu.CompilerParams(
            dimension_semantics=("parallel",)),         # 1 image / core on v7x
    )(*operands)

    # (N, hp, cout, wp) -> NCHW flatten order == torch's conv4.view(-1, 3200)
    return jnp.transpose(out, (0, 2, 1, 3)).reshape(n, 32 * 10 * 10)


@jax.jit
def multitask_cnn_reference(x_nchw, params):
    """Pure-JAX reference with identical semantics (for verification)."""
    x = jnp.transpose(x_nchw, (0, 2, 3, 1)).astype(jnp.float32)
    for p in params:
        y = jax.lax.conv_general_dilated(
            x, p["w"], window_strides=(1, 1), padding="VALID",
            dimension_numbers=("NHWC", "HWIO", "NHWC"),
            precision=jax.lax.Precision.HIGHEST)
        y = jnp.maximum(y * p["scale"] + p["bias"], 0.0)
        y = jax.lax.reduce_window(y, -jnp.inf, jax.lax.max,
                                  (1, 2, 2, 1), (1, 2, 2, 1), "VALID")
        x = y
    x = jnp.transpose(x, (0, 3, 1, 2))
    return x.reshape(-1, 32 * 10 * 10)


if __name__ == "__main__":
    key = jax.random.PRNGKey(0)
    pkey, xkey = jax.random.split(key)
    params = init_params(pkey)

    # forward()'s view(-1, 32*10*10) pins conv4's spatial size to 10x10, which
    # requires 224x224 inputs; batch and channels stay small (2, 3).
    x = jax.random.normal(xkey, (2, 3, 224, 224), jnp.float32)

    out = jax.block_until_ready(multitask_cnn_forward(x, params))
    assert out.shape == (2, 32 * 10 * 10), out.shape

    ref = jax.block_until_ready(multitask_cnn_reference(x, params))
    # bf16 matmul operands (f32 accumulation) over 4 conv layers give ~1%
    # numeric noise; atol also covers ReLU-threshold crossings near zero.
    max_err = float(jnp.max(jnp.abs(out - ref)))
    if not bool(jnp.allclose(out, ref, rtol=5e-2, atol=2e-2)):
        raise AssertionError(f"Pallas output mismatch, max abs err = {max_err}")

    print("KERNEL_OK")
</pallas_src>

<mosaic_0001>
module attributes {stable_mosaic.version = 11 : i64} {
  func.func @_fused_cnn_kernel(%arg0: i32, %arg1: memref<1x1792x224xf32, #tpu.memory_space<vmem>>, %arg2: memref<40x40xbf16, #tpu.memory_space<vmem>>, %arg3: memref<8x1xf32, #tpu.memory_space<vmem>>, %arg4: memref<110x110xbf16, #tpu.memory_space<vmem>>, %arg5: memref<80x40xbf16, #tpu.memory_space<vmem>>, %arg6: memref<16x1xf32, #tpu.memory_space<vmem>>, %arg7: memref<53x53xbf16, #tpu.memory_space<vmem>>, %arg8: memref<160x80xbf16, #tpu.memory_space<vmem>>, %arg9: memref<32x1xf32, #tpu.memory_space<vmem>>, %arg10: memref<24x24xbf16, #tpu.memory_space<vmem>>, %arg11: memref<160x160xbf16, #tpu.memory_space<vmem>>, %arg12: memref<32x1xf32, #tpu.memory_space<vmem>>, %arg13: memref<1x10x32x10xf32, #tpu.memory_space<vmem>>, %arg14: memref<880x110xf32, #tpu.memory_space<vmem>>, %arg15: memref<848x53xf32, #tpu.memory_space<vmem>>, %arg16: memref<768x24xf32, #tpu.memory_space<vmem>>) attributes {dimension_semantics = [#tpu.dimension_semantics<parallel>], iteration_bounds = array<i64: 2>, scalar_prefetch = 0 : i64, scratch_operands = 3 : i64, tpu.core_type = #tpu.core_type<tc>, window_params = [{transform_indices = @transform_0, window_bounds = array<i64: 1, 1792, 224>}, {pipeline_mode = #tpu.pipeline_mode<synchronous>, transform_indices = @transform_1, window_bounds = array<i64: 40, 40>}, {pipeline_mode = #tpu.pipeline_mode<synchronous>, transform_indices = @transform_2, window_bounds = array<i64: 8, 1>}, {pipeline_mode = #tpu.pipeline_mode<synchronous>, transform_indices = @transform_3, window_bounds = array<i64: 110, 110>}, {pipeline_mode = #tpu.pipeline_mode<synchronous>, transform_indices = @transform_4, window_bounds = array<i64: 80, 40>}, {pipeline_mode = #tpu.pipeline_mode<synchronous>, transform_indices = @transform_5, window_bounds = array<i64: 16, 1>}, {pipeline_mode = #tpu.pipeline_mode<synchronous>, transform_indices = @transform_6, window_bounds = array<i64: 53, 53>}, {pipeline_mode = #tpu.pipeline_mode<synchronous>, transform_indices = @transform_7, window_bounds = array<i64: 160, 80>}, {pipeline_mode = #tpu.pipeline_mode<synchronous>, transform_indices = @transform_8, window_bounds = array<i64: 32, 1>}, {pipeline_mode = #tpu.pipeline_mode<synchronous>, transform_indices = @transform_9, window_bounds = array<i64: 24, 24>}, {pipeline_mode = #tpu.pipeline_mode<synchronous>, transform_indices = @transform_10, window_bounds = array<i64: 160, 160>}, {pipeline_mode = #tpu.pipeline_mode<synchronous>, transform_indices = @transform_11, window_bounds = array<i64: 32, 1>}, {transform_indices = @transform_12, window_bounds = array<i64: 1, 10, 32, 10>}]} {
    %c0 = arith.constant 0 : index
    %c0_0 = arith.constant 0 : index
    %0 = vector.load %arg4[%c0, %c0_0] : memref<110x110xbf16, #tpu.memory_space<vmem>>, vector<110x110xbf16>
    %c0_1 = arith.constant 0 : index
    %c0_2 = arith.constant 0 : index
    %1 = vector.load %arg2[%c0_1, %c0_2] : memref<40x40xbf16, #tpu.memory_space<vmem>>, vector<40x40xbf16>
    %c0_3 = arith.constant 0 : index
    %c0_4 = arith.constant 0 : index
    %2 = vector.load %arg3[%c0_3, %c0_4] : memref<8x1xf32, #tpu.memory_space<vmem>>, vector<8x1xf32>
    %c0_i32 = arith.constant 0 : i32
    %c110_i32 = arith.constant 110 : i32
    %3 = arith.addi %c0_i32, %c110_i32 : i32
    %c1_i32 = arith.constant 1 : i32
    scf.for %arg17 = %c0_i32 to %3 step %c1_i32  : i32 {
      %c2_i32 = arith.constant 2 : i32
      %15 = arith.muli %c2_i32, %arg17 : i32
      %c8_i32 = arith.constant 8 : i32
      %16 = arith.muli %15, %c8_i32 : i32
      %17 = tpu.assume_multiple %16, 16 : i32
      %c0_31 = arith.constant 0 : index
      %18 = arith.index_cast %17 : i32 to index
      %c0_32 = arith.constant 0 : index
      %19 = vector.load %arg1[%c0_31, %18, %c0_32] : memref<1x1792x224xf32, #tpu.memory_space<vmem>>, vector<1x48x224xf32>
      %20 = vector.shape_cast %19 : vector<1x48x224xf32> to vector<48x224xf32>
      %21 = vector.extract_strided_slice %20 {offsets = [0, 0], sizes = [40, 224], strides = [1, 1]} : vector<48x224xf32> to vector<40x224xf32>
      %22 = arith.truncf %21 : vector<40x224xf32> to vector<40x224xbf16>
      %23 = vector.extract_strided_slice %20 {offsets = [8, 0], sizes = [40, 224], strides = [1, 1]} : vector<48x224xf32> to vector<40x224xf32>
      %24 = arith.truncf %23 : vector<40x224xf32> to vector<40x224xbf16>
      %cst = arith.constant dense<0.000000e+00> : vector<40x224xf32>
      %25 = tpu.matmul %1, %22, %cst {dimension_numbers = #tpu.dot_dimension_numbers<[1], [0], [0], [1], [0, 0, 1, 1], [], []>} : vector<40x40xbf16>, vector<40x224xbf16>, vector<40x224xf32> -> vector<40x224xf32>
      %cst_33 = arith.constant dense<0.000000e+00> : vector<40x224xf32>
      %26 = tpu.matmul %1, %24, %cst_33 {dimension_numbers = #tpu.dot_dimension_numbers<[1], [0], [0], [1], [0, 0, 1, 1], [], []>} : vector<40x40xbf16>, vector<40x224xbf16>, vector<40x224xf32> -> vector<40x224xf32>
      %27 = vector.extract_strided_slice %25 {offsets = [0, 0], sizes = [8, 110], strides = [1, 1]} : vector<40x224xf32> to vector<8x110xf32>
      %28 = vector.extract_strided_slice %25 {offsets = [8, 112], sizes = [8, 110], strides = [1, 1]} : vector<40x224xf32> to vector<8x110xf32>
      %29 = arith.addf %27, %28 : vector<8x110xf32>
      %30 = vector.extract_strided_slice %25 {offsets = [16, 1], sizes = [8, 110], strides = [1, 1]} : vector<40x224xf32> to vector<8x110xf32>
      %31 = arith.addf %29, %30 : vector<8x110xf32>
      %32 = vector.extract_strided_slice %25 {offsets = [24, 113], sizes = [8, 110], strides = [1, 1]} : vector<40x224xf32> to vector<8x110xf32>
      %33 = arith.addf %31, %32 : vector<8x110xf32>
      %34 = vector.extract_strided_slice %25 {offsets = [32, 2], sizes = [8, 110], strides = [1, 1]} : vector<40x224xf32> to vector<8x110xf32>
      %35 = arith.addf %33, %34 : vector<8x110xf32>
      %36 = vector.broadcast %2 : vector<8x1xf32> to vector<8x110xf32>
      %37 = arith.addf %35, %36 : vector<8x110xf32>
      %cst_34 = arith.constant 0.000000e+00 : f32
      %38 = vector.broadcast %cst_34 : f32 to vector<8x110xf32>
      %39 = arith.maximumf %37, %38 : vector<8x110xf32>
      %40 = vector.extract_strided_slice %25 {offsets = [0, 112], sizes = [8, 110], strides = [1, 1]} : vector<40x224xf32> to vector<8x110xf32>
      %41 = vector.extract_strided_slice %25 {offsets = [8, 1], sizes = [8, 110], strides = [1, 1]} : vector<40x224xf32> to vector<8x110xf32>
      %42 = arith.addf %40, %41 : vector<8x110xf32>
      %43 = vector.extract_strided_slice %25 {offsets = [16, 113], sizes = [8, 110], strides = [1, 1]} : vector<40x224xf32> to vector<8x110xf32>
      %44 = arith.addf %42, %43 : vector<8x110xf32>
      %45 = vector.extract_strided_slice %25 {offsets = [24, 2], sizes = [8, 110], strides = [1, 1]} : vector<40x224xf32> to vector<8x110xf32>
      %46 = arith.addf %44, %45 : vector<8x110xf32>
      %47 = vector.extract_strided_slice %25 {offsets = [32, 114], sizes = [8, 110], strides = [1, 1]} : vector<40x224xf32> to vector<8x110xf32>
      %48 = arith.addf %46, %47 : vector<8x110xf32>
      %49 = vector.broadcast %2 : vector<8x1xf32> to vector<8x110xf32>
      %50 = arith.addf %48, %49 : vector<8x110xf32>
      %cst_35 = arith.constant 0.000000e+00 : f32
      %51 = vector.broadcast %cst_35 : f32 to vector<8x110xf32>
      %52 = arith.maximumf %50, %51 : vector<8x110xf32>
      %53 = vector.extract_strided_slice %26 {offsets = [0, 0], sizes = [8, 110], strides = [1, 1]} : vector<40x224xf32> to vector<8x110xf32>
      %54 = vector.extract_strided_slice %26 {offsets = [8, 112], sizes = [8, 110], strides = [1, 1]} : vector<40x224xf32> to vector<8x110xf32>
      %55 = arith.addf %53, %54 : vector<8x110xf32>
      %56 = vector.extract_strided_slice %26 {offsets = [16, 1], sizes = [8, 110], strides = [1, 1]} : vector<40x224xf32> to vector<8x110xf32>
      %57 = arith.addf %55, %56 : vector<8x110xf32>
      %58 = vector.extract_strided_slice %26 {offsets = [24, 113], sizes = [8, 110], strides = [1, 1]} : vector<40x224xf32> to vector<8x110xf32>
      %59 = arith.addf %57, %58 : vector<8x110xf32>
      %60 = vector.extract_strided_slice %26 {offsets = [32, 2], sizes = [8, 110], strides = [1, 1]} : vector<40x224xf32> to vector<8x110xf32>
      %61 = arith.addf %59, %60 : vector<8x110xf32>
      %62 = vector.broadcast %2 : vector<8x1xf32> to vector<8x110xf32>
      %63 = arith.addf %61, %62 : vector<8x110xf32>
      %cst_36 = arith.constant 0.000000e+00 : f32
      %64 = vector.broadcast %cst_36 : f32 to vector<8x110xf32>
      %65 = arith.maximumf %63, %64 : vector<8x110xf32>
      %66 = vector.extract_strided_slice %26 {offsets = [0, 112], sizes = [8, 110], strides = [1, 1]} : vector<40x224xf32> to vector<8x110xf32>
      %67 = vector.extract_strided_slice %26 {offsets = [8, 1], sizes = [8, 110], strides = [1, 1]} : vector<40x224xf32> to vector<8x110xf32>
      %68 = arith.addf %66, %67 : vector<8x110xf32>
      %69 = vector.extract_strided_slice %26 {offsets = [16, 113], sizes = [8, 110], strides = [1, 1]} : vector<40x224xf32> to vector<8x110xf32>
      %70 = arith.addf %68, %69 : vector<8x110xf32>
      %71 = vector.extract_strided_slice %26 {offsets = [24, 2], sizes = [8, 110], strides = [1, 1]} : vector<40x224xf32> to vector<8x110xf32>
      %72 = arith.addf %70, %71 : vector<8x110xf32>
      %73 = vector.extract_strided_slice %26 {offsets = [32, 114], sizes = [8, 110], strides = [1, 1]} : vector<40x224xf32> to vector<8x110xf32>
      %74 = arith.addf %72, %73 : vector<8x110xf32>
      %75 = vector.broadcast %2 : vector<8x1xf32> to vector<8x110xf32>
      %76 = arith.addf %74, %75 : vector<8x110xf32>
      %cst_37 = arith.constant 0.000000e+00 : f32
      %77 = vector.broadcast %cst_37 : f32 to vector<8x110xf32>
      %78 = arith.maximumf %76, %77 : vector<8x110xf32>
      %79 = arith.maximumf %39, %52 : vector<8x110xf32>
      %80 = arith.maximumf %65, %78 : vector<8x110xf32>
      %81 = arith.maximumf %79, %80 : vector<8x110xf32>
      %82 = arith.truncf %81 : vector<8x110xf32> to vector<8x110xbf16>
      %cst_38 = arith.constant dense<0.000000e+00> : vector<8x110xf32>
      %83 = tpu.matmul %82, %0, %cst_38 {dimension_numbers = #tpu.dot_dimension_numbers<[1], [0], [0], [1], [0, 0, 1, 1], [], []>} : vector<8x110xbf16>, vector<110x110xbf16>, vector<8x110xf32> -> vector<8x110xf32>
      %c8_i32_39 = arith.constant 8 : i32
      %84 = arith.muli %arg17, %c8_i32_39 : i32
      %85 = tpu.assume_multiple %84, 8 : i32
      %86 = arith.index_cast %85 : i32 to index
      %c0_40 = arith.constant 0 : index
      %87 = vector.load %arg14[%86, %c0_40] : memref<880x110xf32, #tpu.memory_space<vmem>>, vector<8x110xf32>
      tpu.vector_store %arg14[%86, %c0_40], %83 {strides = array<i32>} : memref<880x110xf32, #tpu.memory_space<vmem>>, vector<8x110xf32>,
    }
    %c110_i32_5 = arith.constant 110 : i32
    %c0_6 = arith.constant 0 : index
    %c0_7 = arith.constant 0 : index
    %4 = vector.load %arg7[%c0_6, %c0_7] : memref<53x53xbf16, #tpu.memory_space<vmem>>, vector<53x53xbf16>
    %c0_8 = arith.constant 0 : index
    %c0_9 = arith.constant 0 : index
    %5 = vector.load %arg5[%c0_8, %c0_9] : memref<80x40xbf16, #tpu.memory_space<vmem>>, vector<80x40xbf16>
    %c0_10 = arith.constant 0 : index
    %c0_11 = arith.constant 0 : index
    %6 = vector.load %arg6[%c0_10, %c0_11] : memref<16x1xf32, #tpu.memory_space<vmem>>, vector<16x1xf32>
    %c0_i32_12 = arith.constant 0 : i32
    %c53_i32 = arith.constant 53 : i32
    %7 = arith.addi %c0_i32_12, %c53_i32 : i32
    %c1_i32_13 = arith.constant 1 : i32
    scf.for %arg17 = %c0_i32_12 to %7 step %c1_i32_13  : i32 {
      %c2_i32 = arith.constant 2 : i32
      %15 = arith.muli %c2_i32, %arg17 : i32
      %c8_i32 = arith.constant 8 : i32
      %16 = arith.muli %15, %c8_i32 : i32
      %17 = tpu.assume_multiple %16, 16 : i32
      %18 = arith.index_cast %17 : i32 to index
      %c0_31 = arith.constant 0 : index
      %19 = vector.load %arg14[%18, %c0_31] : memref<880x110xf32, #tpu.memory_space<vmem>>, vector<48x110xf32>
      %20 = vector.extract_strided_slice %19 {offsets = [0, 0], sizes = [40, 110], strides = [1, 1]} : vector<48x110xf32> to vector<40x110xf32>
      %21 = arith.truncf %20 : vector<40x110xf32> to vector<40x110xbf16>
      %22 = vector.extract_strided_slice %19 {offsets = [8, 0], sizes = [40, 110], strides = [1, 1]} : vector<48x110xf32> to vector<40x110xf32>
      %23 = arith.truncf %22 : vector<40x110xf32> to vector<40x110xbf16>
      %cst = arith.constant dense<0.000000e+00> : vector<80x110xf32>
      %24 = tpu.matmul %5, %21, %cst {dimension_numbers = #tpu.dot_dimension_numbers<[1], [0], [0], [1], [0, 0, 1, 1], [], []>} : vector<80x40xbf16>, vector<40x110xbf16>, vector<80x110xf32> -> vector<80x110xf32>
      %cst_32 = arith.constant dense<0.000000e+00> : vector<80x110xf32>
      %25 = tpu.matmul %5, %23, %cst_32 {dimension_numbers = #tpu.dot_dimension_numbers<[1], [0], [0], [1], [0, 0, 1, 1], [], []>} : vector<80x40xbf16>, vector<40x110xbf16>, vector<80x110xf32> -> vector<80x110xf32>
      %26 = vector.extract_strided_slice %24 {offsets = [0, 0], sizes = [16, 53], strides = [1, 1]} : vector<80x110xf32> to vector<16x53xf32>
      %27 = vector.extract_strided_slice %24 {offsets = [16, 55], sizes = [16, 53], strides = [1, 1]} : vector<80x110xf32> to vector<16x53xf32>
      %28 = arith.addf %26, %27 : vector<16x53xf32>
      %29 = vector.extract_strided_slice %24 {offsets = [32, 1], sizes = [16, 53], strides = [1, 1]} : vector<80x110xf32> to vector<16x53xf32>
      %30 = arith.addf %28, %29 : vector<16x53xf32>
      %31 = vector.extract_strided_slice %24 {offsets = [48, 56], sizes = [16, 53], strides = [1, 1]} : vector<80x110xf32> to vector<16x53xf32>
      %32 = arith.addf %30, %31 : vector<16x53xf32>
      %33 = vector.extract_strided_slice %24 {offsets = [64, 2], sizes = [16, 53], strides = [1, 1]} : vector<80x110xf32> to vector<16x53xf32>
      %34 = arith.addf %32, %33 : vector<16x53xf32>
      %35 = vector.broadcast %6 : vector<16x1xf32> to vector<16x53xf32>
      %36 = arith.addf %34, %35 : vector<16x53xf32>
      %cst_33 = arith.constant 0.000000e+00 : f32
      %37 = vector.broadcast %cst_33 : f32 to vector<16x53xf32>
      %38 = arith.maximumf %36, %37 : vector<16x53xf32>
      %39 = vector.extract_strided_slice %24 {offsets = [0, 55], sizes = [16, 53], strides = [1, 1]} : vector<80x110xf32> to vector<16x53xf32>
      %40 = vector.extract_strided_slice %24 {offsets = [16, 1], sizes = [16, 53], strides = [1, 1]} : vector<80x110xf32> to vector<16x53xf32>
      %41 = arith.addf %39, %40 : vector<16x53xf32>
      %42 = vector.extract_strided_slice %24 {offsets = [32, 56], sizes = [16, 53], strides = [1, 1]} : vector<80x110xf32> to vector<16x53xf32>
      %43 = arith.addf %41, %42 : vector<16x53xf32>
      %44 = vector.extract_strided_slice %24 {offsets = [48, 2], sizes = [16, 53], strides = [1, 1]} : vector<80x110xf32> to vector<16x53xf32>
      %45 = arith.addf %43, %44 : vector<16x53xf32>
      %46 = vector.extract_strided_slice %24 {offsets = [64, 57], sizes = [16, 53], strides = [1, 1]} : vector<80x110xf32> to vector<16x53xf32>
      %47 = arith.addf %45, %46 : vector<16x53xf32>
      %48 = vector.broadcast %6 : vector<16x1xf32> to vector<16x53xf32>
      %49 = arith.addf %47, %48 : vector<16x53xf32>
      %cst_34 = arith.constant 0.000000e+00 : f32
      %50 = vector.broadcast %cst_34 : f32 to vector<16x53xf32>
      %51 = arith.maximumf %49, %50 : vector<16x53xf32>
      %52 = vector.extract_strided_slice %25 {offsets = [0, 0], sizes = [16, 53], strides = [1, 1]} : vector<80x110xf32> to vector<16x53xf32>
      %53 = vector.extract_strided_slice %25 {offsets = [16, 55], sizes = [16, 53], strides = [1, 1]} : vector<80x110xf32> to vector<16x53xf32>
      %54 = arith.addf %52, %53 : vector<16x53xf32>
      %55 = vector.extract_strided_slice %25 {offsets = [32, 1], sizes = [16, 53], strides = [1, 1]} : vector<80x110xf32> to vector<16x53xf32>
      %56 = arith.addf %54, %55 : vector<16x53xf32>
      %57 = vector.extract_strided_slice %25 {offsets = [48, 56], sizes = [16, 53], strides = [1, 1]} : vector<80x110xf32> to vector<16x53xf32>
      %58 = arith.addf %56, %57 : vector<16x53xf32>
      %59 = vector.extract_strided_slice %25 {offsets = [64, 2], sizes = [16, 53], strides = [1, 1]} : vector<80x110xf32> to vector<16x53xf32>
      %60 = arith.addf %58, %59 : vector<16x53xf32>
      %61 = vector.broadcast %6 : vector<16x1xf32> to vector<16x53xf32>
      %62 = arith.addf %60, %61 : vector<16x53xf32>
      %cst_35 = arith.constant 0.000000e+00 : f32
      %63 = vector.broadcast %cst_35 : f32 to vector<16x53xf32>
      %64 = arith.maximumf %62, %63 : vector<16x53xf32>
      %65 = vector.extract_strided_slice %25 {offsets = [0, 55], sizes = [16, 53], strides = [1, 1]} : vector<80x110xf32> to vector<16x53xf32>
      %66 = vector.extract_strided_slice %25 {offsets = [16, 1], sizes = [16, 53], strides = [1, 1]} : vector<80x110xf32> to vector<16x53xf32>
      %67 = arith.addf %65, %66 : vector<16x53xf32>
      %68 = vector.extract_strided_slice %25 {offsets = [32, 56], sizes = [16, 53], strides = [1, 1]} : vector<80x110xf32> to vector<16x53xf32>
      %69 = arith.addf %67, %68 : vector<16x53xf32>
      %70 = vector.extract_strided_slice %25 {offsets = [48, 2], sizes = [16, 53], strides = [1, 1]} : vector<80x110xf32> to vector<16x53xf32>
      %71 = arith.addf %69, %70 : vector<16x53xf32>
      %72 = vector.extract_strided_slice %25 {offsets = [64, 57], sizes = [16, 53], strides = [1, 1]} : vector<80x110xf32> to vector<16x53xf32>
      %73 = arith.addf %71, %72 : vector<16x53xf32>
      %74 = vector.broadcast %6 : vector<16x1xf32> to vector<16x53xf32>
      %75 = arith.addf %73, %74 : vector<16x53xf32>
      %cst_36 = arith.constant 0.000000e+00 : f32
      %76 = vector.broadcast %cst_36 : f32 to vector<16x53xf32>
      %77 = arith.maximumf %75, %76 : vector<16x53xf32>
      %78 = arith.maximumf %38, %51 : vector<16x53xf32>
      %79 = arith.maximumf %64, %77 : vector<16x53xf32>
      %80 = arith.maximumf %78, %79 : vector<16x53xf32>
      %81 = arith.truncf %80 : vector<16x53xf32> to vector<16x53xbf16>
      %cst_37 = arith.constant dense<0.000000e+00> : vector<16x53xf32>
      %82 = tpu.matmul %81, %4, %cst_37 {dimension_numbers = #tpu.dot_dimension_numbers<[1], [0], [0], [1], [0, 0, 1, 1], [], []>} : vector<16x53xbf16>, vector<53x53xbf16>, vector<16x53xf32> -> vector<16x53xf32>
      %c16_i32 = arith.constant 16 : i32
      %83 = arith.muli %arg17, %c16_i32 : i32
      %84 = tpu.assume_multiple %83, 16 : i32
      %85 = arith.index_cast %84 : i32 to index
      %c0_38 = arith.constant 0 : index
      %86 = vector.load %arg15[%85, %c0_38] : memref<848x53xf32, #tpu.memory_space<vmem>>, vector<16x53xf32>
      tpu.vector_store %arg15[%85, %c0_38], %82 {strides = array<i32>} : memref<848x53xf32, #tpu.memory_space<vmem>>, vector<16x53xf32>,
    }
    %c53_i32_14 = arith.constant 53 : i32
    %c0_15 = arith.constant 0 : index
    %c0_16 = arith.constant 0 : index
    %8 = vector.load %arg10[%c0_15, %c0_16] : memref<24x24xbf16, #tpu.memory_space<vmem>>, vector<24x24xbf16>
    %c0_17 = arith.constant 0 : index
    %c0_18 = arith.constant 0 : index
    %9 = vector.load %arg8[%c0_17, %c0_18] : memref<160x80xbf16, #tpu.memory_space<vmem>>, vector<160x80xbf16>
    %c0_19 = arith.constant 0 : index
    %c0_20 = arith.constant 0 : index
    %10 = vector.load %arg9[%c0_19, %c0_20] : memref<32x1xf32, #tpu.memory_space<vmem>>, vector<32x1xf32>
    %c0_i32_21 = arith.constant 0 : i32
    %c24_i32 = arith.constant 24 : i32
    %11 = arith.addi %c0_i32_21, %c24_i32 : i32
    %c1_i32_22 = arith.constant 1 : i32
    scf.for %arg17 = %c0_i32_21 to %11 step %c1_i32_22  : i32 {
      %c2_i32 = arith.constant 2 : i32
      %15 = arith.muli %c2_i32, %arg17 : i32
      %c16_i32 = arith.constant 16 : i32
      %16 = arith.muli %15, %c16_i32 : i32
      %17 = tpu.assume_multiple %16, 32 : i32
      %18 = arith.index_cast %17 : i32 to index
      %c0_31 = arith.constant 0 : index
      %19 = vector.load %arg15[%18, %c0_31] : memref<848x53xf32, #tpu.memory_space<vmem>>, vector<96x53xf32>
      %20 = vector.extract_strided_slice %19 {offsets = [0, 0], sizes = [80, 53], strides = [1, 1]} : vector<96x53xf32> to vector<80x53xf32>
      %21 = arith.truncf %20 : vector<80x53xf32> to vector<80x53xbf16>
      %22 = vector.extract_strided_slice %19 {offsets = [16, 0], sizes = [80, 53], strides = [1, 1]} : vector<96x53xf32> to vector<80x53xf32>
      %23 = arith.truncf %22 : vector<80x53xf32> to vector<80x53xbf16>
      %cst = arith.constant dense<0.000000e+00> : vector<160x53xf32>
      %24 = tpu.matmul %9, %21, %cst {dimension_numbers = #tpu.dot_dimension_numbers<[1], [0], [0], [1], [0, 0, 1, 1], [], []>} : vector<160x80xbf16>, vector<80x53xbf16>, vector<160x53xf32> -> vector<160x53xf32>
      %cst_32 = arith.constant dense<0.000000e+00> : vector<160x53xf32>
      %25 = tpu.matmul %9, %23, %cst_32 {dimension_numbers = #tpu.dot_dimension_numbers<[1], [0], [0], [1], [0, 0, 1, 1], [], []>} : vector<160x80xbf16>, vector<80x53xbf16>, vector<160x53xf32> -> vector<160x53xf32>
      %26 = vector.extract_strided_slice %24 {offsets = [0, 0], sizes = [32, 24], strides = [1, 1]} : vector<160x53xf32> to vector<32x24xf32>
      %27 = vector.extract_strided_slice %24 {offsets = [32, 27], sizes = [32, 24], strides = [1, 1]} : vector<160x53xf32> to vector<32x24xf32>
      %28 = arith.addf %26, %27 : vector<32x24xf32>
      %29 = vector.extract_strided_slice %24 {offsets = [64, 1], sizes = [32, 24], strides = [1, 1]} : vector<160x53xf32> to vector<32x24xf32>
      %30 = arith.addf %28, %29 : vector<32x24xf32>
      %31 = vector.extract_strided_slice %24 {offsets = [96, 28], sizes = [32, 24], strides = [1, 1]} : vector<160x53xf32> to vector<32x24xf32>
      %32 = arith.addf %30, %31 : vector<32x24xf32>
      %33 = vector.extract_strided_slice %24 {offsets = [128, 2], sizes = [32, 24], strides = [1, 1]} : vector<160x53xf32> to vector<32x24xf32>
      %34 = arith.addf %32, %33 : vector<32x24xf32>
      %35 = vector.broadcast %10 : vector<32x1xf32> to vector<32x24xf32>
      %36 = arith.addf %34, %35 : vector<32x24xf32>
      %cst_33 = arith.constant 0.000000e+00 : f32
      %37 = vector.broadcast %cst_33 : f32 to vector<32x24xf32>
      %38 = arith.maximumf %36, %37 : vector<32x24xf32>
      %39 = vector.extract_strided_slice %24 {offsets = [0, 27], sizes = [32, 24], strides = [1, 1]} : vector<160x53xf32> to vector<32x24xf32>
      %40 = vector.extract_strided_slice %24 {offsets = [32, 1], sizes = [32, 24], strides = [1, 1]} : vector<160x53xf32> to vector<32x24xf32>
      %41 = arith.addf %39, %40 : vector<32x24xf32>
      %42 = vector.extract_strided_slice %24 {offsets = [64, 28], sizes = [32, 24], strides = [1, 1]} : vector<160x53xf32> to vector<32x24xf32>
      %43 = arith.addf %41, %42 : vector<32x24xf32>
      %44 = vector.extract_strided_slice %24 {offsets = [96, 2], sizes = [32, 24], strides = [1, 1]} : vector<160x53xf32> to vector<32x24xf32>
      %45 = arith.addf %43, %44 : vector<32x24xf32>
      %46 = vector.extract_strided_slice %24 {offsets = [128, 29], sizes = [32, 24], strides = [1, 1]} : vector<160x53xf32> to vector<32x24xf32>
      %47 = arith.addf %45, %46 : vector<32x24xf32>
      %48 = vector.broadcast %10 : vector<32x1xf32> to vector<32x24xf32>
      %49 = arith.addf %47, %48 : vector<32x24xf32>
      %cst_34 = arith.constant 0.000000e+00 : f32
      %50 = vector.broadcast %cst_34 : f32 to vector<32x24xf32>
      %51 = arith.maximumf %49, %50 : vector<32x24xf32>
      %52 = vector.extract_strided_slice %25 {offsets = [0, 0], sizes = [32, 24], strides = [1, 1]} : vector<160x53xf32> to vector<32x24xf32>
      %53 = vector.extract_strided_slice %25 {offsets = [32, 27], sizes = [32, 24], strides = [1, 1]} : vector<160x53xf32> to vector<32x24xf32>
      %54 = arith.addf %52, %53 : vector<32x24xf32>
      %55 = vector.extract_strided_slice %25 {offsets = [64, 1], sizes = [32, 24], strides = [1, 1]} : vector<160x53xf32> to vector<32x24xf32>
      %56 = arith.addf %54, %55 : vector<32x24xf32>
      %57 = vector.extract_strided_slice %25 {offsets = [96, 28], sizes = [32, 24], strides = [1, 1]} : vector<160x53xf32> to vector<32x24xf32>
      %58 = arith.addf %56, %57 : vector<32x24xf32>
      %59 = vector.extract_strided_slice %25 {offsets = [128, 2], sizes = [32, 24], strides = [1, 1]} : vector<160x53xf32> to vector<32x24xf32>
      %60 = arith.addf %58, %59 : vector<32x24xf32>
      %61 = vector.broadcast %10 : vector<32x1xf32> to vector<32x24xf32>
      %62 = arith.addf %60, %61 : vector<32x24xf32>
      %cst_35 = arith.constant 0.000000e+00 : f32
      %63 = vector.broadcast %cst_35 : f32 to vector<32x24xf32>
      %64 = arith.maximumf %62, %63 : vector<32x24xf32>
      %65 = vector.extract_strided_slice %25 {offsets = [0, 27], sizes = [32, 24], strides = [1, 1]} : vector<160x53xf32> to vector<32x24xf32>
      %66 = vector.extract_strided_slice %25 {offsets = [32, 1], sizes = [32, 24], strides = [1, 1]} : vector<160x53xf32> to vector<32x24xf32>
      %67 = arith.addf %65, %66 : vector<32x24xf32>
      %68 = vector.extract_strided_slice %25 {offsets = [64, 28], sizes = [32, 24], strides = [1, 1]} : vector<160x53xf32> to vector<32x24xf32>
      %69 = arith.addf %67, %68 : vector<32x24xf32>
      %70 = vector.extract_strided_slice %25 {offsets = [96, 2], sizes = [32, 24], strides = [1, 1]} : vector<160x53xf32> to vector<32x24xf32>
      %71 = arith.addf %69, %70 : vector<32x24xf32>
      %72 = vector.extract_strided_slice %25 {offsets = [128, 29], sizes = [32, 24], strides = [1, 1]} : vector<160x53xf32> to vector<32x24xf32>
      %73 = arith.addf %71, %72 : vector<32x24xf32>
      %74 = vector.broadcast %10 : vector<32x1xf32> to vector<32x24xf32>
      %75 = arith.addf %73, %74 : vector<32x24xf32>
      %cst_36 = arith.constant 0.000000e+00 : f32
      %76 = vector.broadcast %cst_36 : f32 to vector<32x24xf32>
      %77 = arith.maximumf %75, %76 : vector<32x24xf32>
      %78 = arith.maximumf %38, %51 : vector<32x24xf32>
      %79 = arith.maximumf %64, %77 : vector<32x24xf32>
      %80 = arith.maximumf %78, %79 : vector<32x24xf32>
      %81 = arith.truncf %80 : vector<32x24xf32> to vector<32x24xbf16>
      %cst_37 = arith.constant dense<0.000000e+00> : vector<32x24xf32>
      %82 = tpu.matmul %81, %8, %cst_37 {dimension_numbers = #tpu.dot_dimension_numbers<[1], [0], [0], [1], [0, 0, 1, 1], [], []>} : vector<32x24xbf16>, vector<24x24xbf16>, vector<32x24xf32> -> vector<32x24xf32>
      %c32_i32 = arith.constant 32 : i32
      %83 = arith.muli %arg17, %c32_i32 : i32
      %84 = tpu.assume_multiple %83, 32 : i32
      %85 = arith.index_cast %84 : i32 to index
      %c0_38 = arith.constant 0 : index
      %86 = vector.load %arg16[%85, %c0_38] : memref<768x24xf32, #tpu.memory_space<vmem>>, vector<32x24xf32>
      tpu.vector_store %arg16[%85, %c0_38], %82 {strides = array<i32>} : memref<768x24xf32, #tpu.memory_space<vmem>>, vector<32x24xf32>,
    }
    %c24_i32_23 = arith.constant 24 : i32
    %c0_24 = arith.constant 0 : index
    %c0_25 = arith.constant 0 : index
    %12 = vector.load %arg11[%c0_24, %c0_25] : memref<160x160xbf16, #tpu.memory_space<vmem>>, vector<160x160xbf16>
    %c0_26 = arith.constant 0 : index
    %c0_27 = arith.constant 0 : index
    %13 = vector.load %arg12[%c0_26, %c0_27] : memref<32x1xf32, #tpu.memory_space<vmem>>, vector<32x1xf32>
    %c0_i32_28 = arith.constant 0 : i32
    %c10_i32 = arith.constant 10 : i32
    %14 = arith.addi %c0_i32_28, %c10_i32 : i32
    %c1_i32_29 = arith.constant 1 : i32
    scf.for %arg17 = %c0_i32_28 to %14 step %c1_i32_29  : i32 {
      %c2_i32 = arith.constant 2 : i32
      %15 = arith.muli %c2_i32, %arg17 : i32
      %c32_i32 = arith.constant 32 : i32
      %16 = arith.muli %15, %c32_i32 : i32
      %17 = tpu.assume_multiple %16, 64 : i32
      %18 = arith.index_cast %17 : i32 to index
      %c0_31 = arith.constant 0 : index
      %19 = vector.load %arg16[%18, %c0_31] : memref<768x24xf32, #tpu.memory_space<vmem>>, vector<192x24xf32>
      %20 = vector.extract_strided_slice %19 {offsets = [0, 0], sizes = [160, 24], strides = [1, 1]} : vector<192x24xf32> to vector<160x24xf32>
      %21 = arith.truncf %20 : vector<160x24xf32> to vector<160x24xbf16>
      %22 = vector.extract_strided_slice %19 {offsets = [32, 0], sizes = [160, 24], strides = [1, 1]} : vector<192x24xf32> to vector<160x24xf32>
      %23 = arith.truncf %22 : vector<160x24xf32> to vector<160x24xbf16>
      %cst = arith.constant dense<0.000000e+00> : vector<160x24xf32>
      %24 = tpu.matmul %12, %21, %cst {dimension_numbers = #tpu.dot_dimension_numbers<[1], [0], [0], [1], [0, 0, 1, 1], [], []>} : vector<160x160xbf16>, vector<160x24xbf16>, vector<160x24xf32> -> vector<160x24xf32>
      %cst_32 = arith.constant dense<0.000000e+00> : vector<160x24xf32>
      %25 = tpu.matmul %12, %23, %cst_32 {dimension_numbers = #tpu.dot_dimension_numbers<[1], [0], [0], [1], [0, 0, 1, 1], [], []>} : vector<160x160xbf16>, vector<160x24xbf16>, vector<160x24xf32> -> vector<160x24xf32>
      %26 = vector.extract_strided_slice %24 {offsets = [0, 0], sizes = [32, 10], strides = [1, 1]} : vector<160x24xf32> to vector<32x10xf32>
      %27 = vector.extract_strided_slice %24 {offsets = [32, 12], sizes = [32, 10], strides = [1, 1]} : vector<160x24xf32> to vector<32x10xf32>
      %28 = arith.addf %26, %27 : vector<32x10xf32>
      %29 = vector.extract_strided_slice %24 {offsets = [64, 1], sizes = [32, 10], strides = [1, 1]} : vector<160x24xf32> to vector<32x10xf32>
      %30 = arith.addf %28, %29 : vector<32x10xf32>
      %31 = vector.extract_strided_slice %24 {offsets = [96, 13], sizes = [32, 10], strides = [1, 1]} : vector<160x24xf32> to vector<32x10xf32>
      %32 = arith.addf %30, %31 : vector<32x10xf32>
      %33 = vector.extract_strided_slice %24 {offsets = [128, 2], sizes = [32, 10], strides = [1, 1]} : vector<160x24xf32> to vector<32x10xf32>
      %34 = arith.addf %32, %33 : vector<32x10xf32>
      %35 = vector.broadcast %13 : vector<32x1xf32> to vector<32x10xf32>
      %36 = arith.addf %34, %35 : vector<32x10xf32>
      %cst_33 = arith.constant 0.000000e+00 : f32
      %37 = vector.broadcast %cst_33 : f32 to vector<32x10xf32>
      %38 = arith.maximumf %36, %37 : vector<32x10xf32>
      %39 = vector.extract_strided_slice %24 {offsets = [0, 12], sizes = [32, 10], strides = [1, 1]} : vector<160x24xf32> to vector<32x10xf32>
      %40 = vector.extract_strided_slice %24 {offsets = [32, 1], sizes = [32, 10], strides = [1, 1]} : vector<160x24xf32> to vector<32x10xf32>
      %41 = arith.addf %39, %40 : vector<32x10xf32>
      %42 = vector.extract_strided_slice %24 {offsets = [64, 13], sizes = [32, 10], strides = [1, 1]} : vector<160x24xf32> to vector<32x10xf32>
      %43 = arith.addf %41, %42 : vector<32x10xf32>
      %44 = vector.extract_strided_slice %24 {offsets = [96, 2], sizes = [32, 10], strides = [1, 1]} : vector<160x24xf32> to vector<32x10xf32>
      %45 = arith.addf %43, %44 : vector<32x10xf32>
      %46 = vector.extract_strided_slice %24 {offsets = [128, 14], sizes = [32, 10], strides = [1, 1]} : vector<160x24xf32> to vector<32x10xf32>
      %47 = arith.addf %45, %46 : vector<32x10xf32>
      %48 = vector.broadcast %13 : vector<32x1xf32> to vector<32x10xf32>
      %49 = arith.addf %47, %48 : vector<32x10xf32>
      %cst_34 = arith.constant 0.000000e+00 : f32
      %50 = vector.broadcast %cst_34 : f32 to vector<32x10xf32>
      %51 = arith.maximumf %49, %50 : vector<32x10xf32>
      %52 = vector.extract_strided_slice %25 {offsets = [0, 0], sizes = [32, 10], strides = [1, 1]} : vector<160x24xf32> to vector<32x10xf32>
      %53 = vector.extract_strided_slice %25 {offsets = [32, 12], sizes = [32, 10], strides = [1, 1]} : vector<160x24xf32> to vector<32x10xf32>
      %54 = arith.addf %52, %53 : vector<32x10xf32>
      %55 = vector.extract_strided_slice %25 {offsets = [64, 1], sizes = [32, 10], strides = [1, 1]} : vector<160x24xf32> to vector<32x10xf32>
      %56 = arith.addf %54, %55 : vector<32x10xf32>
      %57 = vector.extract_strided_slice %25 {offsets = [96, 13], sizes = [32, 10], strides = [1, 1]} : vector<160x24xf32> to vector<32x10xf32>
      %58 = arith.addf %56, %57 : vector<32x10xf32>
      %59 = vector.extract_strided_slice %25 {offsets = [128, 2], sizes = [32, 10], strides = [1, 1]} : vector<160x24xf32> to vector<32x10xf32>
      %60 = arith.addf %58, %59 : vector<32x10xf32>
      %61 = vector.broadcast %13 : vector<32x1xf32> to vector<32x10xf32>
      %62 = arith.addf %60, %61 : vector<32x10xf32>
      %cst_35 = arith.constant 0.000000e+00 : f32
      %63 = vector.broadcast %cst_35 : f32 to vector<32x10xf32>
      %64 = arith.maximumf %62, %63 : vector<32x10xf32>
      %65 = vector.extract_strided_slice %25 {offsets = [0, 12], sizes = [32, 10], strides = [1, 1]} : vector<160x24xf32> to vector<32x10xf32>
      %66 = vector.extract_strided_slice %25 {offsets = [32, 1], sizes = [32, 10], strides = [1, 1]} : vector<160x24xf32> to vector<32x10xf32>
      %67 = arith.addf %65, %66 : vector<32x10xf32>
      %68 = vector.extract_strided_slice %25 {offsets = [64, 13], sizes = [32, 10], strides = [1, 1]} : vector<160x24xf32> to vector<32x10xf32>
      %69 = arith.addf %67, %68 : vector<32x10xf32>
      %70 = vector.extract_strided_slice %25 {offsets = [96, 2], sizes = [32, 10], strides = [1, 1]} : vector<160x24xf32> to vector<32x10xf32>
      %71 = arith.addf %69, %70 : vector<32x10xf32>
      %72 = vector.extract_strided_slice %25 {offsets = [128, 14], sizes = [32, 10], strides = [1, 1]} : vector<160x24xf32> to vector<32x10xf32>
      %73 = arith.addf %71, %72 : vector<32x10xf32>
      %74 = vector.broadcast %13 : vector<32x1xf32> to vector<32x10xf32>
      %75 = arith.addf %73, %74 : vector<32x10xf32>
      %cst_36 = arith.constant 0.000000e+00 : f32
      %76 = vector.broadcast %cst_36 : f32 to vector<32x10xf32>
      %77 = arith.maximumf %75, %76 : vector<32x10xf32>
      %78 = arith.maximumf %38, %51 : vector<32x10xf32>
      %79 = arith.maximumf %64, %77 : vector<32x10xf32>
      %80 = arith.maximumf %78, %79 : vector<32x10xf32>
      %c0_37 = arith.constant 0 : index
      %81 = arith.index_cast %arg17 : i32 to index
      %c0_38 = arith.constant 0 : index
      %c0_39 = arith.constant 0 : index
      %82 = vector.load %arg13[%c0_37, %81, %c0_38, %c0_39] : memref<1x10x32x10xf32, #tpu.memory_space<vmem>>, vector<1x1x32x10xf32>
      %83 = vector.shape_cast %82 : vector<1x1x32x10xf32> to vector<32x10xf32>
      %84 = vector.shape_cast %80 : vector<32x10xf32> to vector<1x1x32x10xf32>
      tpu.vector_store %arg13[%c0_37, %81, %c0_38, %c0_39], %84 {strides = array<i32>} : memref<1x10x32x10xf32, #tpu.memory_space<vmem>>, vector<1x1x32x10xf32>,
    }
    %c10_i32_30 = arith.constant 10 : i32
    return
  }
  func.func @transform_0(%arg0: i32) -> (i32, i32, i32) {
    %c0_i32 = arith.constant 0 : i32
    %c0_i32_0 = arith.constant 0 : i32
    %c0_i32_1 = arith.constant 0 : i32
    return %arg0, %c0_i32, %c0_i32_0 : i32, i32, i32
  }
  func.func @transform_1(%arg0: i32) -> (i32, i32) {
    %c0_i32 = arith.constant 0 : i32
    %c0_i32_0 = arith.constant 0 : i32
    %c0_i32_1 = arith.constant 0 : i32
    return %c0_i32, %c0_i32_0 : i32, i32
  }
  func.func @transform_2(%arg0: i32) -> (i32, i32) {
    %c0_i32 = arith.constant 0 : i32
    %c0_i32_0 = arith.constant 0 : i32
    %c0_i32_1 = arith.constant 0 : i32
    return %c0_i32, %c0_i32_0 : i32, i32
  }
  func.func @transform_3(%arg0: i32) -> (i32, i32) {
    %c0_i32 = arith.constant 0 : i32
    %c0_i32_0 = arith.constant 0 : i32
    %c0_i32_1 = arith.constant 0 : i32
    return %c0_i32, %c0_i32_0 : i32, i32
  }
  func.func @transform_4(%arg0: i32) -> (i32, i32) {
    %c0_i32 = arith.constant 0 : i32
    %c0_i32_0 = arith.constant 0 : i32
    %c0_i32_1 = arith.constant 0 : i32
    return %c0_i32, %c0_i32_0 : i32, i32
  }
  func.func @transform_5(%arg0: i32) -> (i32, i32) {
    %c0_i32 = arith.constant 0 : i32
    %c0_i32_0 = arith.constant 0 : i32
    %c0_i32_1 = arith.constant 0 : i32
    return %c0_i32, %c0_i32_0 : i32, i32
  }
  func.func @transform_6(%arg0: i32) -> (i32, i32) {
    %c0_i32 = arith.constant 0 : i32
    %c0_i32_0 = arith.constant 0 : i32
    %c0_i32_1 = arith.constant 0 : i32
    return %c0_i32, %c0_i32_0 : i32, i32
  }
  func.func @transform_7(%arg0: i32) -> (i32, i32) {
    %c0_i32 = arith.constant 0 : i32
    %c0_i32_0 = arith.constant 0 : i32
    %c0_i32_1 = arith.constant 0 : i32
    return %c0_i32, %c0_i32_0 : i32, i32
  }
  func.func @transform_8(%arg0: i32) -> (i32, i32) {
    %c0_i32 = arith.constant 0 : i32
    %c0_i32_0 = arith.constant 0 : i32
    %c0_i32_1 = arith.constant 0 : i32
    return %c0_i32, %c0_i32_0 : i32, i32
  }
  func.func @transform_9(%arg0: i32) -> (i32, i32) {
    %c0_i32 = arith.constant 0 : i32
    %c0_i32_0 = arith.constant 0 : i32
    %c0_i32_1 = arith.constant 0 : i32
    return %c0_i32, %c0_i32_0 : i32, i32
  }
  func.func @transform_10(%arg0: i32) -> (i32, i32) {
    %c0_i32 = arith.constant 0 : i32
    %c0_i32_0 = arith.constant 0 : i32
    %c0_i32_1 = arith.constant 0 : i32
    return %c0_i32, %c0_i32_0 : i32, i32
  }
  func.func @transform_11(%arg0: i32) -> (i32, i32) {
    %c0_i32 = arith.constant 0 : i32
    %c0_i32_0 = arith.constant 0 : i32
    %c0_i32_1 = arith.constant 0 : i32
    return %c0_i32, %c0_i32_0 : i32, i32
  }
  func.func @transform_12(%arg0: i32) -> (i32, i32, i32, i32) {
    %c0_i32 = arith.constant 0 : i32
    %c0_i32_0 = arith.constant 0 : i32
    %c0_i32_1 = arith.constant 0 : i32
    %c0_i32_2 = arith.constant 0 : i32
    return %arg0, %c0_i32, %c0_i32_0, %c0_i32_1 : i32, i32, i32, i32
  }
}

</mosaic_0001>

<llo_original>
// kernel: multitask_cnn_forward.1
$region0: #{multitask_cnn_forward.1}
  #allocation0 [shape = 'u32[]', space=smem, size = 0x4, offset = 0x4, fixed_abs, tag = 'smem constant byte address 0x4 - core index']
  #allocation1 [shape = 'u32[144,128]{1,0:T(1,128)}', space=vmem, size = 0x12000, scoped, tag = 'internal scratch']
  #allocation2 [shape = 'f32[880,110]{1,0:T(8,128)}', space=vmem, size = 0x6e000, scoped, tag = 'scratch operand']
  #allocation3 [shape = 'f32[848,53]{1,0:T(8,128)}', space=vmem, size = 0x6a000, scoped, tag = 'scratch operand']
  #allocation4 [shape = 'f32[768,24]{1,0:T(8,128)}', space=vmem, size = 0x60000, scoped, tag = 'scratch operand']
  %s0 = inlined_call_operand.vmem [shape: f32[2,1792,224], index: 0, kind: input, shape index: {}]
  %s1 = inlined_call_operand.vmem [shape: bf16[40,40], index: 1, kind: input, shape index: {}]
  %s2 = inlined_call_operand.vmem [shape: f32[8,1], index: 2, kind: input, shape index: {}]
  %s3 = inlined_call_operand.vmem [shape: bf16[110,110], index: 3, kind: input, shape index: {}]
  %s4 = inlined_call_operand.vmem [shape: bf16[80,40], index: 4, kind: input, shape index: {}]
  %s5 = inlined_call_operand.vmem [shape: f32[16,1], index: 5, kind: input, shape index: {}]
  %s6 = inlined_call_operand.vmem [shape: bf16[53,53], index: 6, kind: input, shape index: {}]
  %s7 = inlined_call_operand.vmem [shape: bf16[160,80], index: 7, kind: input, shape index: {}]
  %s8 = inlined_call_operand.vmem [shape: f32[32,1], index: 8, kind: input, shape index: {}]
  %s9 = inlined_call_operand.vmem [shape: bf16[24,24], index: 9, kind: input, shape index: {}]
  %s10 = inlined_call_operand.vmem [shape: bf16[160,160], index: 10, kind: input, shape index: {}]
  %s11 = inlined_call_operand.vmem [shape: f32[32,1], index: 11, kind: input, shape index: {}]
  %s12 = inlined_call_operand.vmem [shape: f32[2,10,32,10], index: 12, kind: output, shape index: {}]
  %s13 = sld [smem:[#allocation0]]
  $region109: #{multitask_cnn_forward.1} parent=0
    _
  %s15 = ssub.s32 1, %s13
  %s16 = scalar_select 0, %s15, %s13
  loop: start=0, step=1, limit=4
  $region2: #{multitask_cnn_forward.1} parent=0 // loop_pre_header
    _
  $region3: #{multitask_cnn_forward.1} parent=0 // loop_header
    %s18 = sphi 0, %s22
    %p19 = scmp.ge.s32.totalorder %s18, 4
    %s28 = sphi 0, %s30
    %s31 = sphi 0, %s28
    %s32 = sphi 0, %s31
    %s48 = sphi 0, %s32
    %s52 = sphi 0, %s52
    %s54 = sphi 0, %s52
    %s55 = sphi 0, %s54
    %s69 = sphi 0, %s55
    %s73 = sphi 0, %s73
    %s75 = sphi 0, %s73
    %s76 = sphi 0, %s75
    %s90 = sphi 0, %s76
    %s94 = sphi 0, %s94
    %s96 = sphi 0, %s94
    %s97 = sphi 0, %s96
    %s111 = sphi 0, %s97
    %s115 = sphi 0, %s115
    %s117 = sphi 0, %s115
    %s118 = sphi 0, %s117
    %s132 = sphi 0, %s118
    %s136 = sphi 0, %s136
    %s138 = sphi 0, %s136
    %s139 = sphi 0, %s138
    %s153 = sphi 0, %s139
    %s157 = sphi 0, %s157
    %s159 = sphi 0, %s157
    %s160 = sphi 0, %s159
    %s174 = sphi 0, %s160
    %s178 = sphi 0, %s178
    %s180 = sphi 0, %s178
    %s181 = sphi 0, %s180
    %s195 = sphi 0, %s181
    %s199 = sphi 0, %s199
    %s201 = sphi 0, %s199
    %s202 = sphi 0, %s201
    %s216 = sphi 0, %s202
    %s220 = sphi 0, %s220
    %s222 = sphi 0, %s220
    %s223 = sphi 0, %s222
    %s237 = sphi 0, %s223
    %s241 = sphi 0, %s241
    %s243 = sphi 0, %s241
    %s244 = sphi 0, %s243
    %s258 = sphi 0, %s244
    %s262 = sphi 0, %s262
    %s264 = sphi 0, %s262
    %s265 = sphi 0, %s264
    %s279 = sphi 0, %s265
    %s285 = sphi 0, %s287
    %s288 = sphi 0, %s285
    %s289 = sphi 0, %s288
    %s305 = sphi 0, %s289
  $region4: #{multitask_cnn_forward.1} parent=0 // loop_header_branch
    %21 = sbr.rel (%p19) target = $region8
  $region5: #{multitask_cnn_forward.1} parent=0 // loop_body
    %s23 = ssub.s32 %s18, 1
    %s24 = ssub.s32 %s18, 2
    %s25 = sadd.s32 %s18, 1
    %s26 = ssub.s32 %s18, %s25
    %p27 = scmp.eq.s32.totalorder %s26, 0
    %s29 = sadd.s32 %s28, 1
    %s30 = scalar_select %p27, %s28, %s29
    %p33 = pneg %p27
    %p34 = scmp.eq.s32.totalorder %s18, 1
    %p35 = por %p33, %p34
    %p36 = scmp.ne.s32.totalorder %s28, %s31
    %p37 = scmp.eq.s32.totalorder %s18, 0
    %p38 = por %p36, %p37
    %p39 = scmp.ne.s32.totalorder %s28, %s31
    %p40 = scmp.eq.s32.totalorder %s23, 1
    %p41 = por %p39, %p40
    %p42 = scmp.ne.s32.totalorder %s31, %s32
    %p43 = scmp.eq.s32.totalorder %s23, 0
    %p44 = por %p42, %p43
    %p45 = scmp.ne.s32.totalorder %s31, %s32
    %p46 = scmp.eq.s32.totalorder %s24, 1
    %p47 = por %p45, %p46
    %p49 = scmp.ne.s32.totalorder %s32, %s48
    %p50 = scmp.eq.s32.totalorder %s24, 0
    %p51 = por %p49, %p50
    %s53 = sadd.s32 %s52, 1
    %p56 = scmp.eq.s32.totalorder %s18, 1
    %p57 = scmp.ne.s32.totalorder %s52, %s54
    %p58 = scmp.eq.s32.totalorder %s18, 0
    %p59 = por %p57, %p58
    %p60 = scmp.ne.s32.totalorder %s52, %s54
    %p61 = scmp.eq.s32.totalorder %s23, 1
    %p62 = por %p60, %p61
    %p63 = scmp.ne.s32.totalorder %s54, %s55
    %p64 = scmp.eq.s32.totalorder %s23, 0
    %p65 = por %p63, %p64
    %p66 = scmp.ne.s32.totalorder %s54, %s55
    %p67 = scmp.eq.s32.totalorder %s24, 1
    %p68 = por %p66, %p67
    %p70 = scmp.ne.s32.totalorder %s55, %s69
    %p71 = scmp.eq.s32.totalorder %s24, 0
    %p72 = por %p70, %p71
    %s74 = sadd.s32 %s73, 1
    %p77 = scmp.eq.s32.totalorder %s18, 1
    %p78 = scmp.ne.s32.totalorder %s73, %s75
    %p79 = scmp.eq.s32.totalorder %s18, 0
    %p80 = por %p78, %p79
    %p81 = scmp.ne.s32.totalorder %s73, %s75
    %p82 = scmp.eq.s32.totalorder %s23, 1
    %p83 = por %p81, %p82
    %p84 = scmp.ne.s32.totalorder %s75, %s76
    %p85 = scmp.eq.s32.totalorder %s23, 0
    %p86 = por %p84, %p85
    %p87 = scmp.ne.s32.totalorder %s75, %s76
    %p88 = scmp.eq.s32.totalorder %s24, 1
    %p89 = por %p87, %p88
    %p91 = scmp.ne.s32.totalorder %s76, %s90
    %p92 = scmp.eq.s32.totalorder %s24, 0
    %p93 = por %p91, %p92
    %s95 = sadd.s32 %s94, 1
    %p98 = scmp.eq.s32.totalorder %s18, 1
    %p99 = scmp.ne.s32.totalorder %s94, %s96
    %p100 = scmp.eq.s32.totalorder %s18, 0
    %p101 = por %p99, %p100
    %p102 = scmp.ne.s32.totalorder %s94, %s96
    %p103 = scmp.eq.s32.totalorder %s23, 1
    %p104 = por %p102, %p103
    %p105 = scmp.ne.s32.totalorder %s96, %s97
    %p106 = scmp.eq.s32.totalorder %s23, 0
    %p107 = por %p105, %p106
    %p108 = scmp.ne.s32.totalorder %s96, %s97
    %p109 = scmp.eq.s32.totalorder %s24, 1
    %p110 = por %p108, %p109
    %p112 = scmp.ne.s32.totalorder %s97, %s111
    %p113 = scmp.eq.s32.totalorder %s24, 0
    %p114 = por %p112, %p113
    %s116 = sadd.s32 %s115, 1
    %p119 = scmp.eq.s32.totalorder %s18, 1
    %p120 = scmp.ne.s32.totalorder %s115, %s117
    %p121 = scmp.eq.s32.totalorder %s18, 0
    %p122 = por %p120, %p121
    %p123 = scmp.ne.s32.totalorder %s115, %s117
    %p124 = scmp.eq.s32.totalorder %s23, 1
    %p125 = por %p123, %p124
    %p126 = scmp.ne.s32.totalorder %s117, %s118
    %p127 = scmp.eq.s32.totalorder %s23, 0
    %p128 = por %p126, %p127
    %p129 = scmp.ne.s32.totalorder %s117, %s118
    %p130 = scmp.eq.s32.totalorder %s24, 1
    %p131 = por %p129, %p130
    %p133 = scmp.ne.s32.totalorder %s118, %s132
    %p134 = scmp.eq.s32.totalorder %s24, 0
    %p135 = por %p133, %p134
    %s137 = sadd.s32 %s136, 1
    %p140 = scmp.eq.s32.totalorder %s18, 1
    %p141 = scmp.ne.s32.totalorder %s136, %s138
    %p142 = scmp.eq.s32.totalorder %s18, 0
    %p143 = por %p141, %p142
    %p144 = scmp.ne.s32.totalorder %s136, %s138
    %p145 = scmp.eq.s32.totalorder %s23, 1
    %p146 = por %p144, %p145
    %p147 = scmp.ne.s32.totalorder %s138, %s139
    %p148 = scmp.eq.s32.totalorder %s23, 0
    %p149 = por %p147, %p148
    %p150 = scmp.ne.s32.totalorder %s138, %s139
    %p151 = scmp.eq.s32.totalorder %s24, 1
    %p152 = por %p150, %p151
    %p154 = scmp.ne.s32.totalorder %s139, %s153
    %p155 = scmp.eq.s32.totalorder %s24, 0
    %p156 = por %p154, %p155
    %s158 = sadd.s32 %s157, 1
    %p161 = scmp.eq.s32.totalorder %s18, 1
    %p162 = scmp.ne.s32.totalorder %s157, %s159
    %p163 = scmp.eq.s32.totalorder %s18, 0
    %p164 = por %p162, %p163
    %p165 = scmp.ne.s32.totalorder %s157, %s159
    %p166 = scmp.eq.s32.totalorder %s23, 1
    %p167 = por %p165, %p166
    %p168 = scmp.ne.s32.totalorder %s159, %s160
    %p169 = scmp.eq.s32.totalorder %s23, 0
    %p170 = por %p168, %p169
    %p171 = scmp.ne.s32.totalorder %s159, %s160
    %p172 = scmp.eq.s32.totalorder %s24, 1
    %p173 = por %p171, %p172
    %p175 = scmp.ne.s32.totalorder %s160, %s174
    %p176 = scmp.eq.s32.totalorder %s24, 0
    %p177 = por %p175, %p176
    %s179 = sadd.s32 %s178, 1
    %p182 = scmp.eq.s32.totalorder %s18, 1
    %p183 = scmp.ne.s32.totalorder %s178, %s180
    %p184 = scmp.eq.s32.totalorder %s18, 0
    %p185 = por %p183, %p184
    %p186 = scmp.ne.s32.totalorder %s178, %s180
    %p187 = scmp.eq.s32.totalorder %s23, 1
    %p188 = por %p186, %p187
    %p189 = scmp.ne.s32.totalorder %s180, %s181
    %p190 = scmp.eq.s32.totalorder %s23, 0
    %p191 = por %p189, %p190
    %p192 = scmp.ne.s32.totalorder %s180, %s181
    %p193 = scmp.eq.s32.totalorder %s24, 1
    %p194 = por %p192, %p193
    %p196 = scmp.ne.s32.totalorder %s181, %s195
    %p197 = scmp.eq.s32.totalorder %s24, 0
    %p198 = por %p196, %p197
    %s200 = sadd.s32 %s199, 1
    %p203 = scmp.eq.s32.totalorder %s18, 1
    %p204 = scmp.ne.s32.totalorder %s199, %s201
    %p205 = scmp.eq.s32.totalorder %s18, 0
    %p206 = por %p204, %p205
    %p207 = scmp.ne.s32.totalorder %s199, %s201
    %p208 = scmp.eq.s32.totalorder %s23, 1
    %p209 = por %p207, %p208
    %p210 = scmp.ne.s32.totalorder %s201, %s202
    %p211 = scmp.eq.s32.totalorder %s23, 0
    %p212 = por %p210, %p211
    %p213 = scmp.ne.s32.totalorder %s201, %s202
    %p214 = scmp.eq.s32.totalorder %s24, 1
    %p215 = por %p213, %p214
    %p217 = scmp.ne.s32.totalorder %s202, %s216
    %p218 = scmp.eq.s32.totalorder %s24, 0
    %p219 = por %p217, %p218
    %s221 = sadd.s32 %s220, 1
    %p224 = scmp.eq.s32.totalorder %s18, 1
    %p225 = scmp.ne.s32.totalorder %s220, %s222
    %p226 = scmp.eq.s32.totalorder %s18, 0
    %p227 = por %p225, %p226
    %p228 = scmp.ne.s32.totalorder %s220, %s222
    %p229 = scmp.eq.s32.totalorder %s23, 1
    %p230 = por %p228, %p229
    %p231 = scmp.ne.s32.totalorder %s222, %s223
    %p232 = scmp.eq.s32.totalorder %s23, 0
    %p233 = por %p231, %p232
    %p234 = scmp.ne.s32.totalorder %s222, %s223
    %p235 = scmp.eq.s32.totalorder %s24, 1
    %p236 = por %p234, %p235
    %p238 = scmp.ne.s32.totalorder %s223, %s237
    %p239 = scmp.eq.s32.totalorder %s24, 0
    %p240 = por %p238, %p239
    %s242 = sadd.s32 %s241, 1
    %p245 = scmp.eq.s32.totalorder %s18, 1
    %p246 = scmp.ne.s32.totalorder %s241, %s243
    %p247 = scmp.eq.s32.totalorder %s18, 0
    %p248 = por %p246, %p247
    %p249 = scmp.ne.s32.totalorder %s241, %s243
    %p250 = scmp.eq.s32.totalorder %s23, 1
    %p251 = por %p249, %p250
    %p252 = scmp.ne.s32.totalorder %s243, %s244
    %p253 = scmp.eq.s32.totalorder %s23, 0
    %p254 = por %p252, %p253
    %p255 = scmp.ne.s32.totalorder %s243, %s244
    %p256 = scmp.eq.s32.totalorder %s24, 1
    %p257 = por %p255, %p256
    %p259 = scmp.ne.s32.totalorder %s244, %s258
    %p260 = scmp.eq.s32.totalorder %s24, 0
    %p261 = por %p259, %p260
    %s263 = sadd.s32 %s262, 1
    %p266 = scmp.eq.s32.totalorder %s18, 1
    %p267 = scmp.ne.s32.totalorder %s262, %s264
    %p268 = scmp.eq.s32.totalorder %s18, 0
    %p269 = por %p267, %p268
    %p270 = scmp.ne.s32.totalorder %s262, %s264
    %p271 = scmp.eq.s32.totalorder %s23, 1
    %p272 = por %p270, %p271
    %p273 = scmp.ne.s32.totalorder %s264, %s265
    %p274 = scmp.eq.s32.totalorder %s23, 0
    %p275 = por %p273, %p274
    %p276 = scmp.ne.s32.totalorder %s264, %s265
    %p277 = scmp.eq.s32.totalorder %s24, 1
    %p278 = por %p276, %p277
    %p280 = scmp.ne.s32.totalorder %s265, %s279
    %p281 = scmp.eq.s32.totalorder %s24, 0
    %p282 = por %p280, %p281
    %s283 = ssub.s32 %s18, %s25
    %p284 = scmp.eq.s32.totalorder %s283, 0
    %s286 = sadd.s32 %s285, 1
    %s287 = scalar_select %p284, %s285, %s286
    %p290 = pneg %p284
    %p291 = scmp.eq.s32.totalorder %s18, 1
    %p292 = por %p290, %p291
    %p293 = scmp.ne.s32.totalorder %s285, %s288
    %p294 = scmp.eq.s32.totalorder %s18, 0
    %p295 = por %p293, %p294
    %p296 = scmp.ne.s32.totalorder %s285, %s288
    %p297 = scmp.eq.s32.totalorder %s23, 1
    %p298 = por %p296, %p297
    %p299 = scmp.ne.s32.totalorder %s288, %s289
    %p300 = scmp.eq.s32.totalorder %s23, 0
    %p301 = por %p299, %p300
    %p302 = scmp.ne.s32.totalorder %s288, %s289
    %p303 = scmp.eq.s32.totalorder %s24, 1
    %p304 = por %p302, %p303
    %p306 = scmp.ne.s32.totalorder %s289, %s305
    %p307 = scmp.eq.s32.totalorder %s24, 0
    %p308 = por %p306, %p307
    %p309 = scmp.le.s32.totalorder 1, %s18
    %p310 = scmp.lt.s32.totalorder %s18, 3
    %p311 = pnand %p309, %p310
    %p312 = pneg %p311
    // Predicated region
    $region9: #{multitask_cnn_forward.1} parent=5 // pred_check
      _
    $region10: #{multitask_cnn_forward.1} parent=5 // pred_check_branch
      %314 = sbr.rel (%p311) target = $region12
    $region11: #{multitask_cnn_forward.1} parent=5 // pred_region
      %s315 = ssub.s32 %s18, 1
      // Predicated region
      $region13: #{multitask_cnn_forward.1} parent=11 // pred_check
        %p316 = pneg %p65
      $region14: #{multitask_cnn_forward.1} parent=11 // pred_check_branch
        %318 = sbr.rel (%p316) target = $region16
      $region15: #{multitask_cnn_forward.1} parent=11 // pred_region
        _
      $region16: #{multitask_cnn_forward.1} parent=11 // pred_fallthru
        _
      // Predicated region
      $region17: #{multitask_cnn_forward.1} parent=11 // pred_check
        %p319 = pneg %p86
      $region18: #{multitask_cnn_forward.1} parent=11 // pred_check_branch
        %321 = sbr.rel (%p319) target = $region20
      $region19: #{multitask_cnn_forward.1} parent=11 // pred_region
        _
      $region20: #{multitask_cnn_forward.1} parent=11 // pred_fallthru
        _
      // Predicated region
      $region21: #{multitask_cnn_forward.1} parent=11 // pred_check
        %p322 = pneg %p107
      $region22: #{multitask_cnn_forward.1} parent=11 // pred_check_branch
        %324 = sbr.rel (%p322) target = $region24
      $region23: #{multitask_cnn_forward.1} parent=11 // pred_region
        _
      $region24: #{multitask_cnn_forward.1} parent=11 // pred_fallthru
        _
      // Predicated region
      $region25: #{multitask_cnn_forward.1} parent=11 // pred_check
        %p325 = pneg %p128
      $region26: #{multitask_cnn_forward.1} parent=11 // pred_check_branch
        %327 = sbr.rel (%p325) target = $region28
      $region27: #{multitask_cnn_forward.1} parent=11 // pred_region
        _
      $region28: #{multitask_cnn_forward.1} parent=11 // pred_fallthru
        _
      // Predicated region
      $region29: #{multitask_cnn_forward.1} parent=11 // pred_check
        %p328 = pneg %p149
      $region30: #{multitask_cnn_forward.1} parent=11 // pred_check_branch
        %330 = sbr.rel (%p328) target = $region32
      $region31: #{multitask_cnn_forward.1} parent=11 // pred_region
        _
      $region32: #{multitask_cnn_forward.1} parent=11 // pred_fallthru
        _
      // Predicated region
      $region33: #{multitask_cnn_forward.1} parent=11 // pred_check
        %p331 = pneg %p170
      $region34: #{multitask_cnn_forward.1} parent=11 // pred_check_branch
        %333 = sbr.rel (%p331) target = $region36
      $region35: #{multitask_cnn_forward.1} parent=11 // pred_region
        _
      $region36: #{multitask_cnn_forward.1} parent=11 // pred_fallthru
        _
      // Predicated region
      $region37: #{multitask_cnn_forward.1} parent=11 // pred_check
        %p334 = pneg %p191
      $region38: #{multitask_cnn_forward.1} parent=11 // pred_check_branch
        %336 = sbr.rel (%p334) target = $region40
      $region39: #{multitask_cnn_forward.1} parent=11 // pred_region
        _
      $region40: #{multitask_cnn_forward.1} parent=11 // pred_fallthru
        _
      // Predicated region
      $region41: #{multitask_cnn_forward.1} parent=11 // pred_check
        %p337 = pneg %p212
      $region42: #{multitask_cnn_forward.1} parent=11 // pred_check_branch
        %339 = sbr.rel (%p337) target = $region44
      $region43: #{multitask_cnn_forward.1} parent=11 // pred_region
        _
      $region44: #{multitask_cnn_forward.1} parent=11 // pred_fallthru
        _
      // Predicated region
      $region45: #{multitask_cnn_forward.1} parent=11 // pred_check
        %p340 = pneg %p233
      $region46: #{multitask_cnn_forward.1} parent=11 // pred_check_branch
        %342 = sbr.rel (%p340) target = $region48
      $region47: #{multitask_cnn_forward.1} parent=11 // pred_region
        _
      $region48: #{multitask_cnn_forward.1} parent=11 // pred_fallthru
        _
      // Predicated region
      $region49: #{multitask_cnn_forward.1} parent=11 // pred_check
        %p343 = pneg %p254
      $region50: #{multitask_cnn_forward.1} parent=11 // pred_check_branch
        %345 = sbr.rel (%p343) target = $region52
      $region51: #{multitask_cnn_forward.1} parent=11 // pred_region
        _
      $region52: #{multitask_cnn_forward.1} parent=11 // pred_fallthru
        _
      // Predicated region
      $region53: #{multitask_cnn_forward.1} parent=11 // pred_check
        %p346 = pneg %p275
      $region54: #{multitask_cnn_forward.1} parent=11 // pred_check_branch
        %348 = sbr.rel (%p346) target = $region56
      $region55: #{multitask_cnn_forward.1} parent=11 // pred_region
        _
      $region56: #{multitask_cnn_forward.1} parent=11 // pred_fallthru
        _
    $region12: #{multitask_cnn_forward.1} parent=5 // pred_fallthru
      _
    %p349 = scmp.lt.s32.totalorder %s18, 2
    // Predicated region
    $region57: #{multitask_cnn_forward.1} parent=5 // pred_check
      %p350 = pneg %p349
    $region58: #{multitask_cnn_forward.1} parent=5 // pred_check_branch
      %352 = sbr.rel (%p350) target = $region60
    $region59: #{multitask_cnn_forward.1} parent=5 // pred_region
      // Predicated region
      $region61: #{multitask_cnn_forward.1} parent=59 // pred_check
        %p353 = pneg %p38
      $region62: #{multitask_cnn_forward.1} parent=59 // pred_check_branch
        %355 = sbr.rel (%p353) target = $region64
      $region63: #{multitask_cnn_forward.1} parent=59 // pred_region
        %p356 = scmp.lt.s32.totalorder %s18, 1
        %s357 = scalar_select %p356, %s18, 1
        %s358 = smul.addr %s357, 448
        %s359 = smul.addr %s358, 8
        %s360 = scalar_lea.vmem %s0, %s359
      $region64: #{multitask_cnn_forward.1} parent=59 // pred_fallthru
        _
    $region60: #{multitask_cnn_forward.1} parent=5 // pred_fallthru
      _
    %p361 = scmp.le.s32.totalorder 1, %s18
    %p362 = scmp.lt.s32.totalorder %s18, 3
    %p363 = pnand %p361, %p362
    %p364 = pneg %p363
    // Predicated region
    $region65: #{multitask_cnn_forward.1} parent=5 // pred_check
      _
    $region66: #{multitask_cnn_forward.1} parent=5 // pred_check_branch
      %366 = sbr.rel (%p363) target = $region68
    $region67: #{multitask_cnn_forward.1} parent=5 // pred_region
      %s367 = ssub.s32 %s18, 1
      %p368 = scmp.lt.s32.totalorder %s23, 1
      %s369 = scalar_select %p368, %s23, 1
      %s370 = smul.addr %s369, 448
      %s371 = smul.addr %s370, 8
      %s372 = scalar_lea.vmem %s0, %s371
      %p373 = pneg %p44
      %p374 = pneg %p41
      %p375 = pneg %p65
      %p376 = pneg %p62
      %p377 = pneg %p86
      %p378 = pneg %p83
      %p379 = pneg %p107
      %p380 = pneg %p104
      %p381 = pneg %p128
      %p382 = pneg %p125
      %p383 = pneg %p149
      %p384 = pneg %p146
      %p385 = pneg %p170
      %p386 = pneg %p167
      %p387 = pneg %p191
      %p388 = pneg %p188
      %p389 = pneg %p212
      %p390 = pneg %p209
      %p391 = pneg %p233
      %p392 = pneg %p230
      %p393 = pneg %p254
      %p394 = pneg %p251
      %p395 = pneg %p275
      %p396 = pneg %p272
      %p397 = pneg %p301
      %p398 = pneg %p298
      %p399 = scmp.lt.s32.totalorder %s23, 1
      %s400 = scalar_select %p399, %s23, 1
      %s401 = smul.addr %s400, 40
      %s402 = smul.addr %s401, 8
      %s403 = scalar_lea.vmem %s12, %s402
      %p404 = scmp.lt.s32.totalorder %s23, 1
      %s405 = scalar_select %p404, %s23, 1
      %s406 = smul.addr %s405, 448
      %s407 = smul.addr %s406, 8
      %s408 = scalar_lea.vmem %s0, %s407
      %p409 = scmp.lt.s32.totalorder %s23, 1
      %s410 = scalar_select %p409, %s23, 1
      %s411 = smul.addr %s410, 40
      %s412 = smul.addr %s411, 8
      %s413 = scalar_lea.vmem %s12, %s412
      %v415 = vld [vmem:[%s3] sm:$0xf]
      %v416 = vld [vmem:[%s3 + $0x4] sm:$0xf]
      %v417 = vld [vmem:[%s3 + $0x8] sm:$0xf]
      %v418 = vld [vmem:[%s3 + $0xc] sm:$0xf]
      %v419 = vld [vmem:[%s3 + $0x10] sm:$0xf]
      %v420 = vld [vmem:[%s3 + $0x14] sm:$0xf]
      %v421 = vld [vmem:[%s3 + $0x18] sm:$0xf]
      %v422 = vld [vmem:[%s3 + $0x1c] sm:$0xf]
      %v423 = vld [vmem:[%s3 + $0x20] sm:$0xf]
      %v424 = vld [vmem:[%s3 + $0x24] sm:$0xf]
      %v425 = vld [vmem:[%s3 + $0x28] sm:$0xf]
      %v426 = vld [vmem:[%s3 + $0x2c] sm:$0xf]
      %v427 = vld [vmem:[%s3 + $0x30] sm:$0xf]
      %v428 = vld [vmem:[%s3 + $0x34] sm:$0x7]
      %v429 = vld [vmem:[%s1] sm:$0xf]
      %v430 = vld [vmem:[%s1 + $0x4] sm:$0xf]
      %v431 = vld [vmem:[%s1 + $0x8] sm:$0xf]
      %v432 = vld [vmem:[%s1 + $0xc] sm:$0xf]
      %v433 = vld [vmem:[%s1 + $0x10] sm:$0xf]
      %v434 = vld [vmem:[%s2] sm:$0xff]
      loop: start=0, step=1, limit=110
      $region69: #{multitask_cnn_forward.1} parent=67 // loop_pre_header
        _
      $region70: #{multitask_cnn_forward.1} parent=67 // loop_header
        %s436 = sphi 0, %s440
        %p437 = scmp.ge.s32.totalorder %s436, 110
      $region71: #{multitask_cnn_forward.1} parent=67 // loop_header_branch
        %439 = sbr.rel (%p437) target = $region75
      $region72: #{multitask_cnn_forward.1} parent=67 // loop_body
        %s441 = smul.u32 %s436, 16
        %s442 = sshra.s32 %s441, 3
        %s443 = sand.u32 %s441, 7
        %s444 = smul.u32 %s442, 2
        %s445 = smul.addr %s444, 8
        %s446 = scalar_lea.vmem %s408, %s445
        %v447 = vld [vmem:[%s446] sm:$0xff]
        %v448 = vld [vmem:[%s446 + $0x8] sm:$0xff]
        %v449 = vld [vmem:[%s446 + $0x10] sm:$0xff]
        %v450 = vld [vmem:[%s446 + $0x18] sm:$0xff]
        %v451 = vld [vmem:[%s446 + $0x20] sm:$0xff]
        %v452 = vld [vmem:[%s446 + $0x28] sm:$0xff]
        %v453 = vld [vmem:[%s446 + $0x30] sm:$0xff]
        %v454 = vld [vmem:[%s446 + $0x38] sm:$0xff]
        %v455 = vld [vmem:[%s446 + $0x40] sm:$0xff]
        %v456 = vld [vmem:[%s446 + $0x48] sm:$0xff]
        %v457 = vld [vmem:[%s446 + $0x50] sm:$0xff]
        %v458 = vld [vmem:[%s446 + $0x58] sm:$0xff]
        %v459 = vpack.c.bf16 %v449, %v447
        %v460 = vpack.c.bf16 %v450, %v448
        %v461 = vpack.c.bf16 %v453, %v451
        %v462 = vpack.c.bf16 %v454, %v452
        %v463 = vpack.c.bf16 %v455, %v455
        %v464 = vpack.c.bf16 %v456, %v456
        %v465 = vpack.c.bf16 %v451, %v449
        %v466 = vpack.c.bf16 %v452, %v450
        %v467 = vpack.c.bf16 %v455, %v453
        %v468 = vpack.c.bf16 %v456, %v454
        %v469 = vpack.c.bf16 %v457, %v457
        %v470 = vpack.c.bf16 %v458, %v458
        %v476 = vunpack.c.l.b16 %v429
        %v477 = vunpack.c.l.b16 %v430
        %v478 = vunpack.c.l.b16 %v431
        %v479 = vunpack.c.l.b16 %v432
        %v480 = vunpack.c.l.b16 %v433
        %v481 = vpack.c.b16 %v477, %v476
        %v482 = vpack.c.b16 %v479, %v478
        %v483 = vpack.c.b16 %v480, %v480
        %vm484 = vcmask 326656
        %v486 = vsel %vm484, %v481, 0
        %v489 = vsel %vm484, %v482, 0
        %v492 = vsel %vm484, %v483, 0
        %vm494 = vcmask 1043456
        %v496 = vsel %vm494, %v463, 0
        %v499 = vsel %vm494, %v464, 0
        %501 = vmatprep.subr.bf16.mxu0 0
        %502 = vmatpush1.bf16.msra.mxu0 0
        %503 = vmatprep.subr.bf16.mxu0 0
        %504 = vmatpush1.bf16.msra.mxu0 0
        %505 = vmatprep.subr.bf16.mxu0 0
        %506 = vmatpush1.bf16.msra.mxu0 0
        %507 = vmatprep.subr.bf16.mxu0 0
        %508 = vmatpush1.bf16.msra.mxu0 0
        %509 = vmatprep.subr.bf16.mxu0 0
        %510 = vmatpush1.bf16.msra.mxu0 0
        %511 = vmatprep.subr.bf16.mxu0 %v499
        %512 = vmatpush1.bf16.msra.mxu0 %v496
        %513 = vmatprep.subr.bf16.mxu0 %v462
        %514 = vmatpush1.bf16.msra.mxu0 %v461
        %515 = vmatprep.subr.bf16.mxu0 %v460
        %516 = vmatpush1.bf16.msra.mxu0 %v459
        %517 = vmatprep.subr.bf16.mxu0 0
        %518 = vmatpush2.bf16.msra.mxu0 0
        %519 = vmatprep.subr.bf16.mxu0 0
        %520 = vmatpush2.bf16.msra.mxu0 0
        %521 = vmatprep.subr.bf16.mxu0 0
        %522 = vmatpush2.bf16.msra.mxu0 0
        %523 = vmatprep.subr.bf16.mxu0 0
        %524 = vmatpush2.bf16.msra.mxu0 0
        %525 = vmatprep.subr.bf16.mxu0 0
        %526 = vmatpush2.bf16.msra.mxu0 0
        %527 = vmatprep.subr.bf16.mxu0 0
        %528 = vmatpush2.bf16.msra.mxu0 0
        %529 = vmatprep.subr.bf16.mxu0 0
        %530 = vmatpush2.bf16.msra.mxu0 0
        %531 = vmatprep.subr.bf16.mxu0 0
        %532 = vmatpush2.bf16.msra.mxu0 0
        %533 = vmatprep.mubr.bf16.mxu0 0
        %534 = vmatmul.mubr.bf16.gmra.mxu0 %v486
        %v535 = vpop.f32.mrf.mxu0
        %v536 = vadd.f32 0.0, %v535
        %v537 = vpop.f32.mrf.mxu0
        %v538 = vadd.f32 0.0, %v537
        %v539 = vpop.f32.mrf.mxu0
        %v540 = vadd.f32 0.0, %v539
        %v541 = vpop.f32.mrf.mxu0
        %v542 = vadd.f32 0.0, %v541
        %543 = vmatprep.mubr.bf16.mxu0 0
        %544 = vmatmul.mubr.bf16.gmra.mxu0 %v489
        %v545 = vpop.f32.mrf.mxu0
        %v546 = vadd.f32 0.0, %v545
        %v547 = vpop.f32.mrf.mxu0
        %v548 = vadd.f32 0.0, %v547
        %v549 = vpop.f32.mrf.mxu0
        %v550 = vadd.f32 0.0, %v549
        %v551 = vpop.f32.mrf.mxu0
        %v552 = vadd.f32 0.0, %v551
        %553 = vmatprep.mubr.bf16.mxu0 0
        %554 = vmatmul.mubr.bf16.gmra.mxu0 %v492
        %v555 = vpop.f32.mrf.mxu0
        %v556 = vadd.f32 0.0, %v555
        %v557 = vpop.f32.mrf.mxu0
        %v558 = vadd.f32 0.0, %v557
        %v559 = vpop.f32.mrf.mxu0
        %v560 = vpop.f32.mrf.mxu0
        %561 = vdwg.mxu0
        %v563 = vsel %vm494, %v469, 0
        %v566 = vsel %vm494, %v470, 0
        %568 = vmatprep.subr.bf16.mxu0 0
        %569 = vmatpush1.bf16.msra.mxu0 0
        %570 = vmatprep.subr.bf16.mxu0 0
        %571 = vmatpush1.bf16.msra.mxu0 0
        %572 = vmatprep.subr.bf16.mxu0 0
        %573 = vmatpush1.bf16.msra.mxu0 0
        %574 = vmatprep.subr.bf16.mxu0 0
        %575 = vmatpush1.bf16.msra.mxu0 0
        %576 = vmatprep.subr.bf16.mxu0 0
        %577 = vmatpush1.bf16.msra.mxu0 0
        %578 = vmatprep.subr.bf16.mxu0 %v566
        %579 = vmatpush1.bf16.msra.mxu0 %v563
        %580 = vmatprep.subr.bf16.mxu0 %v468
        %581 = vmatpush1.bf16.msra.mxu0 %v467
        %582 = vmatprep.subr.bf16.mxu0 %v466
        %583 = vmatpush1.bf16.msra.mxu0 %v465
        %584 = vmatprep.subr.bf16.mxu0 0
        %585 = vmatpush2.bf16.msra.mxu0 0
        %586 = vmatprep.subr.bf16.mxu0 0
        %587 = vmatpush2.bf16.msra.mxu0 0
        %588 = vmatprep.subr.bf16.mxu0 0
        %589 = vmatpush2.bf16.msra.mxu0 0
        %590 = vmatprep.subr.bf16.mxu0 0
        %591 = vmatpush2.bf16.msra.mxu0 0
        %592 = vmatprep.subr.bf16.mxu0 0
        %593 = vmatpush2.bf16.msra.mxu0 0
        %594 = vmatprep.subr.bf16.mxu0 0
        %595 = vmatpush2.bf16.msra.mxu0 0
        %596 = vmatprep.subr.bf16.mxu0 0
        %597 = vmatpush2.bf16.msra.mxu0 0
        %598 = vmatprep.subr.bf16.mxu0 0
        %599 = vmatpush2.bf16.msra.mxu0 0
        %600 = vmatprep.mubr.bf16.mxu0 0
        %601 = vmatmul.mubr.bf16.gmra.mxu0 %v486
        %v602 = vpop.f32.mrf.mxu0
        %v603 = vadd.f32 0.0, %v602
        %v604 = vpop.f32.mrf.mxu0
        %v605 = vadd.f32 0.0, %v604
        %v606 = vpop.f32.mrf.mxu0
        %v607 = vadd.f32 0.0, %v606
        %v608 = vpop.f32.mrf.mxu0
        %v609 = vadd.f32 0.0, %v608
        %610 = vmatprep.mubr.bf16.mxu0 0
        %611 = vmatmul.mubr.bf16.gmra.mxu0 %v489
        %v612 = vpop.f32.mrf.mxu0
        %v613 = vadd.f32 0.0, %v612
        %v614 = vpop.f32.mrf.mxu0
        %v615 = vadd.f32 0.0, %v614
        %v616 = vpop.f32.mrf.mxu0
        %v617 = vadd.f32 0.0, %v616
        %v618 = vpop.f32.mrf.mxu0
        %v619 = vadd.f32 0.0, %v618
        %620 = vmatprep.mubr.bf16.mxu0 0
        %621 = vmatmul.mubr.bf16.gmra.mxu0 %v492
        %v622 = vpop.f32.mrf.mxu0
        %v623 = vadd.f32 0.0, %v622
        %v624 = vpop.f32.mrf.mxu0
        %v625 = vadd.f32 0.0, %v624
        %v626 = vpop.f32.mrf.mxu0
        %v627 = vpop.f32.mrf.mxu0
        %628 = vdwg.mxu0
        %631 = vrot.lane.b32.xlu0 %v540, 16
        %v632 = vpop.permute.xlu0 %631
        %633 = vrot.lane.b32.xlu0 %v542, 16
        %v634 = vpop.permute.xlu0 %633
        %vm635 = vcmask 130048
        %v636 = vsel %vm635, %v632, %v634
        %v638 = vadd.f32 %v536, %v636
        %640 = vrot.lane.b32.xlu0 %v546, 127
        %v641 = vpop.permute.xlu0 %640
        %v643 = vadd.f32 %v638, %v641
        %646 = vrot.lane.b32.xlu0 %v550, 15
        %v647 = vpop.permute.xlu0 %646
        %648 = vrot.lane.b32.xlu0 %v552, 15
        %v649 = vpop.permute.xlu0 %648
        %vm650 = vcmask 121856
        %v651 = vsel %vm650, %v647, %v649
        %v653 = vadd.f32 %v643, %v651
        %655 = vrot.lane.b32.xlu0 %v556, 126
        %v656 = vpop.permute.xlu0 %655
        %v658 = vadd.f32 %v653, %v656
        %660 = vset.pattern.permute.xlu0 0
        %661 = vperm.xlu0 %660, %v434
        %v662 = vpop.permute.xlu0 %661
        %v664 = vadd.f32 %v658, %v662
        %v665 = vmax.f32 %v664, 0.0
        %666 = vrot.lane.b32.xlu0 %v540, 111
        %v667 = vpop.permute.xlu0 %666
        %v669 = vadd.f32 %v536, %v667
        %v670 = vadd.f32 %v538, %v667
        %672 = vrot.lane.b32.xlu0 %v548, 127
        %v673 = vpop.permute.xlu0 %672
        %vm674 = vcmask 1039360
        %v675 = vsel %vm674, %v641, %v673
        %v678 = vadd.f32 %v669, %v675
        %v679 = vadd.f32 %v670, %v673
        %680 = vrot.lane.b32.xlu0 %v550, 110
        %v681 = vpop.permute.xlu0 %680
        %v683 = vadd.f32 %v678, %v681
        %v684 = vadd.f32 %v679, %v681
        %686 = vrot.lane.b32.xlu0 %v558, 126
        %v687 = vpop.permute.xlu0 %686
        %vm688 = vcmask 1031168
        %v689 = vsel %vm688, %v656, %v687
        %v692 = vadd.f32 %v683, %v689
        %v693 = vadd.f32 %v684, %v687
        %v694 = vadd.f32 %v692, %v662
        %v695 = vadd.f32 %v693, %v662
        %v696 = vmax.f32 %v694, 0.0
        %v697 = vmax.f32 %v695, 0.0
        %700 = vrot.lane.b32.xlu0 %v607, 16
        %v701 = vpop.permute.xlu0 %700
        %702 = vrot.lane.b32.xlu0 %v609, 16
        %v703 = vpop.permute.xlu0 %702
        %v704 = vsel %vm635, %v701, %v703
        %v706 = vadd.f32 %v603, %v704
        %708 = vrot.lane.b32.xlu0 %v613, 127
        %v709 = vpop.permute.xlu0 %708
        %v711 = vadd.f32 %v706, %v709
        %714 = vrot.lane.b32.xlu0 %v617, 15
        %v715 = vpop.permute.xlu0 %714
        %716 = vrot.lane.b32.xlu0 %v619, 15
        %v717 = vpop.permute.xlu0 %716
        %v718 = vsel %vm650, %v715, %v717
        %v720 = vadd.f32 %v711, %v718
        %722 = vrot.lane.b32.xlu0 %v623, 126
        %v723 = vpop.permute.xlu0 %722
        %v725 = vadd.f32 %v720, %v723
        %v726 = vadd.f32 %v725, %v662
        %v727 = vmax.f32 %v726, 0.0
        %728 = vrot.lane.b32.xlu0 %v607, 111
        %v729 = vpop.permute.xlu0 %728
        %v731 = vadd.f32 %v603, %v729
        %v732 = vadd.f32 %v605, %v729
        %734 = vrot.lane.b32.xlu0 %v615, 127
        %v735 = vpop.permute.xlu0 %734
        %v736 = vsel %vm674, %v709, %v735
        %v739 = vadd.f32 %v731, %v736
        %v740 = vadd.f32 %v732, %v735
        %741 = vrot.lane.b32.xlu0 %v617, 110
        %v742 = vpop.permute.xlu0 %741
        %v744 = vadd.f32 %v739, %v742
        %v745 = vadd.f32 %v740, %v742
        %747 = vrot.lane.b32.xlu0 %v625, 126
        %v748 = vpop.permute.xlu0 %747
        %v749 = vsel %vm688, %v723, %v748
        %v752 = vadd.f32 %v744, %v749
        %v753 = vadd.f32 %v745, %v748
        %v754 = vadd.f32 %v752, %v662
        %v755 = vadd.f32 %v753, %v662
        %v756 = vmax.f32 %v754, 0.0
        %v757 = vmax.f32 %v755, 0.0
        %760 = vrot.lane.b32.xlu0 %v696, 16
        %v761 = vpop.permute.xlu0 %760
        %762 = vrot.lane.b32.xlu0 %v697, 16
        %v763 = vpop.permute.xlu0 %762
        %v764 = vsel %vm635, %v761, %v763
        %v766 = vmax.f32 %v665, %v764
        %769 = vrot.lane.b32.xlu0 %v756, 16
        %v770 = vpop.permute.xlu0 %769
        %771 = vrot.lane.b32.xlu0 %v757, 16
        %v772 = vpop.permute.xlu0 %771
        %v773 = vsel %vm635, %v770, %v772
        %v775 = vmax.f32 %v727, %v773
        %v776 = vmax.f32 %v766, %v775
        %v777 = vpack.c.bf16 %v776, %v776
        %v792 = vunpack.c.l.b16 %v415
        %v793 = vunpack.c.l.b16 %v416
        %v794 = vunpack.c.l.b16 %v417
        %v795 = vunpack.c.l.b16 %v418
        %v796 = vunpack.c.l.b16 %v419
        %v797 = vunpack.c.l.b16 %v420
        %v798 = vunpack.c.l.b16 %v421
        %v799 = vunpack.c.l.b16 %v422
        %v800 = vunpack.c.l.b16 %v423
        %v801 = vunpack.c.l.b16 %v424
        %v802 = vunpack.c.l.b16 %v425
        %v803 = vunpack.c.l.b16 %v426
        %v804 = vunpack.c.l.b16 %v427
        %v805 = vunpack.c.l.b16 %v428
        %v806 = vpack.c.b16 %v793, %v792
        %v807 = vpack.c.b16 %v795, %v794
        %v808 = vpack.c.b16 %v797, %v796
        %v809 = vpack.c.b16 %v799, %v798
        %v810 = vpack.c.b16 %v801, %v800
        %v811 = vpack.c.b16 %v803, %v802
        %v812 = vpack.c.b16 %v805, %v804
        %vm819 = vcmask 900096
        %v821 = vsel %vm819, %v777, 0
        %vm823 = vcmask 1046528
        %v825 = vsel %vm823, %v812, 0
        %827 = vmatprep.subr.bf16.mxu0 0
        %828 = vmatpush1.bf16.msra.mxu0 0
        %829 = vmatprep.subr.bf16.mxu0 0
        %830 = vmatpush1.bf16.msra.mxu0 %v825
        %831 = vmatprep.subr.bf16.mxu0 0
        %832 = vmatpush1.bf16.msra.mxu0 %v811
        %833 = vmatprep.subr.bf16.mxu0 0
        %834 = vmatpush1.bf16.msra.mxu0 %v810
        %835 = vmatprep.subr.bf16.mxu0 0
        %836 = vmatpush1.bf16.msra.mxu0 %v809
        %837 = vmatprep.subr.bf16.mxu0 0
        %838 = vmatpush1.bf16.msra.mxu0 %v808
        %839 = vmatprep.subr.bf16.mxu0 0
        %840 = vmatpush1.bf16.msra.mxu0 %v807
        %841 = vmatprep.subr.bf16.mxu0 0
        %842 = vmatpush1.bf16.msra.mxu0 %v806
        %843 = vmatprep.subr.bf16.mxu0 0
        %844 = vmatpush2.bf16.msra.mxu0 0
        %845 = vmatprep.subr.bf16.mxu0 0
        %846 = vmatpush2.bf16.msra.mxu0 0
        %847 = vmatprep.subr.bf16.mxu0 0
        %848 = vmatpush2.bf16.msra.mxu0 0
        %849 = vmatprep.subr.bf16.mxu0 0
        %850 = vmatpush2.bf16.msra.mxu0 0
        %851 = vmatprep.subr.bf16.mxu0 0
        %852 = vmatpush2.bf16.msra.mxu0 0
        %853 = vmatprep.subr.bf16.mxu0 0
        %854 = vmatpush2.bf16.msra.mxu0 0
        %855 = vmatprep.subr.bf16.mxu0 0
        %856 = vmatpush2.bf16.msra.mxu0 0
        %857 = vmatprep.subr.bf16.mxu0 0
        %858 = vmatpush2.bf16.msra.mxu0 0
        %859 = vmatprep.mubr.bf16.mxu0 0
        %860 = vmatmul.mubr.bf16.gmra.mxu0 %v821
        %v861 = vpop.f32.mrf.mxu0
        %v862 = vadd.f32 0.0, %v861
        %v863 = vpop.f32.mrf.mxu0
        %v864 = vpop.f32.mrf.mxu0
        %v865 = vpop.f32.mrf.mxu0
        %866 = vdwg.mxu0
        %s867 = smul.u32 %s436, 8
        %s868 = scalar_lea.vmem [#allocation2], %s867
        %869 = vst.msk [vmem:[%s868] sm:$0xff] %vm819, %v862
      $region73: #{multitask_cnn_forward.1} parent=67 // loop_footer
        %s440 = sadd.s32 1, %s436
      $region74: #{multitask_cnn_forward.1} parent=67 // loop_footer_branch
        %435 = sbr.rel target = $region70
      $region75: #{multitask_cnn_forward.1} parent=67 // loop_exit
        _
      %v870 = vld [vmem:[%s6] sm:$0xf]
      %v871 = vld [vmem:[%s6 + $0x4] sm:$0xf]
      %v872 = vld [vmem:[%s6 + $0x8] sm:$0xf]
      %v873 = vld [vmem:[%s6 + $0xc] sm:$0xf]
      %v874 = vld [vmem:[%s6 + $0x10] sm:$0xf]
      %v875 = vld [vmem:[%s6 + $0x14] sm:$0xf]
      %v876 = vld [vmem:[%s6 + $0x18] sm:$0x7]
      %v877 = vld [vmem:[%s4] sm:$0xf]
      %v878 = vld [vmem:[%s4 + $0x4] sm:$0xf]
      %v879 = vld [vmem:[%s4 + $0x8] sm:$0xf]
      %v880 = vld [vmem:[%s4 + $0xc] sm:$0xf]
      %v881 = vld [vmem:[%s4 + $0x10] sm:$0xf]
      %v882 = vld [vmem:[%s4 + $0x14] sm:$0xf]
      %v883 = vld [vmem:[%s4 + $0x18] sm:$0xf]
      %v884 = vld [vmem:[%s4 + $0x1c] sm:$0xf]
      %v885 = vld [vmem:[%s4 + $0x20] sm:$0xf]
      %v886 = vld [vmem:[%s4 + $0x24] sm:$0xf]
      %v887 = vld [vmem:[%s5] sm:$0xff]
      %v888 = vld [vmem:[%s5 + $0x8] sm:$0xff]
      loop: start=0, step=1, limit=53
      $region76: #{multitask_cnn_forward.1} parent=67 // loop_pre_header
        _
      $region77: #{multitask_cnn_forward.1} parent=67 // loop_header
        %s890 = sphi 0, %s894
        %p891 = scmp.ge.s32.totalorder %s890, 53
      $region78: #{multitask_cnn_forward.1} parent=67 // loop_header_branch
        %893 = sbr.rel (%p891) target = $region82
      $region79: #{multitask_cnn_forward.1} parent=67 // loop_body
        %s895 = smul.u32 %s890, 16
        %s896 = scalar_lea.vmem [#allocation2], %s895
        %v897 = vld [vmem:[%s896] sm:$0xff]
        %v898 = vld [vmem:[%s896 + $0x8] sm:$0xff]
        %v899 = vld [vmem:[%s896 + $0x10] sm:$0xff]
        %v900 = vld [vmem:[%s896 + $0x18] sm:$0xff]
        %v901 = vld [vmem:[%s896 + $0x20] sm:$0xff]
        %v902 = vld [vmem:[%s896 + $0x28] sm:$0xff]
        %v903 = vpack.c.bf16 %v898, %v897
        %v904 = vpack.c.bf16 %v900, %v899
        %v905 = vpack.c.bf16 %v901, %v901
        %v906 = vpack.c.bf16 %v899, %v898
        %v907 = vpack.c.bf16 %v901, %v900
        %v908 = vpack.c.bf16 %v902, %v902
        %v919 = vunpack.c.l.b16 %v877
        %v920 = vunpack.c.l.b16 %v878
        %v921 = vunpack.c.l.b16 %v879
        %v922 = vunpack.c.l.b16 %v880
        %v923 = vunpack.c.l.b16 %v881
        %v924 = vunpack.c.l.b16 %v882
        %v925 = vunpack.c.l.b16 %v883
        %v926 = vunpack.c.l.b16 %v884
        %v927 = vunpack.c.l.b16 %v885
        %v928 = vunpack.c.l.b16 %v886
        %v929 = vpack.c.b16 %v920, %v919
        %v930 = vpack.c.b16 %v922, %v921
        %v931 = vpack.c.b16 %v924, %v923
        %v932 = vpack.c.b16 %v926, %v925
        %v933 = vpack.c.b16 %v928, %v927
        %vm934 = vcmask 326656
        %v936 = vsel %vm934, %v929, 0
        %v939 = vsel %vm934, %v930, 0
        %v942 = vsel %vm934, %v931, 0
        %v945 = vsel %vm934, %v932, 0
        %v948 = vsel %vm934, %v933, 0
        %vm950 = vcmask 1043456
        %v952 = vsel %vm950, %v905, 0
        %954 = vmatprep.subr.bf16.mxu0 0
        %955 = vmatpush1.bf16.msra.mxu0 0
        %956 = vmatprep.subr.bf16.mxu0 0
        %957 = vmatpush1.bf16.msra.mxu0 0
        %958 = vmatprep.subr.bf16.mxu0 0
        %959 = vmatpush1.bf16.msra.mxu0 0
        %960 = vmatprep.subr.bf16.mxu0 0
        %961 = vmatpush1.bf16.msra.mxu0 0
        %962 = vmatprep.subr.bf16.mxu0 0
        %963 = vmatpush1.bf16.msra.mxu0 0
        %964 = vmatprep.subr.bf16.mxu0 0
        %965 = vmatpush1.bf16.msra.mxu0 %v952
        %966 = vmatprep.subr.bf16.mxu0 0
        %967 = vmatpush1.bf16.msra.mxu0 %v904
        %968 = vmatprep.subr.bf16.mxu0 0
        %969 = vmatpush1.bf16.msra.mxu0 %v903
        %970 = vmatprep.subr.bf16.mxu0 0
        %971 = vmatpush2.bf16.msra.mxu0 0
        %972 = vmatprep.subr.bf16.mxu0 0
        %973 = vmatpush2.bf16.msra.mxu0 0
        %974 = vmatprep.subr.bf16.mxu0 0
        %975 = vmatpush2.bf16.msra.mxu0 0
        %976 = vmatprep.subr.bf16.mxu0 0
        %977 = vmatpush2.bf16.msra.mxu0 0
        %978 = vmatprep.subr.bf16.mxu0 0
        %979 = vmatpush2.bf16.msra.mxu0 0
        %980 = vmatprep.subr.bf16.mxu0 0
        %981 = vmatpush2.bf16.msra.mxu0 0
        %982 = vmatprep.subr.bf16.mxu0 0
        %983 = vmatpush2.bf16.msra.mxu0 0
        %984 = vmatprep.subr.bf16.mxu0 0
        %985 = vmatpush2.bf16.msra.mxu0 0
        %986 = vmatprep.mubr.bf16.mxu0 0
        %987 = vmatmul.mubr.bf16.gmra.mxu0 %v936
        %v988 = vpop.f32.mrf.mxu0
        %v989 = vadd.f32 0.0, %v988
        %v990 = vpop.f32.mrf.mxu0
        %v991 = vpop.f32.mrf.mxu0
        %v992 = vadd.f32 0.0, %v991
        %v993 = vpop.f32.mrf.mxu0
        %994 = vmatprep.mubr.bf16.mxu0 0
        %995 = vmatmul.mubr.bf16.gmra.mxu0 %v939
        %v996 = vpop.f32.mrf.mxu0
        %v997 = vadd.f32 0.0, %v996
        %v998 = vpop.f32.mrf.mxu0
        %v999 = vpop.f32.mrf.mxu0
        %v1000 = vadd.f32 0.0, %v999
        %v1001 = vpop.f32.mrf.mxu0
        %1002 = vmatprep.mubr.bf16.mxu0 0
        %1003 = vmatmul.mubr.bf16.gmra.mxu0 %v942
        %v1004 = vpop.f32.mrf.mxu0
        %v1005 = vadd.f32 0.0, %v1004
        %v1006 = vpop.f32.mrf.mxu0
        %v1007 = vpop.f32.mrf.mxu0
        %v1008 = vadd.f32 0.0, %v1007
        %v1009 = vpop.f32.mrf.mxu0
        %1010 = vmatprep.mubr.bf16.mxu0 0
        %1011 = vmatmul.mubr.bf16.gmra.mxu0 %v945
        %v1012 = vpop.f32.mrf.mxu0
        %v1013 = vadd.f32 0.0, %v1012
        %v1014 = vpop.f32.mrf.mxu0
        %v1015 = vpop.f32.mrf.mxu0
        %v1016 = vadd.f32 0.0, %v1015
        %v1017 = vpop.f32.mrf.mxu0
        %1018 = vmatprep.mubr.bf16.mxu0 0
        %1019 = vmatmul.mubr.bf16.gmra.mxu0 %v948
        %v1020 = vpop.f32.mrf.mxu0
        %v1021 = vadd.f32 0.0, %v1020
        %v1022 = vpop.f32.mrf.mxu0
        %v1023 = vpop.f32.mrf.mxu0
        %v1024 = vadd.f32 0.0, %v1023
        %v1025 = vpop.f32.mrf.mxu0
        %1026 = vdwg.mxu0
        %v1028 = vsel %vm950, %v908, 0
        %1030 = vmatprep.subr.bf16.mxu0 0
        %1031 = vmatpush1.bf16.msra.mxu0 0
        %1032 = vmatprep.subr.bf16.mxu0 0
        %1033 = vmatpush1.bf16.msra.mxu0 0
        %1034 = vmatprep.subr.bf16.mxu0 0
        %1035 = vmatpush1.bf16.msra.mxu0 0
        %1036 = vmatprep.subr.bf16.mxu0 0
        %1037 = vmatpush1.bf16.msra.mxu0 0
        %1038 = vmatprep.subr.bf16.mxu0 0
        %1039 = vmatpush1.bf16.msra.mxu0 0
        %1040 = vmatprep.subr.bf16.mxu0 0
        %1041 = vmatpush1.bf16.msra.mxu0 %v1028
        %1042 = vmatprep.subr.bf16.mxu0 0
        %1043 = vmatpush1.bf16.msra.mxu0 %v907
        %1044 = vmatprep.subr.bf16.mxu0 0
        %1045 = vmatpush1.bf16.msra.mxu0 %v906
        %1046 = vmatprep.subr.bf16.mxu0 0
        %1047 = vmatpush2.bf16.msra.mxu0 0
        %1048 = vmatprep.subr.bf16.mxu0 0
        %1049 = vmatpush2.bf16.msra.mxu0 0
        %1050 = vmatprep.subr.bf16.mxu0 0
        %1051 = vmatpush2.bf16.msra.mxu0 0
        %1052 = vmatprep.subr.bf16.mxu0 0
        %1053 = vmatpush2.bf16.msra.mxu0 0
        %1054 = vmatprep.subr.bf16.mxu0 0
        %1055 = vmatpush2.bf16.msra.mxu0 0
        %1056 = vmatprep.subr.bf16.mxu0 0
        %1057 = vmatpush2.bf16.msra.mxu0 0
        %1058 = vmatprep.subr.bf16.mxu0 0
        %1059 = vmatpush2.bf16.msra.mxu0 0
        %1060 = vmatprep.subr.bf16.mxu0 0
        %1061 = vmatpush2.bf16.msra.mxu0 0
        %1062 = vmatprep.mubr.bf16.mxu0 0
        %1063 = vmatmul.mubr.bf16.gmra.mxu0 %v936
        %v1064 = vpop.f32.mrf.mxu0
        %v1065 = vadd.f32 0.0, %v1064
        %v1066 = vpop.f32.mrf.mxu0
        %v1067 = vpop.f32.mrf.mxu0
        %v1068 = vadd.f32 0.0, %v1067
        %v1069 = vpop.f32.mrf.mxu0
        %1070 = vmatprep.mubr.bf16.mxu0 0
        %1071 = vmatmul.mubr.bf16.gmra.mxu0 %v939
        %v1072 = vpop.f32.mrf.mxu0
        %v1073 = vadd.f32 0.0, %v1072
        %v1074 = vpop.f32.mrf.mxu0
        %v1075 = vpop.f32.mrf.mxu0
        %v1076 = vadd.f32 0.0, %v1075
        %v1077 = vpop.f32.mrf.mxu0
        %1078 = vmatprep.mubr.bf16.mxu0 0
        %1079 = vmatmul.mubr.bf16.gmra.mxu0 %v942
        %v1080 = vpop.f32.mrf.mxu0
        %v1081 = vadd.f32 0.0, %v1080
        %v1082 = vpop.f32.mrf.mxu0
        %v1083 = vpop.f32.mrf.mxu0
        %v1084 = vadd.f32 0.0, %v1083
        %v1085 = vpop.f32.mrf.mxu0
        %1086 = vmatprep.mubr.bf16.mxu0 0
        %1087 = vmatmul.mubr.bf16.gmra.mxu0 %v945
        %v1088 = vpop.f32.mrf.mxu0
        %v1089 = vadd.f32 0.0, %v1088
        %v1090 = vpop.f32.mrf.mxu0
        %v1091 = vpop.f32.mrf.mxu0
        %v1092 = vadd.f32 0.0, %v1091
        %v1093 = vpop.f32.mrf.mxu0
        %1094 = vmatprep.mubr.bf16.mxu0 0
        %1095 = vmatmul.mubr.bf16.gmra.mxu0 %v948
        %v1096 = vpop.f32.mrf.mxu0
        %v1097 = vadd.f32 0.0, %v1096
        %v1098 = vpop.f32.mrf.mxu0
        %v1099 = vpop.f32.mrf.mxu0
        %v1100 = vadd.f32 0.0, %v1099
        %v1101 = vpop.f32.mrf.mxu0
        %1102 = vdwg.mxu0
        %1105 = vrot.lane.b32.xlu0 %v997, 73
        %v1106 = vpop.permute.xlu0 %1105
        %1107 = vrot.lane.b32.xlu0 %v1000, 73
        %v1108 = vpop.permute.xlu0 %1107
        %v1111 = vadd.f32 %v989, %v1106
        %v1112 = vadd.f32 %v992, %v1108
        %1115 = vrot.lane.b32.xlu0 %v1005, 127
        %v1116 = vpop.permute.xlu0 %1115
        %1117 = vrot.lane.b32.xlu0 %v1008, 127
        %v1118 = vpop.permute.xlu0 %1117
        %v1121 = vadd.f32 %v1111, %v1116
        %v1122 = vadd.f32 %v1112, %v1118
        %1125 = vrot.lane.b32.xlu0 %v1013, 72
        %v1126 = vpop.permute.xlu0 %1125
        %1127 = vrot.lane.b32.xlu0 %v1016, 72
        %v1128 = vpop.permute.xlu0 %1127
        %v1131 = vadd.f32 %v1121, %v1126
        %v1132 = vadd.f32 %v1122, %v1128
        %1135 = vrot.lane.b32.xlu0 %v1021, 126
        %v1136 = vpop.permute.xlu0 %1135
        %1137 = vrot.lane.b32.xlu0 %v1024, 126
        %v1138 = vpop.permute.xlu0 %1137
        %v1141 = vadd.f32 %v1131, %v1136
        %v1142 = vadd.f32 %v1132, %v1138
        %1144 = vset.pattern.permute.xlu0 0
        %1145 = vperm.xlu0 %1144, %v887
        %v1146 = vpop.permute.xlu0 %1145
        %1149 = vset.pattern.permute.xlu0 0
        %1150 = vperm.xlu0 %1149, %v888
        %v1151 = vpop.permute.xlu0 %1150
        %v1153 = vadd.f32 %v1141, %v1146
        %v1154 = vadd.f32 %v1142, %v1151
        %v1155 = vmax.f32 %v1153, 0.0
        %v1156 = vmax.f32 %v1154, 0.0
        %1157 = vrot.lane.b32.xlu0 %v997, 54
        %v1158 = vpop.permute.xlu0 %1157
        %1159 = vrot.lane.b32.xlu0 %v1000, 54
        %v1160 = vpop.permute.xlu0 %1159
        %v1163 = vadd.f32 %v989, %v1158
        %v1164 = vadd.f32 %v992, %v1160
        %v1165 = vadd.f32 %v1163, %v1116
        %v1166 = vadd.f32 %v1164, %v1118
        %1167 = vrot.lane.b32.xlu0 %v1013, 53
        %v1168 = vpop.permute.xlu0 %1167
        %1169 = vrot.lane.b32.xlu0 %v1016, 53
        %v1170 = vpop.permute.xlu0 %1169
        %v1173 = vadd.f32 %v1165, %v1168
        %v1174 = vadd.f32 %v1166, %v1170
        %v1175 = vadd.f32 %v1173, %v1136
        %v1176 = vadd.f32 %v1174, %v1138
        %v1177 = vadd.f32 %v1175, %v1146
        %v1178 = vadd.f32 %v1176, %v1151
        %v1179 = vmax.f32 %v1177, 0.0
        %v1180 = vmax.f32 %v1178, 0.0
        %1183 = vrot.lane.b32.xlu0 %v1073, 73
        %v1184 = vpop.permute.xlu0 %1183
        %1185 = vrot.lane.b32.xlu0 %v1076, 73
        %v1186 = vpop.permute.xlu0 %1185
        %v1189 = vadd.f32 %v1065, %v1184
        %v1190 = vadd.f32 %v1068, %v1186
        %1193 = vrot.lane.b32.xlu0 %v1081, 127
        %v1194 = vpop.permute.xlu0 %1193
        %1195 = vrot.lane.b32.xlu0 %v1084, 127
        %v1196 = vpop.permute.xlu0 %1195
        %v1199 = vadd.f32 %v1189, %v1194
        %v1200 = vadd.f32 %v1190, %v1196
        %1203 = vrot.lane.b32.xlu0 %v1089, 72
        %v1204 = vpop.permute.xlu0 %1203
        %1205 = vrot.lane.b32.xlu0 %v1092, 72
        %v1206 = vpop.permute.xlu0 %1205
        %v1209 = vadd.f32 %v1199, %v1204
        %v1210 = vadd.f32 %v1200, %v1206
        %1213 = vrot.lane.b32.xlu0 %v1097, 126
        %v1214 = vpop.permute.xlu0 %1213
        %1215 = vrot.lane.b32.xlu0 %v1100, 126
        %v1216 = vpop.permute.xlu0 %1215
        %v1219 = vadd.f32 %v1209, %v1214
        %v1220 = vadd.f32 %v1210, %v1216
        %v1221 = vadd.f32 %v1219, %v1146
        %v1222 = vadd.f32 %v1220, %v1151
        %v1223 = vmax.f32 %v1221, 0.0
        %v1224 = vmax.f32 %v1222, 0.0
        %1225 = vrot.lane.b32.xlu0 %v1073, 54
        %v1226 = vpop.permute.xlu0 %1225
        %1227 = vrot.lane.b32.xlu0 %v1076, 54
        %v1228 = vpop.permute.xlu0 %1227
        %v1231 = vadd.f32 %v1065, %v1226
        %v1232 = vadd.f32 %v1068, %v1228
        %v1233 = vadd.f32 %v1231, %v1194
        %v1234 = vadd.f32 %v1232, %v1196
        %1235 = vrot.lane.b32.xlu0 %v1089, 53
        %v1236 = vpop.permute.xlu0 %1235
        %1237 = vrot.lane.b32.xlu0 %v1092, 53
        %v1238 = vpop.permute.xlu0 %1237
        %v1241 = vadd.f32 %v1233, %v1236
        %v1242 = vadd.f32 %v1234, %v1238
        %v1243 = vadd.f32 %v1241, %v1214
        %v1244 = vadd.f32 %v1242, %v1216
        %v1245 = vadd.f32 %v1243, %v1146
        %v1246 = vadd.f32 %v1244, %v1151
        %v1247 = vmax.f32 %v1245, 0.0
        %v1248 = vmax.f32 %v1246, 0.0
        %1251 = vrot.lane.b32.xlu0 %v1179, 73
        %v1252 = vpop.permute.xlu0 %1251
        %1253 = vrot.lane.b32.xlu0 %v1180, 73
        %v1254 = vpop.permute.xlu0 %1253
        %v1257 = vmax.f32 %v1155, %v1252
        %v1258 = vmax.f32 %v1156, %v1254
        %1261 = vrot.lane.b32.xlu0 %v1247, 73
        %v1262 = vpop.permute.xlu0 %1261
        %1263 = vrot.lane.b32.xlu0 %v1248, 73
        %v1264 = vpop.permute.xlu0 %1263
        %v1267 = vmax.f32 %v1223, %v1262
        %v1268 = vmax.f32 %v1224, %v1264
        %v1269 = vmax.f32 %v1257, %v1267
        %v1270 = vmax.f32 %v1258, %v1268
        %v1271 = vpack.c.bf16 %v1270, %v1269
        %v1279 = vunpack.c.l.b16 %v870
        %v1280 = vunpack.c.l.b16 %v871
        %v1281 = vunpack.c.l.b16 %v872
        %v1282 = vunpack.c.l.b16 %v873
        %v1283 = vunpack.c.l.b16 %v874
        %v1284 = vunpack.c.l.b16 %v875
        %v1285 = vunpack.c.l.b16 %v876
        %v1286 = vpack.c.b16 %v1280, %v1279
        %v1287 = vpack.c.b16 %v1282, %v1281
        %v1288 = vpack.c.b16 %v1284, %v1283
        %v1289 = vpack.c.b16 %v1285, %v1285
        %vm1293 = vcmask 433152
        %v1295 = vsel %vm1293, %v1271, 0
        %vm1297 = vcmask 1041408
        %vm1298 = vcmask 1042432
        %v1299 = vsel %vm1297, 4294967295, 65535
        %v1300 = vsel %vm1298, %v1299, 0
        %v1302 = vand.u32 %v1289, %v1300
        %1304 = vmatprep.subr.bf16.mxu0 0
        %1305 = vmatpush1.bf16.msra.mxu0 0
        %1306 = vmatprep.subr.bf16.mxu0 0
        %1307 = vmatpush1.bf16.msra.mxu0 0
        %1308 = vmatprep.subr.bf16.mxu0 0
        %1309 = vmatpush1.bf16.msra.mxu0 0
        %1310 = vmatprep.subr.bf16.mxu0 0
        %1311 = vmatpush1.bf16.msra.mxu0 0
        %1312 = vmatprep.subr.bf16.mxu0 0
        %1313 = vmatpush1.bf16.msra.mxu0 %v1302
        %1314 = vmatprep.subr.bf16.mxu0 0
        %1315 = vmatpush1.bf16.msra.mxu0 %v1288
        %1316 = vmatprep.subr.bf16.mxu0 0
        %1317 = vmatpush1.bf16.msra.mxu0 %v1287
        %1318 = vmatprep.subr.bf16.mxu0 0
        %1319 = vmatpush1.bf16.msra.mxu0 %v1286
        %1320 = vmatprep.subr.bf16.mxu0 0
        %1321 = vmatpush2.bf16.msra.mxu0 0
        %1322 = vmatprep.subr.bf16.mxu0 0
        %1323 = vmatpush2.bf16.msra.mxu0 0
        %1324 = vmatprep.subr.bf16.mxu0 0
        %1325 = vmatpush2.bf16.msra.mxu0 0
        %1326 = vmatprep.subr.bf16.mxu0 0
        %1327 = vmatpush2.bf16.msra.mxu0 0
        %1328 = vmatprep.subr.bf16.mxu0 0
        %1329 = vmatpush2.bf16.msra.mxu0 0
        %1330 = vmatprep.subr.bf16.mxu0 0
        %1331 = vmatpush2.bf16.msra.mxu0 0
        %1332 = vmatprep.subr.bf16.mxu0 0
        %1333 = vmatpush2.bf16.msra.mxu0 0
        %1334 = vmatprep.subr.bf16.mxu0 0
        %1335 = vmatpush2.bf16.msra.mxu0 0
        %1336 = vmatprep.mubr.bf16.mxu0 0
        %1337 = vmatmul.mubr.bf16.gmra.mxu0 %v1295
        %v1338 = vpop.f32.mrf.mxu0
        %v1339 = vadd.f32 0.0, %v1338
        %v1340 = vpop.f32.mrf.mxu0
        %v1341 = vpop.f32.mrf.mxu0
        %v1342 = vadd.f32 0.0, %v1341
        %v1343 = vpop.f32.mrf.mxu0
        %1344 = vdwg.mxu0
        %s1345 = scalar_lea.vmem [#allocation3], %s895
        %1346 = vst.msk [vmem:[%s1345] sm:$0xff] %vm1293, %v1339
        %1347 = vst.msk [vmem:[%s1345 + $0x8] sm:$0xff] %vm1293, %v1342
      $region80: #{multitask_cnn_forward.1} parent=67 // loop_footer
        %s894 = sadd.s32 1, %s890
      $region81: #{multitask_cnn_forward.1} parent=67 // loop_footer_branch
        %889 = sbr.rel target = $region77
      $region82: #{multitask_cnn_forward.1} parent=67 // loop_exit
        _
      %v1348 = vld [vmem:[%s9] sm:$0xf]
      %v1349 = vld [vmem:[%s9 + $0x4] sm:$0xf]
      %v1350 = vld [vmem:[%s9 + $0x8] sm:$0xf]
      %v1351 = vld [vmem:[%s7] sm:$0xf]
      %v1352 = vld [vmem:[%s7 + $0x4] sm:$0xf]
      %v1353 = vld [vmem:[%s7 + $0x8] sm:$0xf]
      %v1354 = vld [vmem:[%s7 + $0xc] sm:$0xf]
      %v1355 = vld [vmem:[%s7 + $0x10] sm:$0xf]
      %v1356 = vld [vmem:[%s7 + $0x14] sm:$0xf]
      %v1357 = vld [vmem:[%s7 + $0x18] sm:$0xf]
      %v1358 = vld [vmem:[%s7 + $0x1c] sm:$0xf]
      %v1359 = vld [vmem:[%s7 + $0x20] sm:$0xf]
      %v1360 = vld [vmem:[%s7 + $0x24] sm:$0xf]
      %v1361 = vld [vmem:[%s7 + $0x28] sm:$0xf]
      %v1362 = vld [vmem:[%s7 + $0x2c] sm:$0xf]
      %v1363 = vld [vmem:[%s7 + $0x30] sm:$0xf]
      %v1364 = vld [vmem:[%s7 + $0x34] sm:$0xf]
      %v1365 = vld [vmem:[%s7 + $0x38] sm:$0xf]
      %v1366 = vld [vmem:[%s7 + $0x3c] sm:$0xf]
      %v1367 = vld [vmem:[%s7 + $0x40] sm:$0xf]
      %v1368 = vld [vmem:[%s7 + $0x44] sm:$0xf]
      %v1369 = vld [vmem:[%s7 + $0x48] sm:$0xf]
      %v1370 = vld [vmem:[%s7 + $0x4c] sm:$0xf]
      %v1371 = vld [vmem:[%s8] sm:$0xff]
      %v1372 = vld [vmem:[%s8 + $0x8] sm:$0xff]
      %v1373 = vld [vmem:[%s8 + $0x10] sm:$0xff]
      %v1374 = vld [vmem:[%s8 + $0x18] sm:$0xff]
      loop: start=0, step=1, limit=24
      $region83: #{multitask_cnn_forward.1} parent=67 // loop_pre_header
        _
      $region84: #{multitask_cnn_forward.1} parent=67 // loop_header
        %s1376 = sphi 0, %s1380
        %p1377 = scmp.ge.s32.totalorder %s1376, 24
      $region85: #{multitask_cnn_forward.1} parent=67 // loop_header_branch
        %1379 = sbr.rel (%p1377) target = $region89
      $region86: #{multitask_cnn_forward.1} parent=67 // loop_body
        %s1381 = smul.u32 %s1376, 32
        %s1382 = scalar_lea.vmem [#allocation3], %s1381
        %v1383 = vld [vmem:[%s1382] sm:$0xff]
        %v1384 = vld [vmem:[%s1382 + $0x8] sm:$0xff]
        %v1385 = vld [vmem:[%s1382 + $0x10] sm:$0xff]
        %v1386 = vld [vmem:[%s1382 + $0x18] sm:$0xff]
        %v1387 = vld [vmem:[%s1382 + $0x20] sm:$0xff]
        %v1388 = vld [vmem:[%s1382 + $0x28] sm:$0xff]
        %v1389 = vld [vmem:[%s1382 + $0x30] sm:$0xff]
        %v1390 = vld [vmem:[%s1382 + $0x38] sm:$0xff]
        %v1391 = vld [vmem:[%s1382 + $0x40] sm:$0xff]
        %v1392 = vld [vmem:[%s1382 + $0x48] sm:$0xff]
        %v1393 = vld [vmem:[%s1382 + $0x50] sm:$0xff]
        %v1394 = vld [vmem:[%s1382 + $0x58] sm:$0xff]
        %v1395 = vpack.c.bf16 %v1384, %v1383
        %v1396 = vpack.c.bf16 %v1386, %v1385
        %v1397 = vpack.c.bf16 %v1388, %v1387
        %v1398 = vpack.c.bf16 %v1390, %v1389
        %v1399 = vpack.c.bf16 %v1392, %v1391
        %v1400 = vpack.c.bf16 %v1394, %v1393
        %v1421 = vunpack.c.l.b16 %v1351
        %v1422 = vunpack.c.l.b16 %v1352
        %v1423 = vunpack.c.l.b16 %v1353
        %v1424 = vunpack.c.l.b16 %v1354
        %v1425 = vunpack.c.l.b16 %v1355
        %v1426 = vunpack.c.l.b16 %v1356
        %v1427 = vunpack.c.l.b16 %v1357
        %v1428 = vunpack.c.l.b16 %v1358
        %v1429 = vunpack.c.l.b16 %v1359
        %v1430 = vunpack.c.l.b16 %v1360
        %v1431 = vunpack.c.l.b16 %v1361
        %v1432 = vunpack.c.l.b16 %v1362
        %v1433 = vunpack.c.l.b16 %v1363
        %v1434 = vunpack.c.l.b16 %v1364
        %v1435 = vunpack.c.l.b16 %v1365
        %v1436 = vunpack.c.l.b16 %v1366
        %v1437 = vunpack.c.l.b16 %v1367
        %v1438 = vunpack.c.l.b16 %v1368
        %v1439 = vunpack.c.l.b16 %v1369
        %v1440 = vunpack.c.l.b16 %v1370
        %v1441 = vpack.c.b16 %v1422, %v1421
        %v1442 = vpack.c.b16 %v1424, %v1423
        %v1443 = vpack.c.b16 %v1426, %v1425
        %v1444 = vpack.c.b16 %v1428, %v1427
        %v1445 = vpack.c.b16 %v1430, %v1429
        %v1446 = vpack.c.b16 %v1432, %v1431
        %v1447 = vpack.c.b16 %v1434, %v1433
        %v1448 = vpack.c.b16 %v1436, %v1435
        %v1449 = vpack.c.b16 %v1438, %v1437
        %v1450 = vpack.c.b16 %v1440, %v1439
        %vm1451 = vcmask 654336
        %v1453 = vsel %vm1451, %v1441, 0
        %v1456 = vsel %vm1451, %v1442, 0
        %v1459 = vsel %vm1451, %v1443, 0
        %v1462 = vsel %vm1451, %v1444, 0
        %v1465 = vsel %vm1451, %v1445, 0
        %v1468 = vsel %vm1451, %v1446, 0
        %v1471 = vsel %vm1451, %v1447, 0
        %v1474 = vsel %vm1451, %v1448, 0
        %v1477 = vsel %vm1451, %v1449, 0
        %v1480 = vsel %vm1451, %v1450, 0
        %1482 = vmatprep.subr.bf16.mxu0 0
        %1483 = vmatpush1.bf16.msra.mxu0 0
        %1484 = vmatprep.subr.bf16.mxu0 0
        %1485 = vmatpush1.bf16.msra.mxu0 0
        %1486 = vmatprep.subr.bf16.mxu0 0
        %1487 = vmatpush1.bf16.msra.mxu0 0
        %1488 = vmatprep.subr.bf16.mxu0 0
        %1489 = vmatpush1.bf16.msra.mxu0 %v1399
        %1490 = vmatprep.subr.bf16.mxu0 0
        %1491 = vmatpush1.bf16.msra.mxu0 %v1398
        %1492 = vmatprep.subr.bf16.mxu0 0
        %1493 = vmatpush1.bf16.msra.mxu0 %v1397
        %1494 = vmatprep.subr.bf16.mxu0 0
        %1495 = vmatpush1.bf16.msra.mxu0 %v1396
        %1496 = vmatprep.subr.bf16.mxu0 0
        %1497 = vmatpush1.bf16.msra.mxu0 %v1395
        %1498 = vmatprep.subr.bf16.mxu0 0
        %1499 = vmatpush2.bf16.msra.mxu0 0
        %1500 = vmatprep.subr.bf16.mxu0 0
        %1501 = vmatpush2.bf16.msra.mxu0 0
        %1502 = vmatprep.subr.bf16.mxu0 0
        %1503 = vmatpush2.bf16.msra.mxu0 0
        %1504 = vmatprep.subr.bf16.mxu0 0
        %1505 = vmatpush2.bf16.msra.mxu0 0
        %1506 = vmatprep.subr.bf16.mxu0 0
        %1507 = vmatpush2.bf16.msra.mxu0 0
        %1508 = vmatprep.subr.bf16.mxu0 0
        %1509 = vmatpush2.bf16.msra.mxu0 0
        %1510 = vmatprep.subr.bf16.mxu0 0
        %1511 = vmatpush2.bf16.msra.mxu0 0
        %1512 = vmatprep.subr.bf16.mxu0 0
        %1513 = vmatpush2.bf16.msra.mxu0 0
        %1514 = vmatprep.mubr.bf16.mxu0 0
        %1515 = vmatmul.mubr.bf16.gmra.mxu0 %v1453
        %v1516 = vpop.f32.mrf.mxu0
        %v1517 = vadd.f32 0.0, %v1516
        %v1518 = vpop.f32.mrf.mxu0
        %v1519 = vpop.f32.mrf.mxu0
        %v1520 = vadd.f32 0.0, %v1519
        %v1521 = vpop.f32.mrf.mxu0
        %1522 = vmatprep.mubr.bf16.mxu0 0
        %1523 = vmatmul.mubr.bf16.gmra.mxu0 %v1456
        %v1524 = vpop.f32.mrf.mxu0
        %v1525 = vadd.f32 0.0, %v1524
        %v1526 = vpop.f32.mrf.mxu0
        %v1527 = vpop.f32.mrf.mxu0
        %v1528 = vadd.f32 0.0, %v1527
        %v1529 = vpop.f32.mrf.mxu0
        %1530 = vmatprep.mubr.bf16.mxu0 0
        %1531 = vmatmul.mubr.bf16.gmra.mxu0 %v1459
        %v1532 = vpop.f32.mrf.mxu0
        %v1533 = vadd.f32 0.0, %v1532
        %v1534 = vpop.f32.mrf.mxu0
        %v1535 = vpop.f32.mrf.mxu0
        %v1536 = vadd.f32 0.0, %v1535
        %v1537 = vpop.f32.mrf.mxu0
        %1538 = vmatprep.mubr.bf16.mxu0 0
        %1539 = vmatmul.mubr.bf16.gmra.mxu0 %v1462
        %v1540 = vpop.f32.mrf.mxu0
        %v1541 = vadd.f32 0.0, %v1540
        %v1542 = vpop.f32.mrf.mxu0
        %v1543 = vpop.f32.mrf.mxu0
        %v1544 = vadd.f32 0.0, %v1543
        %v1545 = vpop.f32.mrf.mxu0
        %1546 = vmatprep.mubr.bf16.mxu0 0
        %1547 = vmatmul.mubr.bf16.gmra.mxu0 %v1465
        %v1548 = vpop.f32.mrf.mxu0
        %v1549 = vadd.f32 0.0, %v1548
        %v1550 = vpop.f32.mrf.mxu0
        %v1551 = vpop.f32.mrf.mxu0
        %v1552 = vadd.f32 0.0, %v1551
        %v1553 = vpop.f32.mrf.mxu0
        %1554 = vmatprep.mubr.bf16.mxu0 0
        %1555 = vmatmul.mubr.bf16.gmra.mxu0 %v1468
        %v1556 = vpop.f32.mrf.mxu0
        %v1557 = vadd.f32 0.0, %v1556
        %v1558 = vpop.f32.mrf.mxu0
        %v1559 = vpop.f32.mrf.mxu0
        %v1560 = vadd.f32 0.0, %v1559
        %v1561 = vpop.f32.mrf.mxu0
        %1562 = vmatprep.mubr.bf16.mxu0 0
        %1563 = vmatmul.mubr.bf16.gmra.mxu0 %v1471
        %v1564 = vpop.f32.mrf.mxu0
        %v1565 = vadd.f32 0.0, %v1564
        %v1566 = vpop.f32.mrf.mxu0
        %v1567 = vpop.f32.mrf.mxu0
        %v1568 = vadd.f32 0.0, %v1567
        %v1569 = vpop.f32.mrf.mxu0
        %1570 = vmatprep.mubr.bf16.mxu0 0
        %1571 = vmatmul.mubr.bf16.gmra.mxu0 %v1474
        %v1572 = vpop.f32.mrf.mxu0
        %v1573 = vadd.f32 0.0, %v1572
        %v1574 = vpop.f32.mrf.mxu0
        %v1575 = vpop.f32.mrf.mxu0
        %v1576 = vadd.f32 0.0, %v1575
        %v1577 = vpop.f32.mrf.mxu0
        %1578 = vmatprep.mubr.bf16.mxu0 0
        %1579 = vmatmul.mubr.bf16.gmra.mxu0 %v1477
        %v1580 = vpop.f32.mrf.mxu0
        %v1581 = vadd.f32 0.0, %v1580
        %v1582 = vpop.f32.mrf.mxu0
        %v1583 = vpop.f32.mrf.mxu0
        %v1584 = vadd.f32 0.0, %v1583
        %v1585 = vpop.f32.mrf.mxu0
        %1586 = vmatprep.mubr.bf16.mxu0 0
        %1587 = vmatmul.mubr.bf16.gmra.mxu0 %v1480
        %v1588 = vpop.f32.mrf.mxu0
        %v1589 = vadd.f32 0.0, %v1588
        %v1590 = vpop.f32.mrf.mxu0
        %v1591 = vpop.f32.mrf.mxu0
        %v1592 = vadd.f32 0.0, %v1591
        %v1593 = vpop.f32.mrf.mxu0
        %1594 = vdwg.mxu0
        %1595 = vmatprep.subr.bf16.mxu0 0
        %1596 = vmatpush1.bf16.msra.mxu0 0
        %1597 = vmatprep.subr.bf16.mxu0 0
        %1598 = vmatpush1.bf16.msra.mxu0 0
        %1599 = vmatprep.subr.bf16.mxu0 0
        %1600 = vmatpush1.bf16.msra.mxu0 0
        %1601 = vmatprep.subr.bf16.mxu0 0
        %1602 = vmatpush1.bf16.msra.mxu0 %v1400
        %1603 = vmatprep.subr.bf16.mxu0 0
        %1604 = vmatpush1.bf16.msra.mxu0 %v1399
        %1605 = vmatprep.subr.bf16.mxu0 0
        %1606 = vmatpush1.bf16.msra.mxu0 %v1398
        %1607 = vmatprep.subr.bf16.mxu0 0
        %1608 = vmatpush1.bf16.msra.mxu0 %v1397
        %1609 = vmatprep.subr.bf16.mxu0 0
        %1610 = vmatpush1.bf16.msra.mxu0 %v1396
        %1611 = vmatprep.subr.bf16.mxu0 0
        %1612 = vmatpush2.bf16.msra.mxu0 0
        %1613 = vmatprep.subr.bf16.mxu0 0
        %1614 = vmatpush2.bf16.msra.mxu0 0
        %1615 = vmatprep.subr.bf16.mxu0 0
        %1616 = vmatpush2.bf16.msra.mxu0 0
        %1617 = vmatprep.subr.bf16.mxu0 0
        %1618 = vmatpush2.bf16.msra.mxu0 0
        %1619 = vmatprep.subr.bf16.mxu0 0
        %1620 = vmatpush2.bf16.msra.mxu0 0
        %1621 = vmatprep.subr.bf16.mxu0 0
        %1622 = vmatpush2.bf16.msra.mxu0 0
        %1623 = vmatprep.subr.bf16.mxu0 0
        %1624 = vmatpush2.bf16.msra.mxu0 0
        %1625 = vmatprep.subr.bf16.mxu0 0
        %1626 = vmatpush2.bf16.msra.mxu0 0
        %1627 = vmatprep.mubr.bf16.mxu0 0
        %1628 = vmatmul.mubr.bf16.gmra.mxu0 %v1453
        %v1629 = vpop.f32.mrf.mxu0
        %v1630 = vadd.f32 0.0, %v1629
        %v1631 = vpop.f32.mrf.mxu0
        %v1632 = vpop.f32.mrf.mxu0
        %v1633 = vadd.f32 0.0, %v1632
        %v1634 = vpop.f32.mrf.mxu0
        %1635 = vmatprep.mubr.bf16.mxu0 0
        %1636 = vmatmul.mubr.bf16.gmra.mxu0 %v1456
        %v1637 = vpop.f32.mrf.mxu0
        %v1638 = vadd.f32 0.0, %v1637
        %v1639 = vpop.f32.mrf.mxu0
        %v1640 = vpop.f32.mrf.mxu0
        %v1641 = vadd.f32 0.0, %v1640
        %v1642 = vpop.f32.mrf.mxu0
        %1643 = vmatprep.mubr.bf16.mxu0 0
        %1644 = vmatmul.mubr.bf16.gmra.mxu0 %v1459
        %v1645 = vpop.f32.mrf.mxu0
        %v1646 = vadd.f32 0.0, %v1645
        %v1647 = vpop.f32.mrf.mxu0
        %v1648 = vpop.f32.mrf.mxu0
        %v1649 = vadd.f32 0.0, %v1648
        %v1650 = vpop.f32.mrf.mxu0
        %1651 = vmatprep.mubr.bf16.mxu0 0
        %1652 = vmatmul.mubr.bf16.gmra.mxu0 %v1462
        %v1653 = vpop.f32.mrf.mxu0
        %v1654 = vadd.f32 0.0, %v1653
        %v1655 = vpop.f32.mrf.mxu0
        %v1656 = vpop.f32.mrf.mxu0
        %v1657 = vadd.f32 0.0, %v1656
        %v1658 = vpop.f32.mrf.mxu0
        %1659 = vmatprep.mubr.bf16.mxu0 0
        %1660 = vmatmul.mubr.bf16.gmra.mxu0 %v1465
        %v1661 = vpop.f32.mrf.mxu0
        %v1662 = vadd.f32 0.0, %v1661
        %v1663 = vpop.f32.mrf.mxu0
        %v1664 = vpop.f32.mrf.mxu0
        %v1665 = vadd.f32 0.0, %v1664
        %v1666 = vpop.f32.mrf.mxu0
        %1667 = vmatprep.mubr.bf16.mxu0 0
        %1668 = vmatmul.mubr.bf16.gmra.mxu0 %v1468
        %v1669 = vpop.f32.mrf.mxu0
        %v1670 = vadd.f32 0.0, %v1669
        %v1671 = vpop.f32.mrf.mxu0
        %v1672 = vpop.f32.mrf.mxu0
        %v1673 = vadd.f32 0.0, %v1672
        %v1674 = vpop.f32.mrf.mxu0
        %1675 = vmatprep.mubr.bf16.mxu0 0
        %1676 = vmatmul.mubr.bf16.gmra.mxu0 %v1471
        %v1677 = vpop.f32.mrf.mxu0
        %v1678 = vadd.f32 0.0, %v1677
        %v1679 = vpop.f32.mrf.mxu0
        %v1680 = vpop.f32.mrf.mxu0
        %v1681 = vadd.f32 0.0, %v1680
        %v1682 = vpop.f32.mrf.mxu0
        %1683 = vmatprep.mubr.bf16.mxu0 0
        %1684 = vmatmul.mubr.bf16.gmra.mxu0 %v1474
        %v1685 = vpop.f32.mrf.mxu0
        %v1686 = vadd.f32 0.0, %v1685
        %v1687 = vpop.f32.mrf.mxu0
        %v1688 = vpop.f32.mrf.mxu0
        %v1689 = vadd.f32 0.0, %v1688
        %v1690 = vpop.f32.mrf.mxu0
        %1691 = vmatprep.mubr.bf16.mxu0 0
        %1692 = vmatmul.mubr.bf16.gmra.mxu0 %v1477
        %v1693 = vpop.f32.mrf.mxu0
        %v1694 = vadd.f32 0.0, %v1693
        %v1695 = vpop.f32.mrf.mxu0
        %v1696 = vpop.f32.mrf.mxu0
        %v1697 = vadd.f32 0.0, %v1696
        %v1698 = vpop.f32.mrf.mxu0
        %1699 = vmatprep.mubr.bf16.mxu0 0
        %1700 = vmatmul.mubr.bf16.gmra.mxu0 %v1480
        %v1701 = vpop.f32.mrf.mxu0
        %v1702 = vadd.f32 0.0, %v1701
        %v1703 = vpop.f32.mrf.mxu0
        %v1704 = vpop.f32.mrf.mxu0
        %v1705 = vadd.f32 0.0, %v1704
        %v1706 = vpop.f32.mrf.mxu0
        %1707 = vdwg.mxu0
        %1712 = vrot.lane.b32.xlu0 %v1533, 101
        %v1713 = vpop.permute.xlu0 %1712
        %1714 = vrot.lane.b32.xlu0 %v1536, 101
        %v1715 = vpop.permute.xlu0 %1714
        %1716 = vrot.lane.b32.xlu0 %v1541, 101
        %v1717 = vpop.permute.xlu0 %1716
        %1718 = vrot.lane.b32.xlu0 %v1544, 101
        %v1719 = vpop.permute.xlu0 %1718
        %v1724 = vadd.f32 %v1517, %v1713
        %v1725 = vadd.f32 %v1520, %v1715
        %v1726 = vadd.f32 %v1525, %v1717
        %v1727 = vadd.f32 %v1528, %v1719
        %1732 = vrot.lane.b32.xlu0 %v1549, 127
        %v1733 = vpop.permute.xlu0 %1732
        %1734 = vrot.lane.b32.xlu0 %v1552, 127
        %v1735 = vpop.permute.xlu0 %1734
        %1736 = vrot.lane.b32.xlu0 %v1557, 127
        %v1737 = vpop.permute.xlu0 %1736
        %1738 = vrot.lane.b32.xlu0 %v1560, 127
        %v1739 = vpop.permute.xlu0 %1738
        %v1744 = vadd.f32 %v1724, %v1733
        %v1745 = vadd.f32 %v1725, %v1735
        %v1746 = vadd.f32 %v1726, %v1737
        %v1747 = vadd.f32 %v1727, %v1739
        %1752 = vrot.lane.b32.xlu0 %v1565, 100
        %v1753 = vpop.permute.xlu0 %1752
        %1754 = vrot.lane.b32.xlu0 %v1568, 100
        %v1755 = vpop.permute.xlu0 %1754
        %1756 = vrot.lane.b32.xlu0 %v1573, 100
        %v1757 = vpop.permute.xlu0 %1756
        %1758 = vrot.lane.b32.xlu0 %v1576, 100
        %v1759 = vpop.permute.xlu0 %1758
        %v1764 = vadd.f32 %v1744, %v1753
        %v1765 = vadd.f32 %v1745, %v1755
        %v1766 = vadd.f32 %v1746, %v1757
        %v1767 = vadd.f32 %v1747, %v1759
        %1772 = vrot.lane.b32.xlu0 %v1581, 126
        %v1773 = vpop.permute.xlu0 %1772
        %1774 = vrot.lane.b32.xlu0 %v1584, 126
        %v1775 = vpop.permute.xlu0 %1774
        %1776 = vrot.lane.b32.xlu0 %v1589, 126
        %v1777 = vpop.permute.xlu0 %1776
        %1778 = vrot.lane.b32.xlu0 %v1592, 126
        %v1779 = vpop.permute.xlu0 %1778
        %v1784 = vadd.f32 %v1764, %v1773
        %v1785 = vadd.f32 %v1765, %v1775
        %v1786 = vadd.f32 %v1766, %v1777
        %v1787 = vadd.f32 %v1767, %v1779
        %1789 = vset.pattern.permute.xlu0 0
        %1790 = vperm.xlu0 %1789, %v1371
        %v1791 = vpop.permute.xlu0 %1790
        %1794 = vset.pattern.permute.xlu0 0
        %1795 = vperm.xlu0 %1794, %v1372
        %v1796 = vpop.permute.xlu0 %1795
        %1799 = vset.pattern.permute.xlu0 0
        %1800 = vperm.xlu0 %1799, %v1373
        %v1801 = vpop.permute.xlu0 %1800
        %1804 = vset.pattern.permute.xlu0 0
        %1805 = vperm.xlu0 %1804, %v1374
        %v1806 = vpop.permute.xlu0 %1805
        %v1808 = vadd.f32 %v1784, %v1791
        %v1809 = vadd.f32 %v1785, %v1796
        %v1810 = vadd.f32 %v1786, %v1801
        %v1811 = vadd.f32 %v1787, %v1806
        %v1812 = vmax.f32 %v1808, 0.0
        %v1813 = vmax.f32 %v1809, 0.0
        %v1814 = vmax.f32 %v1810, 0.0
        %v1815 = vmax.f32 %v1811, 0.0
        %1816 = vrot.lane.b32.xlu0 %v1533, 26
        %v1817 = vpop.permute.xlu0 %1816
        %1818 = vrot.lane.b32.xlu0 %v1536, 26
        %v1819 = vpop.permute.xlu0 %1818
        %1820 = vrot.lane.b32.xlu0 %v1541, 26
        %v1821 = vpop.permute.xlu0 %1820
        %1822 = vrot.lane.b32.xlu0 %v1544, 26
        %v1823 = vpop.permute.xlu0 %1822
        %v1828 = vadd.f32 %v1517, %v1817
        %v1829 = vadd.f32 %v1520, %v1819
        %v1830 = vadd.f32 %v1525, %v1821
        %v1831 = vadd.f32 %v1528, %v1823
        %v1832 = vadd.f32 %v1828, %v1733
        %v1833 = vadd.f32 %v1829, %v1735
        %v1834 = vadd.f32 %v1830, %v1737
        %v1835 = vadd.f32 %v1831, %v1739
        %1836 = vrot.lane.b32.xlu0 %v1565, 25
        %v1837 = vpop.permute.xlu0 %1836
        %1838 = vrot.lane.b32.xlu0 %v1568, 25
        %v1839 = vpop.permute.xlu0 %1838
        %1840 = vrot.lane.b32.xlu0 %v1573, 25
        %v1841 = vpop.permute.xlu0 %1840
        %1842 = vrot.lane.b32.xlu0 %v1576, 25
        %v1843 = vpop.permute.xlu0 %1842
        %v1848 = vadd.f32 %v1832, %v1837
        %v1849 = vadd.f32 %v1833, %v1839
        %v1850 = vadd.f32 %v1834, %v1841
        %v1851 = vadd.f32 %v1835, %v1843
        %v1852 = vadd.f32 %v1848, %v1773
        %v1853 = vadd.f32 %v1849, %v1775
        %v1854 = vadd.f32 %v1850, %v1777
        %v1855 = vadd.f32 %v1851, %v1779
        %v1856 = vadd.f32 %v1852, %v1791
        %v1857 = vadd.f32 %v1853, %v1796
        %v1858 = vadd.f32 %v1854, %v1801
        %v1859 = vadd.f32 %v1855, %v1806
        %v1860 = vmax.f32 %v1856, 0.0
        %v1861 = vmax.f32 %v1857, 0.0
        %v1862 = vmax.f32 %v1858, 0.0
        %v1863 = vmax.f32 %v1859, 0.0
        %1868 = vrot.lane.b32.xlu0 %v1646, 101
        %v1869 = vpop.permute.xlu0 %1868
        %1870 = vrot.lane.b32.xlu0 %v1649, 101
        %v1871 = vpop.permute.xlu0 %1870
        %1872 = vrot.lane.b32.xlu0 %v1654, 101
        %v1873 = vpop.permute.xlu0 %1872
        %1874 = vrot.lane.b32.xlu0 %v1657, 101
        %v1875 = vpop.permute.xlu0 %1874
        %v1880 = vadd.f32 %v1630, %v1869
        %v1881 = vadd.f32 %v1633, %v1871
        %v1882 = vadd.f32 %v1638, %v1873
        %v1883 = vadd.f32 %v1641, %v1875
        %1888 = vrot.lane.b32.xlu0 %v1662, 127
        %v1889 = vpop.permute.xlu0 %1888
        %1890 = vrot.lane.b32.xlu0 %v1665, 127
        %v1891 = vpop.permute.xlu0 %1890
        %1892 = vrot.lane.b32.xlu0 %v1670, 127
        %v1893 = vpop.permute.xlu0 %1892
        %1894 = vrot.lane.b32.xlu0 %v1673, 127
        %v1895 = vpop.permute.xlu0 %1894
        %v1900 = vadd.f32 %v1880, %v1889
        %v1901 = vadd.f32 %v1881, %v1891
        %v1902 = vadd.f32 %v1882, %v1893
        %v1903 = vadd.f32 %v1883, %v1895
        %1908 = vrot.lane.b32.xlu0 %v1678, 100
        %v1909 = vpop.permute.xlu0 %1908
        %1910 = vrot.lane.b32.xlu0 %v1681, 100
        %v1911 = vpop.permute.xlu0 %1910
        %1912 = vrot.lane.b32.xlu0 %v1686, 100
        %v1913 = vpop.permute.xlu0 %1912
        %1914 = vrot.lane.b32.xlu0 %v1689, 100
        %v1915 = vpop.permute.xlu0 %1914
        %v1920 = vadd.f32 %v1900, %v1909
        %v1921 = vadd.f32 %v1901, %v1911
        %v1922 = vadd.f32 %v1902, %v1913
        %v1923 = vadd.f32 %v1903, %v1915
        %1928 = vrot.lane.b32.xlu0 %v1694, 126
        %v1929 = vpop.permute.xlu0 %1928
        %1930 = vrot.lane.b32.xlu0 %v1697, 126
        %v1931 = vpop.permute.xlu0 %1930
        %1932 = vrot.lane.b32.xlu0 %v1702, 126
        %v1933 = vpop.permute.xlu0 %1932
        %1934 = vrot.lane.b32.xlu0 %v1705, 126
        %v1935 = vpop.permute.xlu0 %1934
        %v1940 = vadd.f32 %v1920, %v1929
        %v1941 = vadd.f32 %v1921, %v1931
        %v1942 = vadd.f32 %v1922, %v1933
        %v1943 = vadd.f32 %v1923, %v1935
        %v1944 = vadd.f32 %v1940, %v1791
        %v1945 = vadd.f32 %v1941, %v1796
        %v1946 = vadd.f32 %v1942, %v1801
        %v1947 = vadd.f32 %v1943, %v1806
        %v1948 = vmax.f32 %v1944, 0.0
        %v1949 = vmax.f32 %v1945, 0.0
        %v1950 = vmax.f32 %v1946, 0.0
        %v1951 = vmax.f32 %v1947, 0.0
        %1952 = vrot.lane.b32.xlu0 %v1646, 26
        %v1953 = vpop.permute.xlu0 %1952
        %1954 = vrot.lane.b32.xlu0 %v1649, 26
        %v1955 = vpop.permute.xlu0 %1954
        %1956 = vrot.lane.b32.xlu0 %v1654, 26
        %v1957 = vpop.permute.xlu0 %1956
        %1958 = vrot.lane.b32.xlu0 %v1657, 26
        %v1959 = vpop.permute.xlu0 %1958
        %v1964 = vadd.f32 %v1630, %v1953
        %v1965 = vadd.f32 %v1633, %v1955
        %v1966 = vadd.f32 %v1638, %v1957
        %v1967 = vadd.f32 %v1641, %v1959
        %v1968 = vadd.f32 %v1964, %v1889
        %v1969 = vadd.f32 %v1965, %v1891
        %v1970 = vadd.f32 %v1966, %v1893
        %v1971 = vadd.f32 %v1967, %v1895
        %1972 = vrot.lane.b32.xlu0 %v1678, 25
        %v1973 = vpop.permute.xlu0 %1972
        %1974 = vrot.lane.b32.xlu0 %v1681, 25
        %v1975 = vpop.permute.xlu0 %1974
        %1976 = vrot.lane.b32.xlu0 %v1686, 25
        %v1977 = vpop.permute.xlu0 %1976
        %1978 = vrot.lane.b32.xlu0 %v1689, 25
        %v1979 = vpop.permute.xlu0 %1978
        %v1984 = vadd.f32 %v1968, %v1973
        %v1985 = vadd.f32 %v1969, %v1975
        %v1986 = vadd.f32 %v1970, %v1977
        %v1987 = vadd.f32 %v1971, %v1979
        %v1988 = vadd.f32 %v1984, %v1929
        %v1989 = vadd.f32 %v1985, %v1931
        %v1990 = vadd.f32 %v1986, %v1933
        %v1991 = vadd.f32 %v1987, %v1935
        %v1992 = vadd.f32 %v1988, %v1791
        %v1993 = vadd.f32 %v1989, %v1796
        %v1994 = vadd.f32 %v1990, %v1801
        %v1995 = vadd.f32 %v1991, %v1806
        %v1996 = vmax.f32 %v1992, 0.0
        %v1997 = vmax.f32 %v1993, 0.0
        %v1998 = vmax.f32 %v1994, 0.0
        %v1999 = vmax.f32 %v1995, 0.0
        %2004 = vrot.lane.b32.xlu0 %v1860, 101
        %v2005 = vpop.permute.xlu0 %2004
        %2006 = vrot.lane.b32.xlu0 %v1861, 101
        %v2007 = vpop.permute.xlu0 %2006
        %2008 = vrot.lane.b32.xlu0 %v1862, 101
        %v2009 = vpop.permute.xlu0 %2008
        %2010 = vrot.lane.b32.xlu0 %v1863, 101
        %v2011 = vpop.permute.xlu0 %2010
        %v2016 = vmax.f32 %v1812, %v2005
        %v2017 = vmax.f32 %v1813, %v2007
        %v2018 = vmax.f32 %v1814, %v2009
        %v2019 = vmax.f32 %v1815, %v2011
        %2024 = vrot.lane.b32.xlu0 %v1996, 101
        %v2025 = vpop.permute.xlu0 %2024
        %2026 = vrot.lane.b32.xlu0 %v1997, 101
        %v2027 = vpop.permute.xlu0 %2026
        %2028 = vrot.lane.b32.xlu0 %v1998, 101
        %v2029 = vpop.permute.xlu0 %2028
        %2030 = vrot.lane.b32.xlu0 %v1999, 101
        %v2031 = vpop.permute.xlu0 %2030
        %v2036 = vmax.f32 %v1948, %v2025
        %v2037 = vmax.f32 %v1949, %v2027
        %v2038 = vmax.f32 %v1950, %v2029
        %v2039 = vmax.f32 %v1951, %v2031
        %v2040 = vmax.f32 %v2016, %v2036
        %v2041 = vmax.f32 %v2017, %v2037
        %v2042 = vmax.f32 %v2018, %v2038
        %v2043 = vmax.f32 %v2019, %v2039
        %v2044 = vpack.c.bf16 %v2041, %v2040
        %v2045 = vpack.c.bf16 %v2043, %v2042
        %v2049 = vunpack.c.l.b16 %v1348
        %v2050 = vunpack.c.l.b16 %v1349
        %v2051 = vunpack.c.l.b16 %v1350
        %v2052 = vpack.c.b16 %v2050, %v2049
        %v2053 = vpack.c.b16 %v2051, %v2051
        %vm2055 = vcmask 195584
        %v2057 = vsel %vm2055, %v2044, 0
        %v2060 = vsel %vm2055, %v2045, 0
        %vm2062 = vcmask 1043456
        %v2064 = vsel %vm2062, %v2053, 0
        %2066 = vmatprep.subr.bf16.mxu0 0
        %2067 = vmatpush1.bf16.msra.mxu0 0
        %2068 = vmatprep.subr.bf16.mxu0 0
        %2069 = vmatpush1.bf16.msra.mxu0 0
        %2070 = vmatprep.subr.bf16.mxu0 0
        %2071 = vmatpush1.bf16.msra.mxu0 0
        %2072 = vmatprep.subr.bf16.mxu0 0
        %2073 = vmatpush1.bf16.msra.mxu0 0
        %2074 = vmatprep.subr.bf16.mxu0 0
        %2075 = vmatpush1.bf16.msra.mxu0 0
        %2076 = vmatprep.subr.bf16.mxu0 0
        %2077 = vmatpush1.bf16.msra.mxu0 0
        %2078 = vmatprep.subr.bf16.mxu0 0
        %2079 = vmatpush1.bf16.msra.mxu0 %v2064
        %2080 = vmatprep.subr.bf16.mxu0 0
        %2081 = vmatpush1.bf16.msra.mxu0 %v2052
        %2082 = vmatprep.subr.bf16.mxu0 0
        %2083 = vmatpush2.bf16.msra.mxu0 0
        %2084 = vmatprep.subr.bf16.mxu0 0
        %2085 = vmatpush2.bf16.msra.mxu0 0
        %2086 = vmatprep.subr.bf16.mxu0 0
        %2087 = vmatpush2.bf16.msra.mxu0 0
        %2088 = vmatprep.subr.bf16.mxu0 0
        %2089 = vmatpush2.bf16.msra.mxu0 0
        %2090 = vmatprep.subr.bf16.mxu0 0
        %2091 = vmatpush2.bf16.msra.mxu0 0
        %2092 = vmatprep.subr.bf16.mxu0 0
        %2093 = vmatpush2.bf16.msra.mxu0 0
        %2094 = vmatprep.subr.bf16.mxu0 0
        %2095 = vmatpush2.bf16.msra.mxu0 0
        %2096 = vmatprep.subr.bf16.mxu0 0
        %2097 = vmatpush2.bf16.msra.mxu0 0
        %2098 = vmatprep.mubr.bf16.mxu0 0
        %2099 = vmatmul.mubr.bf16.gmra.mxu0 %v2057
        %v2100 = vpop.f32.mrf.mxu0
        %v2101 = vadd.f32 0.0, %v2100
        %v2102 = vpop.f32.mrf.mxu0
        %v2103 = vpop.f32.mrf.mxu0
        %v2104 = vadd.f32 0.0, %v2103
        %v2105 = vpop.f32.mrf.mxu0
        %2106 = vmatprep.mubr.bf16.mxu0 0
        %2107 = vmatmul.mubr.bf16.gmra.mxu0 %v2060
        %v2108 = vpop.f32.mrf.mxu0
        %v2109 = vadd.f32 0.0, %v2108
        %v2110 = vpop.f32.mrf.mxu0
        %v2111 = vpop.f32.mrf.mxu0
        %v2112 = vadd.f32 0.0, %v2111
        %v2113 = vpop.f32.mrf.mxu0
        %2114 = vdwg.mxu0
        %s2115 = scalar_lea.vmem [#allocation4], %s1381
        %2116 = vst.msk [vmem:[%s2115] sm:$0xff] %vm2055, %v2101
        %2117 = vst.msk [vmem:[%s2115 + $0x8] sm:$0xff] %vm2055, %v2104
        %2118 = vst.msk [vmem:[%s2115 + $0x10] sm:$0xff] %vm2055, %v2109
        %2119 = vst.msk [vmem:[%s2115 + $0x18] sm:$0xff] %vm2055, %v2112
      $region87: #{multitask_cnn_forward.1} parent=67 // loop_footer
        %s1380 = sadd.s32 1, %s1376
      $region88: #{multitask_cnn_forward.1} parent=67 // loop_footer_branch
        %1375 = sbr.rel target = $region84
      $region89: #{multitask_cnn_forward.1} parent=67 // loop_exit
        _
      %v2120 = vld [vmem:[%s10] sm:$0xff]
      %v2121 = vld [vmem:[%s10 + $0x8] sm:$0xff]
      %v2122 = vld [vmem:[%s10 + $0x10] sm:$0xff]
      %v2123 = vld [vmem:[%s10 + $0x18] sm:$0xff]
      %v2124 = vld [vmem:[%s10 + $0x20] sm:$0xff]
      %v2125 = vld [vmem:[%s10 + $0x28] sm:$0xff]
      %v2126 = vld [vmem:[%s10 + $0x30] sm:$0xff]
      %v2127 = vld [vmem:[%s10 + $0x38] sm:$0xff]
      %v2128 = vld [vmem:[%s10 + $0x40] sm:$0xff]
      %v2129 = vld [vmem:[%s10 + $0x48] sm:$0xff]
      %v2130 = vld [vmem:[%s10 + $0x50] sm:$0xff]
      %v2131 = vld [vmem:[%s10 + $0x58] sm:$0xff]
      %v2132 = vld [vmem:[%s10 + $0x60] sm:$0xff]
      %v2133 = vld [vmem:[%s10 + $0x68] sm:$0xff]
      %v2134 = vld [vmem:[%s10 + $0x70] sm:$0xff]
      %v2135 = vld [vmem:[%s10 + $0x78] sm:$0xff]
      %v2136 = vld [vmem:[%s10 + $0x80] sm:$0xff]
      %v2137 = vld [vmem:[%s10 + $0x88] sm:$0xff]
      %v2138 = vld [vmem:[%s10 + $0x90] sm:$0xff]
      %v2139 = vld [vmem:[%s10 + $0x98] sm:$0xff]
      %v2140 = vld [vmem:[%s11] sm:$0xff]
      %v2141 = vld [vmem:[%s11 + $0x8] sm:$0xff]
      %v2142 = vld [vmem:[%s11 + $0x10] sm:$0xff]
      %v2143 = vld [vmem:[%s11 + $0x18] sm:$0xff]
      loop: start=0, step=1, limit=10
      $region90: #{multitask_cnn_forward.1} parent=67 // loop_pre_header
        _
      $region91: #{multitask_cnn_forward.1} parent=67 // loop_header
        %s2145 = sphi 0, %s2149
        %p2146 = scmp.ge.s32.totalorder %s2145, 10
      $region92: #{multitask_cnn_forward.1} parent=67 // loop_header_branch
        %2148 = sbr.rel (%p2146) target = $region96
      $region93: #{multitask_cnn_forward.1} parent=67 // loop_body
        %s2150 = smul.u32 %s2145, 64
        %s2151 = scalar_lea.vmem [#allocation4], %s2150
        %v2152 = vld [vmem:[%s2151] sm:$0xff]
        %v2153 = vld [vmem:[%s2151 + $0x8] sm:$0xff]
        %v2154 = vld [vmem:[%s2151 + $0x10] sm:$0xff]
        %v2155 = vld [vmem:[%s2151 + $0x18] sm:$0xff]
        %v2156 = vld [vmem:[%s2151 + $0x20] sm:$0xff]
        %v2157 = vld [vmem:[%s2151 + $0x28] sm:$0xff]
        %v2158 = vld [vmem:[%s2151 + $0x30] sm:$0xff]
        %v2159 = vld [vmem:[%s2151 + $0x38] sm:$0xff]
        %v2160 = vld [vmem:[%s2151 + $0x40] sm:$0xff]
        %v2161 = vld [vmem:[%s2151 + $0x48] sm:$0xff]
        %v2162 = vld [vmem:[%s2151 + $0x50] sm:$0xff]
        %v2163 = vld [vmem:[%s2151 + $0x58] sm:$0xff]
        %v2164 = vld [vmem:[%s2151 + $0x60] sm:$0xff]
        %v2165 = vld [vmem:[%s2151 + $0x68] sm:$0xff]
        %v2166 = vld [vmem:[%s2151 + $0x70] sm:$0xff]
        %v2167 = vld [vmem:[%s2151 + $0x78] sm:$0xff]
        %v2168 = vld [vmem:[%s2151 + $0x80] sm:$0xff]
        %v2169 = vld [vmem:[%s2151 + $0x88] sm:$0xff]
        %v2170 = vld [vmem:[%s2151 + $0x90] sm:$0xff]
        %v2171 = vld [vmem:[%s2151 + $0x98] sm:$0xff]
        %v2172 = vld [vmem:[%s2151 + $0xa0] sm:$0xff]
        %v2173 = vld [vmem:[%s2151 + $0xa8] sm:$0xff]
        %v2174 = vld [vmem:[%s2151 + $0xb0] sm:$0xff]
        %v2175 = vld [vmem:[%s2151 + $0xb8] sm:$0xff]
        %v2176 = vpack.c.bf16 %v2153, %v2152
        %v2177 = vpack.c.bf16 %v2155, %v2154
        %v2178 = vpack.c.bf16 %v2157, %v2156
        %v2179 = vpack.c.bf16 %v2159, %v2158
        %v2180 = vpack.c.bf16 %v2161, %v2160
        %v2181 = vpack.c.bf16 %v2163, %v2162
        %v2182 = vpack.c.bf16 %v2165, %v2164
        %v2183 = vpack.c.bf16 %v2167, %v2166
        %v2184 = vpack.c.bf16 %v2169, %v2168
        %v2185 = vpack.c.bf16 %v2171, %v2170
        %v2186 = vpack.c.bf16 %v2173, %v2172
        %v2187 = vpack.c.bf16 %v2175, %v2174
        %v2208 = vunpack.c.l.b16 %v2120
        %v2209 = vunpack.c.h.b16 %v2120
        %v2210 = vunpack.c.l.b16 %v2121
        %v2211 = vunpack.c.h.b16 %v2121
        %v2212 = vunpack.c.l.b16 %v2122
        %v2213 = vunpack.c.h.b16 %v2122
        %v2214 = vunpack.c.l.b16 %v2123
        %v2215 = vunpack.c.h.b16 %v2123
        %v2216 = vunpack.c.l.b16 %v2124
        %v2217 = vunpack.c.h.b16 %v2124
        %v2218 = vunpack.c.l.b16 %v2125
        %v2219 = vunpack.c.h.b16 %v2125
        %v2220 = vunpack.c.l.b16 %v2126
        %v2221 = vunpack.c.h.b16 %v2126
        %v2222 = vunpack.c.l.b16 %v2127
        %v2223 = vunpack.c.h.b16 %v2127
        %v2224 = vunpack.c.l.b16 %v2128
        %v2225 = vunpack.c.h.b16 %v2128
        %v2226 = vunpack.c.l.b16 %v2129
        %v2227 = vunpack.c.h.b16 %v2129
        %v2228 = vunpack.c.l.b16 %v2130
        %v2229 = vunpack.c.h.b16 %v2130
        %v2230 = vunpack.c.l.b16 %v2131
        %v2231 = vunpack.c.h.b16 %v2131
        %v2232 = vunpack.c.l.b16 %v2132
        %v2233 = vunpack.c.h.b16 %v2132
        %v2234 = vunpack.c.l.b16 %v2133
        %v2235 = vunpack.c.h.b16 %v2133
        %v2236 = vunpack.c.l.b16 %v2134
        %v2237 = vunpack.c.h.b16 %v2134
        %v2238 = vunpack.c.l.b16 %v2135
        %v2239 = vunpack.c.h.b16 %v2135
        %v2240 = vunpack.c.l.b16 %v2136
        %v2241 = vunpack.c.h.b16 %v2136
        %v2242 = vunpack.c.l.b16 %v2137
        %v2243 = vunpack.c.h.b16 %v2137
        %v2244 = vunpack.c.l.b16 %v2138
        %v2245 = vunpack.c.h.b16 %v2138
        %v2246 = vunpack.c.l.b16 %v2139
        %v2247 = vunpack.c.h.b16 %v2139
        %v2248 = vpack.c.b16 %v2210, %v2208
        %v2249 = vpack.c.b16 %v2211, %v2209
        %v2250 = vpack.c.b16 %v2214, %v2212
        %v2251 = vpack.c.b16 %v2215, %v2213
        %v2252 = vpack.c.b16 %v2218, %v2216
        %v2253 = vpack.c.b16 %v2219, %v2217
        %v2254 = vpack.c.b16 %v2222, %v2220
        %v2255 = vpack.c.b16 %v2223, %v2221
        %v2256 = vpack.c.b16 %v2226, %v2224
        %v2257 = vpack.c.b16 %v2227, %v2225
        %v2258 = vpack.c.b16 %v2230, %v2228
        %v2259 = vpack.c.b16 %v2231, %v2229
        %v2260 = vpack.c.b16 %v2234, %v2232
        %v2261 = vpack.c.b16 %v2235, %v2233
        %v2262 = vpack.c.b16 %v2238, %v2236
        %v2263 = vpack.c.b16 %v2239, %v2237
        %v2264 = vpack.c.b16 %v2242, %v2240
        %v2265 = vpack.c.b16 %v2243, %v2241
        %v2266 = vpack.c.b16 %v2246, %v2244
        %v2267 = vpack.c.b16 %v2247, %v2245
        %vm2278 = vcmask 261120
        %v2280 = vsel %vm2278, %v2249, 0
        %v2283 = vsel %vm2278, %v2251, 0
        %v2286 = vsel %vm2278, %v2253, 0
        %v2289 = vsel %vm2278, %v2255, 0
        %v2292 = vsel %vm2278, %v2257, 0
        %v2295 = vsel %vm2278, %v2259, 0
        %v2298 = vsel %vm2278, %v2261, 0
        %v2301 = vsel %vm2278, %v2263, 0
        %v2304 = vsel %vm2278, %v2265, 0
        %v2307 = vsel %vm2278, %v2267, 0
        %2309 = vmatprep.subr.bf16.mxu0 0
        %2310 = vmatpush1.bf16.msra.mxu0 %v2183
        %2311 = vmatprep.subr.bf16.mxu0 0
        %2312 = vmatpush1.bf16.msra.mxu0 %v2182
        %2313 = vmatprep.subr.bf16.mxu0 0
        %2314 = vmatpush1.bf16.msra.mxu0 %v2181
        %2315 = vmatprep.subr.bf16.mxu0 0
        %2316 = vmatpush1.bf16.msra.mxu0 %v2180
        %2317 = vmatprep.subr.bf16.mxu0 0
        %2318 = vmatpush1.bf16.msra.mxu0 %v2179
        %2319 = vmatprep.subr.bf16.mxu0 0
        %2320 = vmatpush1.bf16.msra.mxu0 %v2178
        %2321 = vmatprep.subr.bf16.mxu0 0
        %2322 = vmatpush1.bf16.msra.mxu0 %v2177
        %2323 = vmatprep.subr.bf16.mxu0 0
        %2324 = vmatpush1.bf16.msra.mxu0 %v2176
        %2325 = vmatprep.subr.bf16.mxu0 0
        %2326 = vmatpush2.bf16.msra.mxu0 0
        %2327 = vmatprep.subr.bf16.mxu0 0
        %2328 = vmatpush2.bf16.msra.mxu0 0
        %2329 = vmatprep.subr.bf16.mxu0 0
        %2330 = vmatpush2.bf16.msra.mxu0 0
        %2331 = vmatprep.subr.bf16.mxu0 0
        %2332 = vmatpush2.bf16.msra.mxu0 0
        %2333 = vmatprep.subr.bf16.mxu0 0
        %2334 = vmatpush2.bf16.msra.mxu0 0
        %2335 = vmatprep.subr.bf16.mxu0 0
        %2336 = vmatpush2.bf16.msra.mxu0 0
        %2337 = vmatprep.subr.bf16.mxu0 0
        %2338 = vmatpush2.bf16.msra.mxu0 %v2185
        %2339 = vmatprep.subr.bf16.mxu0 0
        %2340 = vmatpush2.bf16.msra.mxu0 %v2184
        %2341 = vmatprep.mubr.bf16.mxu0 %v2280
        %2342 = vmatmul.mubr.bf16.gmra.mxu0 %v2248
        %v2343 = vpop.f32.mrf.mxu0
        %v2344 = vadd.f32 0.0, %v2343
        %v2345 = vpop.f32.mrf.mxu0
        %v2346 = vpop.f32.mrf.mxu0
        %v2347 = vadd.f32 0.0, %v2346
        %v2348 = vpop.f32.mrf.mxu0
        %2349 = vmatprep.mubr.bf16.mxu0 %v2283
        %2350 = vmatmul.mubr.bf16.gmra.mxu0 %v2250
        %v2351 = vpop.f32.mrf.mxu0
        %v2352 = vadd.f32 0.0, %v2351
        %v2353 = vpop.f32.mrf.mxu0
        %v2354 = vpop.f32.mrf.mxu0
        %v2355 = vadd.f32 0.0, %v2354
        %v2356 = vpop.f32.mrf.mxu0
        %2357 = vmatprep.mubr.bf16.mxu0 %v2286
        %2358 = vmatmul.mubr.bf16.gmra.mxu0 %v2252
        %v2359 = vpop.f32.mrf.mxu0
        %v2360 = vadd.f32 0.0, %v2359
        %v2361 = vpop.f32.mrf.mxu0
        %v2362 = vpop.f32.mrf.mxu0
        %v2363 = vadd.f32 0.0, %v2362
        %v2364 = vpop.f32.mrf.mxu0
        %2365 = vmatprep.mubr.bf16.mxu0 %v2289
        %2366 = vmatmul.mubr.bf16.gmra.mxu0 %v2254
        %v2367 = vpop.f32.mrf.mxu0
        %v2368 = vadd.f32 0.0, %v2367
        %v2369 = vpop.f32.mrf.mxu0
        %v2370 = vpop.f32.mrf.mxu0
        %v2371 = vadd.f32 0.0, %v2370
        %v2372 = vpop.f32.mrf.mxu0
        %2373 = vmatprep.mubr.bf16.mxu0 %v2292
        %2374 = vmatmul.mubr.bf16.gmra.mxu0 %v2256
        %v2375 = vpop.f32.mrf.mxu0
        %v2376 = vadd.f32 0.0, %v2375
        %v2377 = vpop.f32.mrf.mxu0
        %v2378 = vpop.f32.mrf.mxu0
        %v2379 = vadd.f32 0.0, %v2378
        %v2380 = vpop.f32.mrf.mxu0
        %2381 = vmatprep.mubr.bf16.mxu0 %v2295
        %2382 = vmatmul.mubr.bf16.gmra.mxu0 %v2258
        %v2383 = vpop.f32.mrf.mxu0
        %v2384 = vadd.f32 0.0, %v2383
        %v2385 = vpop.f32.mrf.mxu0
        %v2386 = vpop.f32.mrf.mxu0
        %v2387 = vadd.f32 0.0, %v2386
        %v2388 = vpop.f32.mrf.mxu0
        %2389 = vmatprep.mubr.bf16.mxu0 %v2298
        %2390 = vmatmul.mubr.bf16.gmra.mxu0 %v2260
        %v2391 = vpop.f32.mrf.mxu0
        %v2392 = vadd.f32 0.0, %v2391
        %v2393 = vpop.f32.mrf.mxu0
        %v2394 = vpop.f32.mrf.mxu0
        %v2395 = vadd.f32 0.0, %v2394
        %v2396 = vpop.f32.mrf.mxu0
        %2397 = vmatprep.mubr.bf16.mxu0 %v2301
        %2398 = vmatmul.mubr.bf16.gmra.mxu0 %v2262
        %v2399 = vpop.f32.mrf.mxu0
        %v2400 = vadd.f32 0.0, %v2399
        %v2401 = vpop.f32.mrf.mxu0
        %v2402 = vpop.f32.mrf.mxu0
        %v2403 = vadd.f32 0.0, %v2402
        %v2404 = vpop.f32.mrf.mxu0
        %2405 = vmatprep.mubr.bf16.mxu0 %v2304
        %2406 = vmatmul.mubr.bf16.gmra.mxu0 %v2264
        %v2407 = vpop.f32.mrf.mxu0
        %v2408 = vadd.f32 0.0, %v2407
        %v2409 = vpop.f32.mrf.mxu0
        %v2410 = vpop.f32.mrf.mxu0
        %v2411 = vadd.f32 0.0, %v2410
        %v2412 = vpop.f32.mrf.mxu0
        %2413 = vmatprep.mubr.bf16.mxu0 %v2307
        %2414 = vmatmul.mubr.bf16.gmra.mxu0 %v2266
        %v2415 = vpop.f32.mrf.mxu0
        %v2416 = vadd.f32 0.0, %v2415
        %v2417 = vpop.f32.mrf.mxu0
        %v2418 = vpop.f32.mrf.mxu0
        %v2419 = vadd.f32 0.0, %v2418
        %v2420 = vpop.f32.mrf.mxu0
        %2421 = vdwg.mxu0
        %2422 = vmatprep.subr.bf16.mxu0 0
        %2423 = vmatpush1.bf16.msra.mxu0 %v2185
        %2424 = vmatprep.subr.bf16.mxu0 0
        %2425 = vmatpush1.bf16.msra.mxu0 %v2184
        %2426 = vmatprep.subr.bf16.mxu0 0
        %2427 = vmatpush1.bf16.msra.mxu0 %v2183
        %2428 = vmatprep.subr.bf16.mxu0 0
        %2429 = vmatpush1.bf16.msra.mxu0 %v2182
        %2430 = vmatprep.subr.bf16.mxu0 0
        %2431 = vmatpush1.bf16.msra.mxu0 %v2181
        %2432 = vmatprep.subr.bf16.mxu0 0
        %2433 = vmatpush1.bf16.msra.mxu0 %v2180
        %2434 = vmatprep.subr.bf16.mxu0 0
        %2435 = vmatpush1.bf16.msra.mxu0 %v2179
        %2436 = vmatprep.subr.bf16.mxu0 0
        %2437 = vmatpush1.bf16.msra.mxu0 %v2178
        %2438 = vmatprep.subr.bf16.mxu0 0
        %2439 = vmatpush2.bf16.msra.mxu0 0
        %2440 = vmatprep.subr.bf16.mxu0 0
        %2441 = vmatpush2.bf16.msra.mxu0 0
        %2442 = vmatprep.subr.bf16.mxu0 0
        %2443 = vmatpush2.bf16.msra.mxu0 0
        %2444 = vmatprep.subr.bf16.mxu0 0
        %2445 = vmatpush2.bf16.msra.mxu0 0
        %2446 = vmatprep.subr.bf16.mxu0 0
        %2447 = vmatpush2.bf16.msra.mxu0 0
        %2448 = vmatprep.subr.bf16.mxu0 0
        %2449 = vmatpush2.bf16.msra.mxu0 0
        %2450 = vmatprep.subr.bf16.mxu0 0
        %2451 = vmatpush2.bf16.msra.mxu0 %v2187
        %2452 = vmatprep.subr.bf16.mxu0 0
        %2453 = vmatpush2.bf16.msra.mxu0 %v2186
        %2454 = vmatprep.mubr.bf16.mxu0 %v2280
        %2455 = vmatmul.mubr.bf16.gmra.mxu0 %v2248
        %v2456 = vpop.f32.mrf.mxu0
        %v2457 = vadd.f32 0.0, %v2456
        %v2458 = vpop.f32.mrf.mxu0
        %v2459 = vpop.f32.mrf.mxu0
        %v2460 = vadd.f32 0.0, %v2459
        %v2461 = vpop.f32.mrf.mxu0
        %2462 = vmatprep.mubr.bf16.mxu0 %v2283
        %2463 = vmatmul.mubr.bf16.gmra.mxu0 %v2250
        %v2464 = vpop.f32.mrf.mxu0
        %v2465 = vadd.f32 0.0, %v2464
        %v2466 = vpop.f32.mrf.mxu0
        %v2467 = vpop.f32.mrf.mxu0
        %v2468 = vadd.f32 0.0, %v2467
        %v2469 = vpop.f32.mrf.mxu0
        %2470 = vmatprep.mubr.bf16.mxu0 %v2286
        %2471 = vmatmul.mubr.bf16.gmra.mxu0 %v2252
        %v2472 = vpop.f32.mrf.mxu0
        %v2473 = vadd.f32 0.0, %v2472
        %v2474 = vpop.f32.mrf.mxu0
        %v2475 = vpop.f32.mrf.mxu0
        %v2476 = vadd.f32 0.0, %v2475
        %v2477 = vpop.f32.mrf.mxu0
        %2478 = vmatprep.mubr.bf16.mxu0 %v2289
        %2479 = vmatmul.mubr.bf16.gmra.mxu0 %v2254
        %v2480 = vpop.f32.mrf.mxu0
        %v2481 = vadd.f32 0.0, %v2480
        %v2482 = vpop.f32.mrf.mxu0
        %v2483 = vpop.f32.mrf.mxu0
        %v2484 = vadd.f32 0.0, %v2483
        %v2485 = vpop.f32.mrf.mxu0
        %2486 = vmatprep.mubr.bf16.mxu0 %v2292
        %2487 = vmatmul.mubr.bf16.gmra.mxu0 %v2256
        %v2488 = vpop.f32.mrf.mxu0
        %v2489 = vadd.f32 0.0, %v2488
        %v2490 = vpop.f32.mrf.mxu0
        %v2491 = vpop.f32.mrf.mxu0
        %v2492 = vadd.f32 0.0, %v2491
        %v2493 = vpop.f32.mrf.mxu0
        %2494 = vmatprep.mubr.bf16.mxu0 %v2295
        %2495 = vmatmul.mubr.bf16.gmra.mxu0 %v2258
        %v2496 = vpop.f32.mrf.mxu0
        %v2497 = vadd.f32 0.0, %v2496
        %v2498 = vpop.f32.mrf.mxu0
        %v2499 = vpop.f32.mrf.mxu0
        %v2500 = vadd.f32 0.0, %v2499
        %v2501 = vpop.f32.mrf.mxu0
        %2502 = vmatprep.mubr.bf16.mxu0 %v2298
        %2503 = vmatmul.mubr.bf16.gmra.mxu0 %v2260
        %v2504 = vpop.f32.mrf.mxu0
        %v2505 = vadd.f32 0.0, %v2504
        %v2506 = vpop.f32.mrf.mxu0
        %v2507 = vpop.f32.mrf.mxu0
        %v2508 = vadd.f32 0.0, %v2507
        %v2509 = vpop.f32.mrf.mxu0
        %2510 = vmatprep.mubr.bf16.mxu0 %v2301
        %2511 = vmatmul.mubr.bf16.gmra.mxu0 %v2262
        %v2512 = vpop.f32.mrf.mxu0
        %v2513 = vadd.f32 0.0, %v2512
        %v2514 = vpop.f32.mrf.mxu0
        %v2515 = vpop.f32.mrf.mxu0
        %v2516 = vadd.f32 0.0, %v2515
        %v2517 = vpop.f32.mrf.mxu0
        %2518 = vmatprep.mubr.bf16.mxu0 %v2304
        %2519 = vmatmul.mubr.bf16.gmra.mxu0 %v2264
        %v2520 = vpop.f32.mrf.mxu0
        %v2521 = vadd.f32 0.0, %v2520
        %v2522 = vpop.f32.mrf.mxu0
        %v2523 = vpop.f32.mrf.mxu0
        %v2524 = vadd.f32 0.0, %v2523
        %v2525 = vpop.f32.mrf.mxu0
        %2526 = vmatprep.mubr.bf16.mxu0 %v2307
        %2527 = vmatmul.mubr.bf16.gmra.mxu0 %v2266
        %v2528 = vpop.f32.mrf.mxu0
        %v2529 = vadd.f32 0.0, %v2528
        %v2530 = vpop.f32.mrf.mxu0
        %v2531 = vpop.f32.mrf.mxu0
        %v2532 = vadd.f32 0.0, %v2531
        %v2533 = vpop.f32.mrf.mxu0
        %2534 = vdwg.mxu0
        %2539 = vrot.lane.b32.xlu0 %v2360, 116
        %v2540 = vpop.permute.xlu0 %2539
        %2541 = vrot.lane.b32.xlu0 %v2363, 116
        %v2542 = vpop.permute.xlu0 %2541
        %2543 = vrot.lane.b32.xlu0 %v2368, 116
        %v2544 = vpop.permute.xlu0 %2543
        %2545 = vrot.lane.b32.xlu0 %v2371, 116
        %v2546 = vpop.permute.xlu0 %2545
        %v2551 = vadd.f32 %v2344, %v2540
        %v2552 = vadd.f32 %v2347, %v2542
        %v2553 = vadd.f32 %v2352, %v2544
        %v2554 = vadd.f32 %v2355, %v2546
        %2559 = vrot.lane.b32.xlu0 %v2376, 127
        %v2560 = vpop.permute.xlu0 %2559
        %2561 = vrot.lane.b32.xlu0 %v2379, 127
        %v2562 = vpop.permute.xlu0 %2561
        %2563 = vrot.lane.b32.xlu0 %v2384, 127
        %v2564 = vpop.permute.xlu0 %2563
        %2565 = vrot.lane.b32.xlu0 %v2387, 127
        %v2566 = vpop.permute.xlu0 %2565
        %v2571 = vadd.f32 %v2551, %v2560
        %v2572 = vadd.f32 %v2552, %v2562
        %v2573 = vadd.f32 %v2553, %v2564
        %v2574 = vadd.f32 %v2554, %v2566
        %2579 = vrot.lane.b32.xlu0 %v2392, 115
        %v2580 = vpop.permute.xlu0 %2579
        %2581 = vrot.lane.b32.xlu0 %v2395, 115
        %v2582 = vpop.permute.xlu0 %2581
        %2583 = vrot.lane.b32.xlu0 %v2400, 115
        %v2584 = vpop.permute.xlu0 %2583
        %2585 = vrot.lane.b32.xlu0 %v2403, 115
        %v2586 = vpop.permute.xlu0 %2585
        %v2591 = vadd.f32 %v2571, %v2580
        %v2592 = vadd.f32 %v2572, %v2582
        %v2593 = vadd.f32 %v2573, %v2584
        %v2594 = vadd.f32 %v2574, %v2586
        %2599 = vrot.lane.b32.xlu0 %v2408, 126
        %v2600 = vpop.permute.xlu0 %2599
        %2601 = vrot.lane.b32.xlu0 %v2411, 126
        %v2602 = vpop.permute.xlu0 %2601
        %2603 = vrot.lane.b32.xlu0 %v2416, 126
        %v2604 = vpop.permute.xlu0 %2603
        %2605 = vrot.lane.b32.xlu0 %v2419, 126
        %v2606 = vpop.permute.xlu0 %2605
        %v2611 = vadd.f32 %v2591, %v2600
        %v2612 = vadd.f32 %v2592, %v2602
        %v2613 = vadd.f32 %v2593, %v2604
        %v2614 = vadd.f32 %v2594, %v2606
        %2616 = vset.pattern.permute.xlu0 0
        %2617 = vperm.xlu0 %2616, %v2140
        %v2618 = vpop.permute.xlu0 %2617
        %2621 = vset.pattern.permute.xlu0 0
        %2622 = vperm.xlu0 %2621, %v2141
        %v2623 = vpop.permute.xlu0 %2622
        %2626 = vset.pattern.permute.xlu0 0
        %2627 = vperm.xlu0 %2626, %v2142
        %v2628 = vpop.permute.xlu0 %2627
        %2631 = vset.pattern.permute.xlu0 0
        %2632 = vperm.xlu0 %2631, %v2143
        %v2633 = vpop.permute.xlu0 %2632
        %v2635 = vadd.f32 %v2611, %v2618
        %v2636 = vadd.f32 %v2612, %v2623
        %v2637 = vadd.f32 %v2613, %v2628
        %v2638 = vadd.f32 %v2614, %v2633
        %v2639 = vmax.f32 %v2635, 0.0
        %v2640 = vmax.f32 %v2636, 0.0
        %v2641 = vmax.f32 %v2637, 0.0
        %v2642 = vmax.f32 %v2638, 0.0
        %2643 = vrot.lane.b32.xlu0 %v2360, 11
        %v2644 = vpop.permute.xlu0 %2643
        %2645 = vrot.lane.b32.xlu0 %v2363, 11
        %v2646 = vpop.permute.xlu0 %2645
        %2647 = vrot.lane.b32.xlu0 %v2368, 11
        %v2648 = vpop.permute.xlu0 %2647
        %2649 = vrot.lane.b32.xlu0 %v2371, 11
        %v2650 = vpop.permute.xlu0 %2649
        %v2655 = vadd.f32 %v2344, %v2644
        %v2656 = vadd.f32 %v2347, %v2646
        %v2657 = vadd.f32 %v2352, %v2648
        %v2658 = vadd.f32 %v2355, %v2650
        %v2659 = vadd.f32 %v2655, %v2560
        %v2660 = vadd.f32 %v2656, %v2562
        %v2661 = vadd.f32 %v2657, %v2564
        %v2662 = vadd.f32 %v2658, %v2566
        %2663 = vrot.lane.b32.xlu0 %v2392, 10
        %v2664 = vpop.permute.xlu0 %2663
        %2665 = vrot.lane.b32.xlu0 %v2395, 10
        %v2666 = vpop.permute.xlu0 %2665
        %2667 = vrot.lane.b32.xlu0 %v2400, 10
        %v2668 = vpop.permute.xlu0 %2667
        %2669 = vrot.lane.b32.xlu0 %v2403, 10
        %v2670 = vpop.permute.xlu0 %2669
        %v2675 = vadd.f32 %v2659, %v2664
        %v2676 = vadd.f32 %v2660, %v2666
        %v2677 = vadd.f32 %v2661, %v2668
        %v2678 = vadd.f32 %v2662, %v2670
        %v2679 = vadd.f32 %v2675, %v2600
        %v2680 = vadd.f32 %v2676, %v2602
        %v2681 = vadd.f32 %v2677, %v2604
        %v2682 = vadd.f32 %v2678, %v2606
        %v2683 = vadd.f32 %v2679, %v2618
        %v2684 = vadd.f32 %v2680, %v2623
        %v2685 = vadd.f32 %v2681, %v2628
        %v2686 = vadd.f32 %v2682, %v2633
        %v2687 = vmax.f32 %v2683, 0.0
        %v2688 = vmax.f32 %v2684, 0.0
        %v2689 = vmax.f32 %v2685, 0.0
        %v2690 = vmax.f32 %v2686, 0.0
        %2695 = vrot.lane.b32.xlu0 %v2473, 116
        %v2696 = vpop.permute.xlu0 %2695
        %2697 = vrot.lane.b32.xlu0 %v2476, 116
        %v2698 = vpop.permute.xlu0 %2697
        %2699 = vrot.lane.b32.xlu0 %v2481, 116
        %v2700 = vpop.permute.xlu0 %2699
        %2701 = vrot.lane.b32.xlu0 %v2484, 116
        %v2702 = vpop.permute.xlu0 %2701
        %v2707 = vadd.f32 %v2457, %v2696
        %v2708 = vadd.f32 %v2460, %v2698
        %v2709 = vadd.f32 %v2465, %v2700
        %v2710 = vadd.f32 %v2468, %v2702
        %2715 = vrot.lane.b32.xlu0 %v2489, 127
        %v2716 = vpop.permute.xlu0 %2715
        %2717 = vrot.lane.b32.xlu0 %v2492, 127
        %v2718 = vpop.permute.xlu0 %2717
        %2719 = vrot.lane.b32.xlu0 %v2497, 127
        %v2720 = vpop.permute.xlu0 %2719
        %2721 = vrot.lane.b32.xlu0 %v2500, 127
        %v2722 = vpop.permute.xlu0 %2721
        %v2727 = vadd.f32 %v2707, %v2716
        %v2728 = vadd.f32 %v2708, %v2718
        %v2729 = vadd.f32 %v2709, %v2720
        %v2730 = vadd.f32 %v2710, %v2722
        %2735 = vrot.lane.b32.xlu0 %v2505, 115
        %v2736 = vpop.permute.xlu0 %2735
        %2737 = vrot.lane.b32.xlu0 %v2508, 115
        %v2738 = vpop.permute.xlu0 %2737
        %2739 = vrot.lane.b32.xlu0 %v2513, 115
        %v2740 = vpop.permute.xlu0 %2739
        %2741 = vrot.lane.b32.xlu0 %v2516, 115
        %v2742 = vpop.permute.xlu0 %2741
        %v2747 = vadd.f32 %v2727, %v2736
        %v2748 = vadd.f32 %v2728, %v2738
        %v2749 = vadd.f32 %v2729, %v2740
        %v2750 = vadd.f32 %v2730, %v2742
        %2755 = vrot.lane.b32.xlu0 %v2521, 126
        %v2756 = vpop.permute.xlu0 %2755
        %2757 = vrot.lane.b32.xlu0 %v2524, 126
        %v2758 = vpop.permute.xlu0 %2757
        %2759 = vrot.lane.b32.xlu0 %v2529, 126
        %v2760 = vpop.permute.xlu0 %2759
        %2761 = vrot.lane.b32.xlu0 %v2532, 126
        %v2762 = vpop.permute.xlu0 %2761
        %v2767 = vadd.f32 %v2747, %v2756
        %v2768 = vadd.f32 %v2748, %v2758
        %v2769 = vadd.f32 %v2749, %v2760
        %v2770 = vadd.f32 %v2750, %v2762
        %v2771 = vadd.f32 %v2767, %v2618
        %v2772 = vadd.f32 %v2768, %v2623
        %v2773 = vadd.f32 %v2769, %v2628
        %v2774 = vadd.f32 %v2770, %v2633
        %v2775 = vmax.f32 %v2771, 0.0
        %v2776 = vmax.f32 %v2772, 0.0
        %v2777 = vmax.f32 %v2773, 0.0
        %v2778 = vmax.f32 %v2774, 0.0
        %2779 = vrot.lane.b32.xlu0 %v2473, 11
        %v2780 = vpop.permute.xlu0 %2779
        %2781 = vrot.lane.b32.xlu0 %v2476, 11
        %v2782 = vpop.permute.xlu0 %2781
        %2783 = vrot.lane.b32.xlu0 %v2481, 11
        %v2784 = vpop.permute.xlu0 %2783
        %2785 = vrot.lane.b32.xlu0 %v2484, 11
        %v2786 = vpop.permute.xlu0 %2785
        %v2791 = vadd.f32 %v2457, %v2780
        %v2792 = vadd.f32 %v2460, %v2782
        %v2793 = vadd.f32 %v2465, %v2784
        %v2794 = vadd.f32 %v2468, %v2786
        %v2795 = vadd.f32 %v2791, %v2716
        %v2796 = vadd.f32 %v2792, %v2718
        %v2797 = vadd.f32 %v2793, %v2720
        %v2798 = vadd.f32 %v2794, %v2722
        %2799 = vrot.lane.b32.xlu0 %v2505, 10
        %v2800 = vpop.permute.xlu0 %2799
        %2801 = vrot.lane.b32.xlu0 %v2508, 10
        %v2802 = vpop.permute.xlu0 %2801
        %2803 = vrot.lane.b32.xlu0 %v2513, 10
        %v2804 = vpop.permute.xlu0 %2803
        %2805 = vrot.lane.b32.xlu0 %v2516, 10
        %v2806 = vpop.permute.xlu0 %2805
        %v2811 = vadd.f32 %v2795, %v2800
        %v2812 = vadd.f32 %v2796, %v2802
        %v2813 = vadd.f32 %v2797, %v2804
        %v2814 = vadd.f32 %v2798, %v2806
        %v2815 = vadd.f32 %v2811, %v2756
        %v2816 = vadd.f32 %v2812, %v2758
        %v2817 = vadd.f32 %v2813, %v2760
        %v2818 = vadd.f32 %v2814, %v2762
        %v2819 = vadd.f32 %v2815, %v2618
        %v2820 = vadd.f32 %v2816, %v2623
        %v2821 = vadd.f32 %v2817, %v2628
        %v2822 = vadd.f32 %v2818, %v2633
        %v2823 = vmax.f32 %v2819, 0.0
        %v2824 = vmax.f32 %v2820, 0.0
        %v2825 = vmax.f32 %v2821, 0.0
        %v2826 = vmax.f32 %v2822, 0.0
        %2831 = vrot.lane.b32.xlu0 %v2687, 116
        %v2832 = vpop.permute.xlu0 %2831
        %2833 = vrot.lane.b32.xlu0 %v2688, 116
        %v2834 = vpop.permute.xlu0 %2833
        %2835 = vrot.lane.b32.xlu0 %v2689, 116
        %v2836 = vpop.permute.xlu0 %2835
        %2837 = vrot.lane.b32.xlu0 %v2690, 116
        %v2838 = vpop.permute.xlu0 %2837
        %v2843 = vmax.f32 %v2639, %v2832
        %v2844 = vmax.f32 %v2640, %v2834
        %v2845 = vmax.f32 %v2641, %v2836
        %v2846 = vmax.f32 %v2642, %v2838
        %2851 = vrot.lane.b32.xlu0 %v2823, 116
        %v2852 = vpop.permute.xlu0 %2851
        %2853 = vrot.lane.b32.xlu0 %v2824, 116
        %v2854 = vpop.permute.xlu0 %2853
        %2855 = vrot.lane.b32.xlu0 %v2825, 116
        %v2856 = vpop.permute.xlu0 %2855
        %2857 = vrot.lane.b32.xlu0 %v2826, 116
        %v2858 = vpop.permute.xlu0 %2857
        %v2863 = vmax.f32 %v2775, %v2852
        %v2864 = vmax.f32 %v2776, %v2854
        %v2865 = vmax.f32 %v2777, %v2856
        %v2866 = vmax.f32 %v2778, %v2858
        %v2867 = vmax.f32 %v2843, %v2863
        %v2868 = vmax.f32 %v2844, %v2864
        %v2869 = vmax.f32 %v2845, %v2865
        %v2870 = vmax.f32 %v2846, %v2866
        %s2871 = smul.u32 %s2145, 32
        %s2872 = scalar_lea.vmem %s413, %s2871
        %vm2873 = vcmask 80896
        %2874 = vst.msk [vmem:[%s2872] sm:$0xff] %vm2873, %v2867
        %2875 = vst.msk [vmem:[%s2872 + $0x8] sm:$0xff] %vm2873, %v2868
        %2876 = vst.msk [vmem:[%s2872 + $0x10] sm:$0xff] %vm2873, %v2869
        %2877 = vst.msk [vmem:[%s2872 + $0x18] sm:$0xff] %vm2873, %v2870
      $region94: #{multitask_cnn_forward.1} parent=67 // loop_footer
        %s2149 = sadd.s32 1, %s2145
      $region95: #{multitask_cnn_forward.1} parent=67 // loop_footer_branch
        %2144 = sbr.rel target = $region91
      $region96: #{multitask_cnn_forward.1} parent=67 // loop_exit
        _
      %p2878 = scmp.lt.s32.totalorder %s23, 1
      %s2879 = scalar_select %p2878, %s23, 1
      %s2880 = smul.addr %s2879, 40
      %s2881 = smul.addr %s2880, 8
      %s2882 = scalar_lea.vmem %s12, %s2881
      // Predicated region
      $region97: #{multitask_cnn_forward.1} parent=67 // pred_check
        %p2883 = pneg %p298
      $region98: #{multitask_cnn_forward.1} parent=67 // pred_check_branch
        %2885 = sbr.rel (%p2883) target = $region100
      $region99: #{multitask_cnn_forward.1} parent=67 // pred_region
        _
      $region100: #{multitask_cnn_forward.1} parent=67 // pred_fallthru
        _
    $region68: #{multitask_cnn_forward.1} parent=5 // pred_fallthru
      _
    %p2886 = scmp.le.s32.totalorder 2, %s18
    // Predicated region
    $region101: #{multitask_cnn_forward.1} parent=5 // pred_check
      %p2887 = pneg %p2886
    $region102: #{multitask_cnn_forward.1} parent=5 // pred_check_branch
      %2889 = sbr.rel (%p2887) target = $region104
    $region103: #{multitask_cnn_forward.1} parent=5 // pred_region
      %s2890 = ssub.s32 %s18, 2
      // Predicated region
      $region105: #{multitask_cnn_forward.1} parent=103 // pred_check
        %p2891 = pneg %p304
      $region106: #{multitask_cnn_forward.1} parent=103 // pred_check_branch
        %2893 = sbr.rel (%p2891) target = $region108
      $region107: #{multitask_cnn_forward.1} parent=103 // pred_region
        %p2894 = scmp.lt.s32.totalorder %s24, 1
        %s2895 = scalar_select %p2894, %s24, 1
        %s2896 = smul.addr %s2895, 40
        %s2897 = smul.addr %s2896, 8
        %s2898 = scalar_lea.vmem %s12, %s2897
      $region108: #{multitask_cnn_forward.1} parent=103 // pred_fallthru
        _
    $region104: #{multitask_cnn_forward.1} parent=5 // pred_fallthru
      _
  $region6: #{multitask_cnn_forward.1} parent=0 // loop_footer
    %s22 = sadd.s32 1, %s18
  $region7: #{multitask_cnn_forward.1} parent=0 // loop_footer_branch
    %17 = sbr.rel target = $region3
  $region8: #{multitask_cnn_forward.1} parent=0 // loop_exit
    _

</llo_original>
